<compile_context>
chip_gen: v6e
topology: v6e:2x2x1
jax: 0.10.0
libtpu: 0.0.40
codegen_flags: <defaults>
</compile_context>

<pallas_src>
import functools

import jax
import jax.numpy as jnp
import numpy as np
from jax import lax
from jax.experimental import pallas as pl
from jax.experimental.pallas import tpu as pltpu


def encoder_kernel(
    x_ref,                      # (T*B, E)    bf16 embedded inputs, time-major, flattened
    mask_ref,                   # (T*B, 1)    f32 validity mask (1.0 where t < length)
    wih0_ref,                   # (E, 8H)     bf16, [fwd 4H | bwd 4H], gate order (i,f,o,g)
    whh0f_ref, whh0b_ref,       # (H, 4H)     bf16 each
    b0_ref,                     # (1, 8H)     f32
    wih1_ref,                   # (2H, 8H)    bf16
    whh1f_ref, whh1b_ref,       # (H, 4H)     bf16 each
    b1_ref,                     # (1, 8H)     f32
    wlin_ref,                   # (8H, latent) bf16
    blin_ref,                   # (1, latent)  f32
    out_ref,                    # (B, latent)  f32
    gx_ref,                     # scratch (T*B, 8H) f32: hoisted input-to-hidden gates
    seq_ref,                    # scratch (T*B, 2H) f32: layer-0 [h_fwd | h_bwd] sequence
    cat_ref,                    # scratch (B, 8H)   f32: h/c finals for the Linear
    *, T, B, H,
):
    H2, H3, H4 = 2 * H, 3 * H, 4 * H
    bf16 = jnp.bfloat16

    def lstm_update(gates, h, c, m):
        # gates columns ordered (i, f, o, g): one sigmoid over 3H, one tanh over H.
        ifo = jax.nn.sigmoid(gates[:, :H3])
        g = jnp.tanh(gates[:, H3:])
        c_new = ifo[:, H:H2] * c + ifo[:, :H] * g
        h_new = ifo[:, H2:H3] * jnp.tanh(c_new)
        # masked (padded) steps carry the previous state (pack_padded_sequence semantics)
        h = m * h_new + (1.0 - m) * h
        c = m * c_new + (1.0 - m) * c
        return h, c

    def run_bidir(whh_f, whh_b, store):
        # Interleave the two independent directions in one loop iteration:
        # forward at time t, backward at time T-1-t.
        def step(t, carry):
            hf, cf, hb, cb = carry
            rf = pl.multiple_of(t * B, B)
            rb = pl.multiple_of((T - 1 - t) * B, B)
            gates_f = gx_ref[pl.ds(rf, B), :H4] + jnp.dot(
                hf.astype(bf16), whh_f, preferred_element_type=jnp.float32)
            gates_b = gx_ref[pl.ds(rb, B), H4:] + jnp.dot(
                hb.astype(bf16), whh_b, preferred_element_type=jnp.float32)
            hf, cf = lstm_update(gates_f, hf, cf, mask_ref[pl.ds(rf, B)])
            hb, cb = lstm_update(gates_b, hb, cb, mask_ref[pl.ds(rb, B)])
            if store:
                seq_ref[pl.ds(rf, B), :H] = hf
                seq_ref[pl.ds(rb, B), H:] = hb
            return hf, cf, hb, cb

        z = jnp.zeros((B, H), jnp.float32)
        # T is a small static constant -> fully unroll the recurrence.
        return lax.fori_loop(0, T, step, (z, z, z, z), unroll=True)

    # ---- layer 0: one hoisted (T*B, E) x (E, 8H) GEMM feeds both directions ----
    gx_ref[...] = jnp.dot(x_ref[...], wih0_ref[...],
                          preferred_element_type=jnp.float32) + b0_ref[...]
    h0f, c0f, h0b, c0b = run_bidir(whh0f_ref[...], whh0b_ref[...], store=True)

    # ---- layer 1: one hoisted (T*B, 2H) x (2H, 8H) GEMM on layer-0 outputs ----
    gx_ref[...] = jnp.dot(seq_ref[...].astype(bf16), wih1_ref[...],
                          preferred_element_type=jnp.float32) + b1_ref[...]
    h1f, c1f, h1b, c1b = run_bidir(whh1f_ref[...], whh1b_ref[...], store=False)

    # ---- epilogue: finals at fixed offsets (no 8-way lane concat), Linear, ReLU ----
    # torch.cat((h[0], c[0], h[2], c[2], h[1], c[1], h[3], c[3]), dim=-1)
    # PyTorch layout: h[0]=L0 fwd, h[1]=L0 bwd, h[2]=L1 fwd, h[3]=L1 bwd
    cat_ref[:, 0 * H:1 * H] = h0f
    cat_ref[:, 1 * H:2 * H] = c0f
    cat_ref[:, 2 * H:3 * H] = h1f
    cat_ref[:, 3 * H:4 * H] = c1f
    cat_ref[:, 4 * H:5 * H] = h0b
    cat_ref[:, 5 * H:6 * H] = c0b
    cat_ref[:, 6 * H:7 * H] = h1b
    cat_ref[:, 7 * H:8 * H] = c1b
    out = jnp.dot(cat_ref[...].astype(bf16), wlin_ref[...],
                  preferred_element_type=jnp.float32) + blin_ref[...]
    out_ref[...] = jnp.maximum(out, 0.0)                    # F.relu


def _padded_bytes(shape, itemsize):
    """Conservative (8,128)-tile-padded VMEM footprint of a 2D array."""
    r, c = shape[-2], shape[-1]
    return ((r + 7) // 8 * 8) * ((c + 127) // 128 * 128) * max(itemsize, 4)


def encoder_forward(tokens, lengths, params):
    # Glue (plain JAX): embedding gather, layout transpose, batch padding,
    # one-time gate reordering / direction fusing of the weights.
    emb = params["embedding"][tokens]                        # (B, T, E) f32
    B, T, E = emb.shape
    H = params["whh_l0f"].shape[0]
    latent = params["wlin"].shape[1]
    B_pad = ((B + 7) // 8) * 8                               # sublane multiple of 8

    x = jnp.transpose(emb, (1, 0, 2))                        # (T, B, E) time-major
    x = jnp.pad(x, ((0, 0), (0, B_pad - B), (0, 0)))
    x = x.reshape(T * B_pad, E).astype(jnp.bfloat16)

    lens = jnp.pad(lengths.astype(jnp.int32), (0, B_pad - B))      # pad rows -> length 0
    mask = (jnp.arange(T, dtype=jnp.int32)[:, None] < lens[None, :]).astype(jnp.float32)
    mask = mask.reshape(T * B_pad, 1)

    def reorder(w):   # columns [i|f|g|o] -> [i|f|o|g] (lane-friendlier activations)
        return jnp.concatenate([w[:, :2 * H], w[:, 3 * H:], w[:, 2 * H:3 * H]], axis=1)

    bf16, f32 = jnp.bfloat16, jnp.float32
    wih0 = jnp.concatenate([reorder(params["wih_l0f"]), reorder(params["wih_l0b"])], 1).astype(bf16)
    b0 = jnp.concatenate([reorder(params["b_l0f"]), reorder(params["b_l0b"])], 1).astype(f32)
    whh0f = reorder(params["whh_l0f"]).astype(bf16)
    whh0b = reorder(params["whh_l0b"]).astype(bf16)
    wih1 = jnp.concatenate([reorder(params["wih_l1f"]), reorder(params["wih_l1b"])], 1).astype(bf16)
    b1 = jnp.concatenate([reorder(params["b_l1f"]), reorder(params["b_l1b"])], 1).astype(f32)
    whh1f = reorder(params["whh_l1f"]).astype(bf16)
    whh1b = reorder(params["whh_l1b"]).astype(bf16)
    wlin = params["wlin"].astype(bf16)
    blin = params["blin"].astype(f32)

    operands = (x, mask, wih0, whh0f, whh0b, b0, wih1, whh1f, whh1b, b1, wlin, blin)

    # Size the scoped-VMEM limit from what is actually resident (+ headroom).
    vmem_bytes = sum(_padded_bytes(a.shape, a.dtype.itemsize) for a in operands)
    vmem_bytes += _padded_bytes((T * B_pad, 8 * H), 4)       # gx scratch
    vmem_bytes += _padded_bytes((T * B_pad, 2 * H), 4)       # seq scratch
    vmem_bytes += _padded_bytes((B_pad, 8 * H), 4)           # cat scratch
    vmem_bytes += _padded_bytes((B_pad, latent), 4)          # output
    vmem_limit = int(min(max(2 * vmem_bytes, 16 << 20), 96 << 20))

    kernel = functools.partial(encoder_kernel, T=T, B=B_pad, H=H)
    vmem_spec = pl.BlockSpec(memory_space=pltpu.MemorySpace.VMEM)
    out = pl.pallas_call(
        kernel,
        out_shape=jax.ShapeDtypeStruct((B_pad, latent), jnp.float32),
        in_specs=[vmem_spec] * len(operands),
        out_specs=vmem_spec,
        scratch_shapes=[pltpu.VMEM((T * B_pad, 8 * H), jnp.float32),
                        pltpu.VMEM((T * B_pad, 2 * H), jnp.float32),
                        pltpu.VMEM((B_pad, 8 * H), jnp.float32)],
        compiler_params=pltpu.CompilerParams(vmem_limit_bytes=vmem_limit),
    )(*operands)
    return out[:B]


def init_params(key, V, E, H, latent):
    ks = jax.random.split(key, 15)
    w = lambda k, shape: 0.1 * jax.random.normal(k, shape, jnp.float32)
    return dict(
        embedding=w(ks[0], (V, E)),
        # layer 0 (input size E), PyTorch gate order (i, f, g, o), weights pre-transposed
        wih_l0f=w(ks[1], (E, 4 * H)), whh_l0f=w(ks[2], (H, 4 * H)), b_l0f=w(ks[3], (1, 4 * H)),
        wih_l0b=w(ks[4], (E, 4 * H)), whh_l0b=w(ks[5], (H, 4 * H)), b_l0b=w(ks[6], (1, 4 * H)),
        # layer 1 (input size 2H from bidirectional layer 0)
        wih_l1f=w(ks[7], (2 * H, 4 * H)), whh_l1f=w(ks[8], (H, 4 * H)), b_l1f=w(ks[9], (1, 4 * H)),
        wih_l1b=w(ks[10], (2 * H, 4 * H)), whh_l1b=w(ks[11], (H, 4 * H)), b_l1b=w(ks[12], (1, 4 * H)),
        # Linear((2 * num_layers * H * 2) = 8H -> latent)
        wlin=w(ks[13], (8 * H, latent)), blin=w(ks[14], (1, latent)),
    )


def reference_forward(tokens, lengths, params):
    """Pure-JAX reference with identical packed-LSTM semantics and the same numerics
    contract as the kernel (bf16 matmul operands, f32 accumulation, f32 gate math)."""
    emb = params["embedding"][tokens]
    B, T, _ = emb.shape
    H = params["whh_l0f"].shape[0]
    lens = lengths.reshape(B, 1)
    bf16 = jnp.bfloat16

    def mm(a, w):
        return jnp.dot(a.astype(bf16), w.astype(bf16), preferred_element_type=jnp.float32)

    def cell(x_t, h, c, wih, whh, b, t):
        gates = mm(x_t, wih) + mm(h, whh) + b
        i = jax.nn.sigmoid(gates[:, :H]); f = jax.nn.sigmoid(gates[:, H:2 * H])
        g = jnp.tanh(gates[:, 2 * H:3 * H]); o = jax.nn.sigmoid(gates[:, 3 * H:])
        c_new = f * c + i * g
        h_new = o * jnp.tanh(c_new)
        m = lens > t
        return jnp.where(m, h_new, h), jnp.where(m, c_new, c)

    def run(xs, wih, whh, b, reverse):
        h = jnp.zeros((B, H), jnp.float32); c = jnp.zeros((B, H), jnp.float32)
        outs = [None] * T
        order = range(T - 1, -1, -1) if reverse else range(T)
        for t in order:
            h, c = cell(xs[t], h, c, wih, whh, b, t)
            outs[t] = h
        return h, c, outs

    xs0 = [emb[:, t, :] for t in range(T)]
    h0f, c0f, of = run(xs0, params["wih_l0f"], params["whh_l0f"], params["b_l0f"], False)
    h0b, c0b, ob = run(xs0, params["wih_l0b"], params["whh_l0b"], params["b_l0b"], True)
    xs1 = [jnp.concatenate([of[t], ob[t]], axis=-1) for t in range(T)]
    h1f, c1f, _ = run(xs1, params["wih_l1f"], params["whh_l1f"], params["b_l1f"], False)
    h1b, c1b, _ = run(xs1, params["wih_l1b"], params["whh_l1b"], params["b_l1b"], True)
    cat = jnp.concatenate([h0f, c0f, h1f, c1f, h0b, c0b, h1b, c1b], axis=-1)
    return jnp.maximum(mm(cat, params["wlin"]) + params["blin"], 0.0)


if __name__ == "__main__":
    # Small shapes consistent with the module: num_layers=2, bidirectional=True
    V, E, H, LATENT = 32, 32, 32, 16
    B, T = 4, 8

    key = jax.random.PRNGKey(0)
    kp, kt = jax.random.split(key)
    params = init_params(kp, V, E, H, LATENT)
    tokens = jax.random.randint(kt, (B, T), 0, V, dtype=jnp.int32)
    # pack_padded_sequence(enforce_sorted=True) requires descending lengths
    lengths = jnp.array([8, 7, 5, 3], dtype=jnp.int32)

    out = jax.block_until_ready(encoder_forward(tokens, lengths, params))
    ref = reference_forward(tokens, lengths, params)
    np.testing.assert_allclose(np.asarray(out), np.asarray(ref), rtol=2e-3, atol=2e-3)
    print("KERNEL_OK")
</pallas_src>

<mosaic_0001>
module attributes {stable_mosaic.version = 11 : i64} {
  func.func @encoder_kernel(%arg0: memref<64x32xbf16, #tpu.memory_space<vmem>>, %arg1: memref<64x1xf32, #tpu.memory_space<vmem>>, %arg2: memref<32x256xbf16, #tpu.memory_space<vmem>>, %arg3: memref<32x128xbf16, #tpu.memory_space<vmem>>, %arg4: memref<32x128xbf16, #tpu.memory_space<vmem>>, %arg5: memref<1x256xf32, #tpu.memory_space<vmem>>, %arg6: memref<64x256xbf16, #tpu.memory_space<vmem>>, %arg7: memref<32x128xbf16, #tpu.memory_space<vmem>>, %arg8: memref<32x128xbf16, #tpu.memory_space<vmem>>, %arg9: memref<1x256xf32, #tpu.memory_space<vmem>>, %arg10: memref<256x16xbf16, #tpu.memory_space<vmem>>, %arg11: memref<1x16xf32, #tpu.memory_space<vmem>>, %arg12: memref<8x16xf32, #tpu.memory_space<vmem>>, %arg13: memref<64x256xf32, #tpu.memory_space<vmem>>, %arg14: memref<64x64xf32, #tpu.memory_space<vmem>>, %arg15: memref<8x256xf32, #tpu.memory_space<vmem>>) attributes {dimension_semantics = [], scalar_prefetch = 0 : i64, scratch_operands = 3 : i64, tpu.core_type = #tpu.core_type<tc>} {
    %c0 = arith.constant 0 : index
    %c0_0 = arith.constant 0 : index
    %0 = vector.load %arg0[%c0, %c0_0] : memref<64x32xbf16, #tpu.memory_space<vmem>>, vector<64x32xbf16>
    %c0_1 = arith.constant 0 : index
    %c0_2 = arith.constant 0 : index
    %1 = vector.load %arg2[%c0_1, %c0_2] : memref<32x256xbf16, #tpu.memory_space<vmem>>, vector<32x256xbf16>
    %cst = arith.constant dense<0.000000e+00> : vector<64x256xf32>
    %2 = tpu.matmul %0, %1, %cst {dimension_numbers = #tpu.dot_dimension_numbers<[1], [0], [0], [1], [0, 0, 1, 1], [], []>} : vector<64x32xbf16>, vector<32x256xbf16>, vector<64x256xf32> -> vector<64x256xf32>
    %c0_3 = arith.constant 0 : index
    %c0_4 = arith.constant 0 : index
    %3 = vector.load %arg5[%c0_3, %c0_4] : memref<1x256xf32, #tpu.memory_space<vmem>>, vector<1x256xf32>
    %4 = vector.broadcast %3 : vector<1x256xf32> to vector<64x256xf32>
    %5 = arith.addf %2, %4 : vector<64x256xf32>
    %c0_5 = arith.constant 0 : index
    %c0_6 = arith.constant 0 : index
    %6 = vector.load %arg13[%c0_5, %c0_6] : memref<64x256xf32, #tpu.memory_space<vmem>>, vector<64x256xf32>
    tpu.vector_store %arg13[%c0_5, %c0_6], %5 {strides = array<i32>} : memref<64x256xf32, #tpu.memory_space<vmem>>, vector<64x256xf32>,
    %c0_7 = arith.constant 0 : index
    %c0_8 = arith.constant 0 : index
    %7 = vector.load %arg3[%c0_7, %c0_8] : memref<32x128xbf16, #tpu.memory_space<vmem>>, vector<32x128xbf16>
    %c0_9 = arith.constant 0 : index
    %c0_10 = arith.constant 0 : index
    %8 = vector.load %arg4[%c0_9, %c0_10] : memref<32x128xbf16, #tpu.memory_space<vmem>>, vector<32x128xbf16>
    %cst_11 = arith.constant 0.000000e+00 : f32
    %9 = vector.broadcast %cst_11 : f32 to vector<8x32xf32>
    %c0_i32 = arith.constant 0 : i32
    %c8_i32 = arith.constant 8 : i32
    %10 = arith.muli %c0_i32, %c8_i32 : i32
    %11 = tpu.assume_multiple %10, 8 : i32
    %c7_i32 = arith.constant 7 : i32
    %12 = arith.subi %c7_i32, %c0_i32 : i32
    %c8_i32_12 = arith.constant 8 : i32
    %13 = arith.muli %12, %c8_i32_12 : i32
    %14 = tpu.assume_multiple %13, 8 : i32
    %15 = arith.index_cast %11 : i32 to index
    %c0_13 = arith.constant 0 : index
    %16 = vector.load %arg13[%15, %c0_13] : memref<64x256xf32, #tpu.memory_space<vmem>>, vector<8x128xf32>
    %17 = arith.truncf %9 : vector<8x32xf32> to vector<8x32xbf16>
    %cst_14 = arith.constant dense<0.000000e+00> : vector<8x128xf32>
    %18 = tpu.matmul %17, %7, %cst_14 {dimension_numbers = #tpu.dot_dimension_numbers<[1], [0], [0], [1], [0, 0, 1, 1], [], []>} : vector<8x32xbf16>, vector<32x128xbf16>, vector<8x128xf32> -> vector<8x128xf32>
    %19 = arith.addf %16, %18 : vector<8x128xf32>
    %20 = arith.index_cast %14 : i32 to index
    %c128 = arith.constant 128 : index
    %21 = vector.load %arg13[%20, %c128] : memref<64x256xf32, #tpu.memory_space<vmem>>, vector<8x128xf32>
    %22 = arith.truncf %9 : vector<8x32xf32> to vector<8x32xbf16>
    %cst_15 = arith.constant dense<0.000000e+00> : vector<8x128xf32>
    %23 = tpu.matmul %22, %8, %cst_15 {dimension_numbers = #tpu.dot_dimension_numbers<[1], [0], [0], [1], [0, 0, 1, 1], [], []>} : vector<8x32xbf16>, vector<32x128xbf16>, vector<8x128xf32> -> vector<8x128xf32>
    %24 = arith.addf %21, %23 : vector<8x128xf32>
    %25 = arith.index_cast %11 : i32 to index
    %c0_16 = arith.constant 0 : index
    %26 = vector.load %arg1[%25, %c0_16] : memref<64x1xf32, #tpu.memory_space<vmem>>, vector<8x1xf32>
    %27 = vector.extract_strided_slice %19 {offsets = [0, 0], sizes = [8, 96], strides = [1, 1]} : vector<8x128xf32> to vector<8x96xf32>
    %28 = arith.negf %27 : vector<8x96xf32>
    %29 = math.exp %28 : vector<8x96xf32>
    %cst_17 = arith.constant 1.000000e+00 : f32
    %30 = vector.broadcast %cst_17 : f32 to vector<8x96xf32>
    %31 = arith.addf %30, %29 : vector<8x96xf32>
    %32 = arith.divf %30, %31 : vector<8x96xf32>
    %33 = vector.extract_strided_slice %19 {offsets = [0, 96], sizes = [8, 32], strides = [1, 1]} : vector<8x128xf32> to vector<8x32xf32>
    %34 = math.tanh %33 : vector<8x32xf32>
    %35 = vector.extract_strided_slice %32 {offsets = [0, 32], sizes = [8, 32], strides = [1, 1]} : vector<8x96xf32> to vector<8x32xf32>
    %36 = arith.mulf %35, %9 : vector<8x32xf32>
    %37 = vector.extract_strided_slice %32 {offsets = [0, 0], sizes = [8, 32], strides = [1, 1]} : vector<8x96xf32> to vector<8x32xf32>
    %38 = arith.mulf %37, %34 : vector<8x32xf32>
    %39 = arith.addf %36, %38 : vector<8x32xf32>
    %40 = vector.extract_strided_slice %32 {offsets = [0, 64], sizes = [8, 32], strides = [1, 1]} : vector<8x96xf32> to vector<8x32xf32>
    %41 = math.tanh %39 : vector<8x32xf32>
    %42 = arith.mulf %40, %41 : vector<8x32xf32>
    %43 = vector.broadcast %26 : vector<8x1xf32> to vector<8x32xf32>
    %44 = arith.mulf %43, %42 : vector<8x32xf32>
    %cst_18 = arith.constant 1.000000e+00 : f32
    %45 = vector.broadcast %cst_18 : f32 to vector<8x1xf32>
    %46 = arith.subf %45, %26 : vector<8x1xf32>
    %47 = vector.broadcast %46 : vector<8x1xf32> to vector<8x32xf32>
    %48 = arith.mulf %47, %9 : vector<8x32xf32>
    %49 = arith.addf %44, %48 : vector<8x32xf32>
    %50 = vector.broadcast %26 : vector<8x1xf32> to vector<8x32xf32>
    %51 = arith.mulf %50, %39 : vector<8x32xf32>
    %cst_19 = arith.constant 1.000000e+00 : f32
    %52 = vector.broadcast %cst_19 : f32 to vector<8x1xf32>
    %53 = arith.subf %52, %26 : vector<8x1xf32>
    %54 = vector.broadcast %53 : vector<8x1xf32> to vector<8x32xf32>
    %55 = arith.mulf %54, %9 : vector<8x32xf32>
    %56 = arith.addf %51, %55 : vector<8x32xf32>
    %57 = arith.index_cast %14 : i32 to index
    %c0_20 = arith.constant 0 : index
    %58 = vector.load %arg1[%57, %c0_20] : memref<64x1xf32, #tpu.memory_space<vmem>>, vector<8x1xf32>
    %59 = vector.extract_strided_slice %24 {offsets = [0, 0], sizes = [8, 96], strides = [1, 1]} : vector<8x128xf32> to vector<8x96xf32>
    %60 = arith.negf %59 : vector<8x96xf32>
    %61 = math.exp %60 : vector<8x96xf32>
    %cst_21 = arith.constant 1.000000e+00 : f32
    %62 = vector.broadcast %cst_21 : f32 to vector<8x96xf32>
    %63 = arith.addf %62, %61 : vector<8x96xf32>
    %64 = arith.divf %62, %63 : vector<8x96xf32>
    %65 = vector.extract_strided_slice %24 {offsets = [0, 96], sizes = [8, 32], strides = [1, 1]} : vector<8x128xf32> to vector<8x32xf32>
    %66 = math.tanh %65 : vector<8x32xf32>
    %67 = vector.extract_strided_slice %64 {offsets = [0, 32], sizes = [8, 32], strides = [1, 1]} : vector<8x96xf32> to vector<8x32xf32>
    %68 = arith.mulf %67, %9 : vector<8x32xf32>
    %69 = vector.extract_strided_slice %64 {offsets = [0, 0], sizes = [8, 32], strides = [1, 1]} : vector<8x96xf32> to vector<8x32xf32>
    %70 = arith.mulf %69, %66 : vector<8x32xf32>
    %71 = arith.addf %68, %70 : vector<8x32xf32>
    %72 = vector.extract_strided_slice %64 {offsets = [0, 64], sizes = [8, 32], strides = [1, 1]} : vector<8x96xf32> to vector<8x32xf32>
    %73 = math.tanh %71 : vector<8x32xf32>
    %74 = arith.mulf %72, %73 : vector<8x32xf32>
    %75 = vector.broadcast %58 : vector<8x1xf32> to vector<8x32xf32>
    %76 = arith.mulf %75, %74 : vector<8x32xf32>
    %cst_22 = arith.constant 1.000000e+00 : f32
    %77 = vector.broadcast %cst_22 : f32 to vector<8x1xf32>
    %78 = arith.subf %77, %58 : vector<8x1xf32>
    %79 = vector.broadcast %78 : vector<8x1xf32> to vector<8x32xf32>
    %80 = arith.mulf %79, %9 : vector<8x32xf32>
    %81 = arith.addf %76, %80 : vector<8x32xf32>
    %82 = vector.broadcast %58 : vector<8x1xf32> to vector<8x32xf32>
    %83 = arith.mulf %82, %71 : vector<8x32xf32>
    %cst_23 = arith.constant 1.000000e+00 : f32
    %84 = vector.broadcast %cst_23 : f32 to vector<8x1xf32>
    %85 = arith.subf %84, %58 : vector<8x1xf32>
    %86 = vector.broadcast %85 : vector<8x1xf32> to vector<8x32xf32>
    %87 = arith.mulf %86, %9 : vector<8x32xf32>
    %88 = arith.addf %83, %87 : vector<8x32xf32>
    %89 = arith.index_cast %11 : i32 to index
    %c0_24 = arith.constant 0 : index
    %90 = vector.load %arg14[%89, %c0_24] : memref<64x64xf32, #tpu.memory_space<vmem>>, vector<8x32xf32>
    tpu.vector_store %arg14[%89, %c0_24], %49 {strides = array<i32>} : memref<64x64xf32, #tpu.memory_space<vmem>>, vector<8x32xf32>,
    %91 = arith.index_cast %14 : i32 to index
    %c32 = arith.constant 32 : index
    %92 = vector.load %arg14[%91, %c32] : memref<64x64xf32, #tpu.memory_space<vmem>>, vector<8x32xf32>
    tpu.vector_store %arg14[%91, %c32], %81 {strides = array<i32>} : memref<64x64xf32, #tpu.memory_space<vmem>>, vector<8x32xf32>,
    %c1_i32 = arith.constant 1 : i32
    %c8_i32_25 = arith.constant 8 : i32
    %93 = arith.muli %c1_i32, %c8_i32_25 : i32
    %94 = tpu.assume_multiple %93, 8 : i32
    %c7_i32_26 = arith.constant 7 : i32
    %95 = arith.subi %c7_i32_26, %c1_i32 : i32
    %c8_i32_27 = arith.constant 8 : i32
    %96 = arith.muli %95, %c8_i32_27 : i32
    %97 = tpu.assume_multiple %96, 8 : i32
    %98 = arith.index_cast %94 : i32 to index
    %c0_28 = arith.constant 0 : index
    %99 = vector.load %arg13[%98, %c0_28] : memref<64x256xf32, #tpu.memory_space<vmem>>, vector<8x128xf32>
    %100 = arith.truncf %49 : vector<8x32xf32> to vector<8x32xbf16>
    %cst_29 = arith.constant dense<0.000000e+00> : vector<8x128xf32>
    %101 = tpu.matmul %100, %7, %cst_29 {dimension_numbers = #tpu.dot_dimension_numbers<[1], [0], [0], [1], [0, 0, 1, 1], [], []>} : vector<8x32xbf16>, vector<32x128xbf16>, vector<8x128xf32> -> vector<8x128xf32>
    %102 = arith.addf %99, %101 : vector<8x128xf32>
    %103 = arith.index_cast %97 : i32 to index
    %c128_30 = arith.constant 128 : index
    %104 = vector.load %arg13[%103, %c128_30] : memref<64x256xf32, #tpu.memory_space<vmem>>, vector<8x128xf32>
    %105 = arith.truncf %81 : vector<8x32xf32> to vector<8x32xbf16>
    %cst_31 = arith.constant dense<0.000000e+00> : vector<8x128xf32>
    %106 = tpu.matmul %105, %8, %cst_31 {dimension_numbers = #tpu.dot_dimension_numbers<[1], [0], [0], [1], [0, 0, 1, 1], [], []>} : vector<8x32xbf16>, vector<32x128xbf16>, vector<8x128xf32> -> vector<8x128xf32>
    %107 = arith.addf %104, %106 : vector<8x128xf32>
    %108 = arith.index_cast %94 : i32 to index
    %c0_32 = arith.constant 0 : index
    %109 = vector.load %arg1[%108, %c0_32] : memref<64x1xf32, #tpu.memory_space<vmem>>, vector<8x1xf32>
    %110 = vector.extract_strided_slice %102 {offsets = [0, 0], sizes = [8, 96], strides = [1, 1]} : vector<8x128xf32> to vector<8x96xf32>
    %111 = arith.negf %110 : vector<8x96xf32>
    %112 = math.exp %111 : vector<8x96xf32>
    %cst_33 = arith.constant 1.000000e+00 : f32
    %113 = vector.broadcast %cst_33 : f32 to vector<8x96xf32>
    %114 = arith.addf %113, %112 : vector<8x96xf32>
    %115 = arith.divf %113, %114 : vector<8x96xf32>
    %116 = vector.extract_strided_slice %102 {offsets = [0, 96], sizes = [8, 32], strides = [1, 1]} : vector<8x128xf32> to vector<8x32xf32>
    %117 = math.tanh %116 : vector<8x32xf32>
    %118 = vector.extract_strided_slice %115 {offsets = [0, 32], sizes = [8, 32], strides = [1, 1]} : vector<8x96xf32> to vector<8x32xf32>
    %119 = arith.mulf %118, %56 : vector<8x32xf32>
    %120 = vector.extract_strided_slice %115 {offsets = [0, 0], sizes = [8, 32], strides = [1, 1]} : vector<8x96xf32> to vector<8x32xf32>
    %121 = arith.mulf %120, %117 : vector<8x32xf32>
    %122 = arith.addf %119, %121 : vector<8x32xf32>
    %123 = vector.extract_strided_slice %115 {offsets = [0, 64], sizes = [8, 32], strides = [1, 1]} : vector<8x96xf32> to vector<8x32xf32>
    %124 = math.tanh %122 : vector<8x32xf32>
    %125 = arith.mulf %123, %124 : vector<8x32xf32>
    %126 = vector.broadcast %109 : vector<8x1xf32> to vector<8x32xf32>
    %127 = arith.mulf %126, %125 : vector<8x32xf32>
    %cst_34 = arith.constant 1.000000e+00 : f32
    %128 = vector.broadcast %cst_34 : f32 to vector<8x1xf32>
    %129 = arith.subf %128, %109 : vector<8x1xf32>
    %130 = vector.broadcast %129 : vector<8x1xf32> to vector<8x32xf32>
    %131 = arith.mulf %130, %49 : vector<8x32xf32>
    %132 = arith.addf %127, %131 : vector<8x32xf32>
    %133 = vector.broadcast %109 : vector<8x1xf32> to vector<8x32xf32>
    %134 = arith.mulf %133, %122 : vector<8x32xf32>
    %cst_35 = arith.constant 1.000000e+00 : f32
    %135 = vector.broadcast %cst_35 : f32 to vector<8x1xf32>
    %136 = arith.subf %135, %109 : vector<8x1xf32>
    %137 = vector.broadcast %136 : vector<8x1xf32> to vector<8x32xf32>
    %138 = arith.mulf %137, %56 : vector<8x32xf32>
    %139 = arith.addf %134, %138 : vector<8x32xf32>
    %140 = arith.index_cast %97 : i32 to index
    %c0_36 = arith.constant 0 : index
    %141 = vector.load %arg1[%140, %c0_36] : memref<64x1xf32, #tpu.memory_space<vmem>>, vector<8x1xf32>
    %142 = vector.extract_strided_slice %107 {offsets = [0, 0], sizes = [8, 96], strides = [1, 1]} : vector<8x128xf32> to vector<8x96xf32>
    %143 = arith.negf %142 : vector<8x96xf32>
    %144 = math.exp %143 : vector<8x96xf32>
    %cst_37 = arith.constant 1.000000e+00 : f32
    %145 = vector.broadcast %cst_37 : f32 to vector<8x96xf32>
    %146 = arith.addf %145, %144 : vector<8x96xf32>
    %147 = arith.divf %145, %146 : vector<8x96xf32>
    %148 = vector.extract_strided_slice %107 {offsets = [0, 96], sizes = [8, 32], strides = [1, 1]} : vector<8x128xf32> to vector<8x32xf32>
    %149 = math.tanh %148 : vector<8x32xf32>
    %150 = vector.extract_strided_slice %147 {offsets = [0, 32], sizes = [8, 32], strides = [1, 1]} : vector<8x96xf32> to vector<8x32xf32>
    %151 = arith.mulf %150, %88 : vector<8x32xf32>
    %152 = vector.extract_strided_slice %147 {offsets = [0, 0], sizes = [8, 32], strides = [1, 1]} : vector<8x96xf32> to vector<8x32xf32>
    %153 = arith.mulf %152, %149 : vector<8x32xf32>
    %154 = arith.addf %151, %153 : vector<8x32xf32>
    %155 = vector.extract_strided_slice %147 {offsets = [0, 64], sizes = [8, 32], strides = [1, 1]} : vector<8x96xf32> to vector<8x32xf32>
    %156 = math.tanh %154 : vector<8x32xf32>
    %157 = arith.mulf %155, %156 : vector<8x32xf32>
    %158 = vector.broadcast %141 : vector<8x1xf32> to vector<8x32xf32>
    %159 = arith.mulf %158, %157 : vector<8x32xf32>
    %cst_38 = arith.constant 1.000000e+00 : f32
    %160 = vector.broadcast %cst_38 : f32 to vector<8x1xf32>
    %161 = arith.subf %160, %141 : vector<8x1xf32>
    %162 = vector.broadcast %161 : vector<8x1xf32> to vector<8x32xf32>
    %163 = arith.mulf %162, %81 : vector<8x32xf32>
    %164 = arith.addf %159, %163 : vector<8x32xf32>
    %165 = vector.broadcast %141 : vector<8x1xf32> to vector<8x32xf32>
    %166 = arith.mulf %165, %154 : vector<8x32xf32>
    %cst_39 = arith.constant 1.000000e+00 : f32
    %167 = vector.broadcast %cst_39 : f32 to vector<8x1xf32>
    %168 = arith.subf %167, %141 : vector<8x1xf32>
    %169 = vector.broadcast %168 : vector<8x1xf32> to vector<8x32xf32>
    %170 = arith.mulf %169, %88 : vector<8x32xf32>
    %171 = arith.addf %166, %170 : vector<8x32xf32>
    %172 = arith.index_cast %94 : i32 to index
    %c0_40 = arith.constant 0 : index
    %173 = vector.load %arg14[%172, %c0_40] : memref<64x64xf32, #tpu.memory_space<vmem>>, vector<8x32xf32>
    tpu.vector_store %arg14[%172, %c0_40], %132 {strides = array<i32>} : memref<64x64xf32, #tpu.memory_space<vmem>>, vector<8x32xf32>,
    %174 = arith.index_cast %97 : i32 to index
    %c32_41 = arith.constant 32 : index
    %175 = vector.load %arg14[%174, %c32_41] : memref<64x64xf32, #tpu.memory_space<vmem>>, vector<8x32xf32>
    tpu.vector_store %arg14[%174, %c32_41], %164 {strides = array<i32>} : memref<64x64xf32, #tpu.memory_space<vmem>>, vector<8x32xf32>,
    %c2_i32 = arith.constant 2 : i32
    %c8_i32_42 = arith.constant 8 : i32
    %176 = arith.muli %c2_i32, %c8_i32_42 : i32
    %177 = tpu.assume_multiple %176, 8 : i32
    %c7_i32_43 = arith.constant 7 : i32
    %178 = arith.subi %c7_i32_43, %c2_i32 : i32
    %c8_i32_44 = arith.constant 8 : i32
    %179 = arith.muli %178, %c8_i32_44 : i32
    %180 = tpu.assume_multiple %179, 8 : i32
    %181 = arith.index_cast %177 : i32 to index
    %c0_45 = arith.constant 0 : index
    %182 = vector.load %arg13[%181, %c0_45] : memref<64x256xf32, #tpu.memory_space<vmem>>, vector<8x128xf32>
    %183 = arith.truncf %132 : vector<8x32xf32> to vector<8x32xbf16>
    %cst_46 = arith.constant dense<0.000000e+00> : vector<8x128xf32>
    %184 = tpu.matmul %183, %7, %cst_46 {dimension_numbers = #tpu.dot_dimension_numbers<[1], [0], [0], [1], [0, 0, 1, 1], [], []>} : vector<8x32xbf16>, vector<32x128xbf16>, vector<8x128xf32> -> vector<8x128xf32>
    %185 = arith.addf %182, %184 : vector<8x128xf32>
    %186 = arith.index_cast %180 : i32 to index
    %c128_47 = arith.constant 128 : index
    %187 = vector.load %arg13[%186, %c128_47] : memref<64x256xf32, #tpu.memory_space<vmem>>, vector<8x128xf32>
    %188 = arith.truncf %164 : vector<8x32xf32> to vector<8x32xbf16>
    %cst_48 = arith.constant dense<0.000000e+00> : vector<8x128xf32>
    %189 = tpu.matmul %188, %8, %cst_48 {dimension_numbers = #tpu.dot_dimension_numbers<[1], [0], [0], [1], [0, 0, 1, 1], [], []>} : vector<8x32xbf16>, vector<32x128xbf16>, vector<8x128xf32> -> vector<8x128xf32>
    %190 = arith.addf %187, %189 : vector<8x128xf32>
    %191 = arith.index_cast %177 : i32 to index
    %c0_49 = arith.constant 0 : index
    %192 = vector.load %arg1[%191, %c0_49] : memref<64x1xf32, #tpu.memory_space<vmem>>, vector<8x1xf32>
    %193 = vector.extract_strided_slice %185 {offsets = [0, 0], sizes = [8, 96], strides = [1, 1]} : vector<8x128xf32> to vector<8x96xf32>
    %194 = arith.negf %193 : vector<8x96xf32>
    %195 = math.exp %194 : vector<8x96xf32>
    %cst_50 = arith.constant 1.000000e+00 : f32
    %196 = vector.broadcast %cst_50 : f32 to vector<8x96xf32>
    %197 = arith.addf %196, %195 : vector<8x96xf32>
    %198 = arith.divf %196, %197 : vector<8x96xf32>
    %199 = vector.extract_strided_slice %185 {offsets = [0, 96], sizes = [8, 32], strides = [1, 1]} : vector<8x128xf32> to vector<8x32xf32>
    %200 = math.tanh %199 : vector<8x32xf32>
    %201 = vector.extract_strided_slice %198 {offsets = [0, 32], sizes = [8, 32], strides = [1, 1]} : vector<8x96xf32> to vector<8x32xf32>
    %202 = arith.mulf %201, %139 : vector<8x32xf32>
    %203 = vector.extract_strided_slice %198 {offsets = [0, 0], sizes = [8, 32], strides = [1, 1]} : vector<8x96xf32> to vector<8x32xf32>
    %204 = arith.mulf %203, %200 : vector<8x32xf32>
    %205 = arith.addf %202, %204 : vector<8x32xf32>
    %206 = vector.extract_strided_slice %198 {offsets = [0, 64], sizes = [8, 32], strides = [1, 1]} : vector<8x96xf32> to vector<8x32xf32>
    %207 = math.tanh %205 : vector<8x32xf32>
    %208 = arith.mulf %206, %207 : vector<8x32xf32>
    %209 = vector.broadcast %192 : vector<8x1xf32> to vector<8x32xf32>
    %210 = arith.mulf %209, %208 : vector<8x32xf32>
    %cst_51 = arith.constant 1.000000e+00 : f32
    %211 = vector.broadcast %cst_51 : f32 to vector<8x1xf32>
    %212 = arith.subf %211, %192 : vector<8x1xf32>
    %213 = vector.broadcast %212 : vector<8x1xf32> to vector<8x32xf32>
    %214 = arith.mulf %213, %132 : vector<8x32xf32>
    %215 = arith.addf %210, %214 : vector<8x32xf32>
    %216 = vector.broadcast %192 : vector<8x1xf32> to vector<8x32xf32>
    %217 = arith.mulf %216, %205 : vector<8x32xf32>
    %cst_52 = arith.constant 1.000000e+00 : f32
    %218 = vector.broadcast %cst_52 : f32 to vector<8x1xf32>
    %219 = arith.subf %218, %192 : vector<8x1xf32>
    %220 = vector.broadcast %219 : vector<8x1xf32> to vector<8x32xf32>
    %221 = arith.mulf %220, %139 : vector<8x32xf32>
    %222 = arith.addf %217, %221 : vector<8x32xf32>
    %223 = arith.index_cast %180 : i32 to index
    %c0_53 = arith.constant 0 : index
    %224 = vector.load %arg1[%223, %c0_53] : memref<64x1xf32, #tpu.memory_space<vmem>>, vector<8x1xf32>
    %225 = vector.extract_strided_slice %190 {offsets = [0, 0], sizes = [8, 96], strides = [1, 1]} : vector<8x128xf32> to vector<8x96xf32>
    %226 = arith.negf %225 : vector<8x96xf32>
    %227 = math.exp %226 : vector<8x96xf32>
    %cst_54 = arith.constant 1.000000e+00 : f32
    %228 = vector.broadcast %cst_54 : f32 to vector<8x96xf32>
    %229 = arith.addf %228, %227 : vector<8x96xf32>
    %230 = arith.divf %228, %229 : vector<8x96xf32>
    %231 = vector.extract_strided_slice %190 {offsets = [0, 96], sizes = [8, 32], strides = [1, 1]} : vector<8x128xf32> to vector<8x32xf32>
    %232 = math.tanh %231 : vector<8x32xf32>
    %233 = vector.extract_strided_slice %230 {offsets = [0, 32], sizes = [8, 32], strides = [1, 1]} : vector<8x96xf32> to vector<8x32xf32>
    %234 = arith.mulf %233, %171 : vector<8x32xf32>
    %235 = vector.extract_strided_slice %230 {offsets = [0, 0], sizes = [8, 32], strides = [1, 1]} : vector<8x96xf32> to vector<8x32xf32>
    %236 = arith.mulf %235, %232 : vector<8x32xf32>
    %237 = arith.addf %234, %236 : vector<8x32xf32>
    %238 = vector.extract_strided_slice %230 {offsets = [0, 64], sizes = [8, 32], strides = [1, 1]} : vector<8x96xf32> to vector<8x32xf32>
    %239 = math.tanh %237 : vector<8x32xf32>
    %240 = arith.mulf %238, %239 : vector<8x32xf32>
    %241 = vector.broadcast %224 : vector<8x1xf32> to vector<8x32xf32>
    %242 = arith.mulf %241, %240 : vector<8x32xf32>
    %cst_55 = arith.constant 1.000000e+00 : f32
    %243 = vector.broadcast %cst_55 : f32 to vector<8x1xf32>
    %244 = arith.subf %243, %224 : vector<8x1xf32>
    %245 = vector.broadcast %244 : vector<8x1xf32> to vector<8x32xf32>
    %246 = arith.mulf %245, %164 : vector<8x32xf32>
    %247 = arith.addf %242, %246 : vector<8x32xf32>
    %248 = vector.broadcast %224 : vector<8x1xf32> to vector<8x32xf32>
    %249 = arith.mulf %248, %237 : vector<8x32xf32>
    %cst_56 = arith.constant 1.000000e+00 : f32
    %250 = vector.broadcast %cst_56 : f32 to vector<8x1xf32>
    %251 = arith.subf %250, %224 : vector<8x1xf32>
    %252 = vector.broadcast %251 : vector<8x1xf32> to vector<8x32xf32>
    %253 = arith.mulf %252, %171 : vector<8x32xf32>
    %254 = arith.addf %249, %253 : vector<8x32xf32>
    %255 = arith.index_cast %177 : i32 to index
    %c0_57 = arith.constant 0 : index
    %256 = vector.load %arg14[%255, %c0_57] : memref<64x64xf32, #tpu.memory_space<vmem>>, vector<8x32xf32>
    tpu.vector_store %arg14[%255, %c0_57], %215 {strides = array<i32>} : memref<64x64xf32, #tpu.memory_space<vmem>>, vector<8x32xf32>,
    %257 = arith.index_cast %180 : i32 to index
    %c32_58 = arith.constant 32 : index
    %258 = vector.load %arg14[%257, %c32_58] : memref<64x64xf32, #tpu.memory_space<vmem>>, vector<8x32xf32>
    tpu.vector_store %arg14[%257, %c32_58], %247 {strides = array<i32>} : memref<64x64xf32, #tpu.memory_space<vmem>>, vector<8x32xf32>,
    %c3_i32 = arith.constant 3 : i32
    %c8_i32_59 = arith.constant 8 : i32
    %259 = arith.muli %c3_i32, %c8_i32_59 : i32
    %260 = tpu.assume_multiple %259, 8 : i32
    %c7_i32_60 = arith.constant 7 : i32
    %261 = arith.subi %c7_i32_60, %c3_i32 : i32
    %c8_i32_61 = arith.constant 8 : i32
    %262 = arith.muli %261, %c8_i32_61 : i32
    %263 = tpu.assume_multiple %262, 8 : i32
    %264 = arith.index_cast %260 : i32 to index
    %c0_62 = arith.constant 0 : index
    %265 = vector.load %arg13[%264, %c0_62] : memref<64x256xf32, #tpu.memory_space<vmem>>, vector<8x128xf32>
    %266 = arith.truncf %215 : vector<8x32xf32> to vector<8x32xbf16>
    %cst_63 = arith.constant dense<0.000000e+00> : vector<8x128xf32>
    %267 = tpu.matmul %266, %7, %cst_63 {dimension_numbers = #tpu.dot_dimension_numbers<[1], [0], [0], [1], [0, 0, 1, 1], [], []>} : vector<8x32xbf16>, vector<32x128xbf16>, vector<8x128xf32> -> vector<8x128xf32>
    %268 = arith.addf %265, %267 : vector<8x128xf32>
    %269 = arith.index_cast %263 : i32 to index
    %c128_64 = arith.constant 128 : index
    %270 = vector.load %arg13[%269, %c128_64] : memref<64x256xf32, #tpu.memory_space<vmem>>, vector<8x128xf32>
    %271 = arith.truncf %247 : vector<8x32xf32> to vector<8x32xbf16>
    %cst_65 = arith.constant dense<0.000000e+00> : vector<8x128xf32>
    %272 = tpu.matmul %271, %8, %cst_65 {dimension_numbers = #tpu.dot_dimension_numbers<[1], [0], [0], [1], [0, 0, 1, 1], [], []>} : vector<8x32xbf16>, vector<32x128xbf16>, vector<8x128xf32> -> vector<8x128xf32>
    %273 = arith.addf %270, %272 : vector<8x128xf32>
    %274 = arith.index_cast %260 : i32 to index
    %c0_66 = arith.constant 0 : index
    %275 = vector.load %arg1[%274, %c0_66] : memref<64x1xf32, #tpu.memory_space<vmem>>, vector<8x1xf32>
    %276 = vector.extract_strided_slice %268 {offsets = [0, 0], sizes = [8, 96], strides = [1, 1]} : vector<8x128xf32> to vector<8x96xf32>
    %277 = arith.negf %276 : vector<8x96xf32>
    %278 = math.exp %277 : vector<8x96xf32>
    %cst_67 = arith.constant 1.000000e+00 : f32
    %279 = vector.broadcast %cst_67 : f32 to vector<8x96xf32>
    %280 = arith.addf %279, %278 : vector<8x96xf32>
    %281 = arith.divf %279, %280 : vector<8x96xf32>
    %282 = vector.extract_strided_slice %268 {offsets = [0, 96], sizes = [8, 32], strides = [1, 1]} : vector<8x128xf32> to vector<8x32xf32>
    %283 = math.tanh %282 : vector<8x32xf32>
    %284 = vector.extract_strided_slice %281 {offsets = [0, 32], sizes = [8, 32], strides = [1, 1]} : vector<8x96xf32> to vector<8x32xf32>
    %285 = arith.mulf %284, %222 : vector<8x32xf32>
    %286 = vector.extract_strided_slice %281 {offsets = [0, 0], sizes = [8, 32], strides = [1, 1]} : vector<8x96xf32> to vector<8x32xf32>
    %287 = arith.mulf %286, %283 : vector<8x32xf32>
    %288 = arith.addf %285, %287 : vector<8x32xf32>
    %289 = vector.extract_strided_slice %281 {offsets = [0, 64], sizes = [8, 32], strides = [1, 1]} : vector<8x96xf32> to vector<8x32xf32>
    %290 = math.tanh %288 : vector<8x32xf32>
    %291 = arith.mulf %289, %290 : vector<8x32xf32>
    %292 = vector.broadcast %275 : vector<8x1xf32> to vector<8x32xf32>
    %293 = arith.mulf %292, %291 : vector<8x32xf32>
    %cst_68 = arith.constant 1.000000e+00 : f32
    %294 = vector.broadcast %cst_68 : f32 to vector<8x1xf32>
    %295 = arith.subf %294, %275 : vector<8x1xf32>
    %296 = vector.broadcast %295 : vector<8x1xf32> to vector<8x32xf32>
    %297 = arith.mulf %296, %215 : vector<8x32xf32>
    %298 = arith.addf %293, %297 : vector<8x32xf32>
    %299 = vector.broadcast %275 : vector<8x1xf32> to vector<8x32xf32>
    %300 = arith.mulf %299, %288 : vector<8x32xf32>
    %cst_69 = arith.constant 1.000000e+00 : f32
    %301 = vector.broadcast %cst_69 : f32 to vector<8x1xf32>
    %302 = arith.subf %301, %275 : vector<8x1xf32>
    %303 = vector.broadcast %302 : vector<8x1xf32> to vector<8x32xf32>
    %304 = arith.mulf %303, %222 : vector<8x32xf32>
    %305 = arith.addf %300, %304 : vector<8x32xf32>
    %306 = arith.index_cast %263 : i32 to index
    %c0_70 = arith.constant 0 : index
    %307 = vector.load %arg1[%306, %c0_70] : memref<64x1xf32, #tpu.memory_space<vmem>>, vector<8x1xf32>
    %308 = vector.extract_strided_slice %273 {offsets = [0, 0], sizes = [8, 96], strides = [1, 1]} : vector<8x128xf32> to vector<8x96xf32>
    %309 = arith.negf %308 : vector<8x96xf32>
    %310 = math.exp %309 : vector<8x96xf32>
    %cst_71 = arith.constant 1.000000e+00 : f32
    %311 = vector.broadcast %cst_71 : f32 to vector<8x96xf32>
    %312 = arith.addf %311, %310 : vector<8x96xf32>
    %313 = arith.divf %311, %312 : vector<8x96xf32>
    %314 = vector.extract_strided_slice %273 {offsets = [0, 96], sizes = [8, 32], strides = [1, 1]} : vector<8x128xf32> to vector<8x32xf32>
    %315 = math.tanh %314 : vector<8x32xf32>
    %316 = vector.extract_strided_slice %313 {offsets = [0, 32], sizes = [8, 32], strides = [1, 1]} : vector<8x96xf32> to vector<8x32xf32>
    %317 = arith.mulf %316, %254 : vector<8x32xf32>
    %318 = vector.extract_strided_slice %313 {offsets = [0, 0], sizes = [8, 32], strides = [1, 1]} : vector<8x96xf32> to vector<8x32xf32>
    %319 = arith.mulf %318, %315 : vector<8x32xf32>
    %320 = arith.addf %317, %319 : vector<8x32xf32>
    %321 = vector.extract_strided_slice %313 {offsets = [0, 64], sizes = [8, 32], strides = [1, 1]} : vector<8x96xf32> to vector<8x32xf32>
    %322 = math.tanh %320 : vector<8x32xf32>
    %323 = arith.mulf %321, %322 : vector<8x32xf32>
    %324 = vector.broadcast %307 : vector<8x1xf32> to vector<8x32xf32>
    %325 = arith.mulf %324, %323 : vector<8x32xf32>
    %cst_72 = arith.constant 1.000000e+00 : f32
    %326 = vector.broadcast %cst_72 : f32 to vector<8x1xf32>
    %327 = arith.subf %326, %307 : vector<8x1xf32>
    %328 = vector.broadcast %327 : vector<8x1xf32> to vector<8x32xf32>
    %329 = arith.mulf %328, %247 : vector<8x32xf32>
    %330 = arith.addf %325, %329 : vector<8x32xf32>
    %331 = vector.broadcast %307 : vector<8x1xf32> to vector<8x32xf32>
    %332 = arith.mulf %331, %320 : vector<8x32xf32>
    %cst_73 = arith.constant 1.000000e+00 : f32
    %333 = vector.broadcast %cst_73 : f32 to vector<8x1xf32>
    %334 = arith.subf %333, %307 : vector<8x1xf32>
    %335 = vector.broadcast %334 : vector<8x1xf32> to vector<8x32xf32>
    %336 = arith.mulf %335, %254 : vector<8x32xf32>
    %337 = arith.addf %332, %336 : vector<8x32xf32>
    %338 = arith.index_cast %260 : i32 to index
    %c0_74 = arith.constant 0 : index
    %339 = vector.load %arg14[%338, %c0_74] : memref<64x64xf32, #tpu.memory_space<vmem>>, vector<8x32xf32>
    tpu.vector_store %arg14[%338, %c0_74], %298 {strides = array<i32>} : memref<64x64xf32, #tpu.memory_space<vmem>>, vector<8x32xf32>,
    %340 = arith.index_cast %263 : i32 to index
    %c32_75 = arith.constant 32 : index
    %341 = vector.load %arg14[%340, %c32_75] : memref<64x64xf32, #tpu.memory_space<vmem>>, vector<8x32xf32>
    tpu.vector_store %arg14[%340, %c32_75], %330 {strides = array<i32>} : memref<64x64xf32, #tpu.memory_space<vmem>>, vector<8x32xf32>,
    %c4_i32 = arith.constant 4 : i32
    %c8_i32_76 = arith.constant 8 : i32
    %342 = arith.muli %c4_i32, %c8_i32_76 : i32
    %343 = tpu.assume_multiple %342, 8 : i32
    %c7_i32_77 = arith.constant 7 : i32
    %344 = arith.subi %c7_i32_77, %c4_i32 : i32
    %c8_i32_78 = arith.constant 8 : i32
    %345 = arith.muli %344, %c8_i32_78 : i32
    %346 = tpu.assume_multiple %345, 8 : i32
    %347 = arith.index_cast %343 : i32 to index
    %c0_79 = arith.constant 0 : index
    %348 = vector.load %arg13[%347, %c0_79] : memref<64x256xf32, #tpu.memory_space<vmem>>, vector<8x128xf32>
    %349 = arith.truncf %298 : vector<8x32xf32> to vector<8x32xbf16>
    %cst_80 = arith.constant dense<0.000000e+00> : vector<8x128xf32>
    %350 = tpu.matmul %349, %7, %cst_80 {dimension_numbers = #tpu.dot_dimension_numbers<[1], [0], [0], [1], [0, 0, 1, 1], [], []>} : vector<8x32xbf16>, vector<32x128xbf16>, vector<8x128xf32> -> vector<8x128xf32>
    %351 = arith.addf %348, %350 : vector<8x128xf32>
    %352 = arith.index_cast %346 : i32 to index
    %c128_81 = arith.constant 128 : index
    %353 = vector.load %arg13[%352, %c128_81] : memref<64x256xf32, #tpu.memory_space<vmem>>, vector<8x128xf32>
    %354 = arith.truncf %330 : vector<8x32xf32> to vector<8x32xbf16>
    %cst_82 = arith.constant dense<0.000000e+00> : vector<8x128xf32>
    %355 = tpu.matmul %354, %8, %cst_82 {dimension_numbers = #tpu.dot_dimension_numbers<[1], [0], [0], [1], [0, 0, 1, 1], [], []>} : vector<8x32xbf16>, vector<32x128xbf16>, vector<8x128xf32> -> vector<8x128xf32>
    %356 = arith.addf %353, %355 : vector<8x128xf32>
    %357 = arith.index_cast %343 : i32 to index
    %c0_83 = arith.constant 0 : index
    %358 = vector.load %arg1[%357, %c0_83] : memref<64x1xf32, #tpu.memory_space<vmem>>, vector<8x1xf32>
    %359 = vector.extract_strided_slice %351 {offsets = [0, 0], sizes = [8, 96], strides = [1, 1]} : vector<8x128xf32> to vector<8x96xf32>
    %360 = arith.negf %359 : vector<8x96xf32>
    %361 = math.exp %360 : vector<8x96xf32>
    %cst_84 = arith.constant 1.000000e+00 : f32
    %362 = vector.broadcast %cst_84 : f32 to vector<8x96xf32>
    %363 = arith.addf %362, %361 : vector<8x96xf32>
    %364 = arith.divf %362, %363 : vector<8x96xf32>
    %365 = vector.extract_strided_slice %351 {offsets = [0, 96], sizes = [8, 32], strides = [1, 1]} : vector<8x128xf32> to vector<8x32xf32>
    %366 = math.tanh %365 : vector<8x32xf32>
    %367 = vector.extract_strided_slice %364 {offsets = [0, 32], sizes = [8, 32], strides = [1, 1]} : vector<8x96xf32> to vector<8x32xf32>
    %368 = arith.mulf %367, %305 : vector<8x32xf32>
    %369 = vector.extract_strided_slice %364 {offsets = [0, 0], sizes = [8, 32], strides = [1, 1]} : vector<8x96xf32> to vector<8x32xf32>
    %370 = arith.mulf %369, %366 : vector<8x32xf32>
    %371 = arith.addf %368, %370 : vector<8x32xf32>
    %372 = vector.extract_strided_slice %364 {offsets = [0, 64], sizes = [8, 32], strides = [1, 1]} : vector<8x96xf32> to vector<8x32xf32>
    %373 = math.tanh %371 : vector<8x32xf32>
    %374 = arith.mulf %372, %373 : vector<8x32xf32>
    %375 = vector.broadcast %358 : vector<8x1xf32> to vector<8x32xf32>
    %376 = arith.mulf %375, %374 : vector<8x32xf32>
    %cst_85 = arith.constant 1.000000e+00 : f32
    %377 = vector.broadcast %cst_85 : f32 to vector<8x1xf32>
    %378 = arith.subf %377, %358 : vector<8x1xf32>
    %379 = vector.broadcast %378 : vector<8x1xf32> to vector<8x32xf32>
    %380 = arith.mulf %379, %298 : vector<8x32xf32>
    %381 = arith.addf %376, %380 : vector<8x32xf32>
    %382 = vector.broadcast %358 : vector<8x1xf32> to vector<8x32xf32>
    %383 = arith.mulf %382, %371 : vector<8x32xf32>
    %cst_86 = arith.constant 1.000000e+00 : f32
    %384 = vector.broadcast %cst_86 : f32 to vector<8x1xf32>
    %385 = arith.subf %384, %358 : vector<8x1xf32>
    %386 = vector.broadcast %385 : vector<8x1xf32> to vector<8x32xf32>
    %387 = arith.mulf %386, %305 : vector<8x32xf32>
    %388 = arith.addf %383, %387 : vector<8x32xf32>
    %389 = arith.index_cast %346 : i32 to index
    %c0_87 = arith.constant 0 : index
    %390 = vector.load %arg1[%389, %c0_87] : memref<64x1xf32, #tpu.memory_space<vmem>>, vector<8x1xf32>
    %391 = vector.extract_strided_slice %356 {offsets = [0, 0], sizes = [8, 96], strides = [1, 1]} : vector<8x128xf32> to vector<8x96xf32>
    %392 = arith.negf %391 : vector<8x96xf32>
    %393 = math.exp %392 : vector<8x96xf32>
    %cst_88 = arith.constant 1.000000e+00 : f32
    %394 = vector.broadcast %cst_88 : f32 to vector<8x96xf32>
    %395 = arith.addf %394, %393 : vector<8x96xf32>
    %396 = arith.divf %394, %395 : vector<8x96xf32>
    %397 = vector.extract_strided_slice %356 {offsets = [0, 96], sizes = [8, 32], strides = [1, 1]} : vector<8x128xf32> to vector<8x32xf32>
    %398 = math.tanh %397 : vector<8x32xf32>
    %399 = vector.extract_strided_slice %396 {offsets = [0, 32], sizes = [8, 32], strides = [1, 1]} : vector<8x96xf32> to vector<8x32xf32>
    %400 = arith.mulf %399, %337 : vector<8x32xf32>
    %401 = vector.extract_strided_slice %396 {offsets = [0, 0], sizes = [8, 32], strides = [1, 1]} : vector<8x96xf32> to vector<8x32xf32>
    %402 = arith.mulf %401, %398 : vector<8x32xf32>
    %403 = arith.addf %400, %402 : vector<8x32xf32>
    %404 = vector.extract_strided_slice %396 {offsets = [0, 64], sizes = [8, 32], strides = [1, 1]} : vector<8x96xf32> to vector<8x32xf32>
    %405 = math.tanh %403 : vector<8x32xf32>
    %406 = arith.mulf %404, %405 : vector<8x32xf32>
    %407 = vector.broadcast %390 : vector<8x1xf32> to vector<8x32xf32>
    %408 = arith.mulf %407, %406 : vector<8x32xf32>
    %cst_89 = arith.constant 1.000000e+00 : f32
    %409 = vector.broadcast %cst_89 : f32 to vector<8x1xf32>
    %410 = arith.subf %409, %390 : vector<8x1xf32>
    %411 = vector.broadcast %410 : vector<8x1xf32> to vector<8x32xf32>
    %412 = arith.mulf %411, %330 : vector<8x32xf32>
    %413 = arith.addf %408, %412 : vector<8x32xf32>
    %414 = vector.broadcast %390 : vector<8x1xf32> to vector<8x32xf32>
    %415 = arith.mulf %414, %403 : vector<8x32xf32>
    %cst_90 = arith.constant 1.000000e+00 : f32
    %416 = vector.broadcast %cst_90 : f32 to vector<8x1xf32>
    %417 = arith.subf %416, %390 : vector<8x1xf32>
    %418 = vector.broadcast %417 : vector<8x1xf32> to vector<8x32xf32>
    %419 = arith.mulf %418, %337 : vector<8x32xf32>
    %420 = arith.addf %415, %419 : vector<8x32xf32>
    %421 = arith.index_cast %343 : i32 to index
    %c0_91 = arith.constant 0 : index
    %422 = vector.load %arg14[%421, %c0_91] : memref<64x64xf32, #tpu.memory_space<vmem>>, vector<8x32xf32>
    tpu.vector_store %arg14[%421, %c0_91], %381 {strides = array<i32>} : memref<64x64xf32, #tpu.memory_space<vmem>>, vector<8x32xf32>,
    %423 = arith.index_cast %346 : i32 to index
    %c32_92 = arith.constant 32 : index
    %424 = vector.load %arg14[%423, %c32_92] : memref<64x64xf32, #tpu.memory_space<vmem>>, vector<8x32xf32>
    tpu.vector_store %arg14[%423, %c32_92], %413 {strides = array<i32>} : memref<64x64xf32, #tpu.memory_space<vmem>>, vector<8x32xf32>,
    %c5_i32 = arith.constant 5 : i32
    %c8_i32_93 = arith.constant 8 : i32
    %425 = arith.muli %c5_i32, %c8_i32_93 : i32
    %426 = tpu.assume_multiple %425, 8 : i32
    %c7_i32_94 = arith.constant 7 : i32
    %427 = arith.subi %c7_i32_94, %c5_i32 : i32
    %c8_i32_95 = arith.constant 8 : i32
    %428 = arith.muli %427, %c8_i32_95 : i32
    %429 = tpu.assume_multiple %428, 8 : i32
    %430 = arith.index_cast %426 : i32 to index
    %c0_96 = arith.constant 0 : index
    %431 = vector.load %arg13[%430, %c0_96] : memref<64x256xf32, #tpu.memory_space<vmem>>, vector<8x128xf32>
    %432 = arith.truncf %381 : vector<8x32xf32> to vector<8x32xbf16>
    %cst_97 = arith.constant dense<0.000000e+00> : vector<8x128xf32>
    %433 = tpu.matmul %432, %7, %cst_97 {dimension_numbers = #tpu.dot_dimension_numbers<[1], [0], [0], [1], [0, 0, 1, 1], [], []>} : vector<8x32xbf16>, vector<32x128xbf16>, vector<8x128xf32> -> vector<8x128xf32>
    %434 = arith.addf %431, %433 : vector<8x128xf32>
    %435 = arith.index_cast %429 : i32 to index
    %c128_98 = arith.constant 128 : index
    %436 = vector.load %arg13[%435, %c128_98] : memref<64x256xf32, #tpu.memory_space<vmem>>, vector<8x128xf32>
    %437 = arith.truncf %413 : vector<8x32xf32> to vector<8x32xbf16>
    %cst_99 = arith.constant dense<0.000000e+00> : vector<8x128xf32>
    %438 = tpu.matmul %437, %8, %cst_99 {dimension_numbers = #tpu.dot_dimension_numbers<[1], [0], [0], [1], [0, 0, 1, 1], [], []>} : vector<8x32xbf16>, vector<32x128xbf16>, vector<8x128xf32> -> vector<8x128xf32>
    %439 = arith.addf %436, %438 : vector<8x128xf32>
    %440 = arith.index_cast %426 : i32 to index
    %c0_100 = arith.constant 0 : index
    %441 = vector.load %arg1[%440, %c0_100] : memref<64x1xf32, #tpu.memory_space<vmem>>, vector<8x1xf32>
    %442 = vector.extract_strided_slice %434 {offsets = [0, 0], sizes = [8, 96], strides = [1, 1]} : vector<8x128xf32> to vector<8x96xf32>
    %443 = arith.negf %442 : vector<8x96xf32>
    %444 = math.exp %443 : vector<8x96xf32>
    %cst_101 = arith.constant 1.000000e+00 : f32
    %445 = vector.broadcast %cst_101 : f32 to vector<8x96xf32>
    %446 = arith.addf %445, %444 : vector<8x96xf32>
    %447 = arith.divf %445, %446 : vector<8x96xf32>
    %448 = vector.extract_strided_slice %434 {offsets = [0, 96], sizes = [8, 32], strides = [1, 1]} : vector<8x128xf32> to vector<8x32xf32>
    %449 = math.tanh %448 : vector<8x32xf32>
    %450 = vector.extract_strided_slice %447 {offsets = [0, 32], sizes = [8, 32], strides = [1, 1]} : vector<8x96xf32> to vector<8x32xf32>
    %451 = arith.mulf %450, %388 : vector<8x32xf32>
    %452 = vector.extract_strided_slice %447 {offsets = [0, 0], sizes = [8, 32], strides = [1, 1]} : vector<8x96xf32> to vector<8x32xf32>
    %453 = arith.mulf %452, %449 : vector<8x32xf32>
    %454 = arith.addf %451, %453 : vector<8x32xf32>
    %455 = vector.extract_strided_slice %447 {offsets = [0, 64], sizes = [8, 32], strides = [1, 1]} : vector<8x96xf32> to vector<8x32xf32>
    %456 = math.tanh %454 : vector<8x32xf32>
    %457 = arith.mulf %455, %456 : vector<8x32xf32>
    %458 = vector.broadcast %441 : vector<8x1xf32> to vector<8x32xf32>
    %459 = arith.mulf %458, %457 : vector<8x32xf32>
    %cst_102 = arith.constant 1.000000e+00 : f32
    %460 = vector.broadcast %cst_102 : f32 to vector<8x1xf32>
    %461 = arith.subf %460, %441 : vector<8x1xf32>
    %462 = vector.broadcast %461 : vector<8x1xf32> to vector<8x32xf32>
    %463 = arith.mulf %462, %381 : vector<8x32xf32>
    %464 = arith.addf %459, %463 : vector<8x32xf32>
    %465 = vector.broadcast %441 : vector<8x1xf32> to vector<8x32xf32>
    %466 = arith.mulf %465, %454 : vector<8x32xf32>
    %cst_103 = arith.constant 1.000000e+00 : f32
    %467 = vector.broadcast %cst_103 : f32 to vector<8x1xf32>
    %468 = arith.subf %467, %441 : vector<8x1xf32>
    %469 = vector.broadcast %468 : vector<8x1xf32> to vector<8x32xf32>
    %470 = arith.mulf %469, %388 : vector<8x32xf32>
    %471 = arith.addf %466, %470 : vector<8x32xf32>
    %472 = arith.index_cast %429 : i32 to index
    %c0_104 = arith.constant 0 : index
    %473 = vector.load %arg1[%472, %c0_104] : memref<64x1xf32, #tpu.memory_space<vmem>>, vector<8x1xf32>
    %474 = vector.extract_strided_slice %439 {offsets = [0, 0], sizes = [8, 96], strides = [1, 1]} : vector<8x128xf32> to vector<8x96xf32>
    %475 = arith.negf %474 : vector<8x96xf32>
    %476 = math.exp %475 : vector<8x96xf32>
    %cst_105 = arith.constant 1.000000e+00 : f32
    %477 = vector.broadcast %cst_105 : f32 to vector<8x96xf32>
    %478 = arith.addf %477, %476 : vector<8x96xf32>
    %479 = arith.divf %477, %478 : vector<8x96xf32>
    %480 = vector.extract_strided_slice %439 {offsets = [0, 96], sizes = [8, 32], strides = [1, 1]} : vector<8x128xf32> to vector<8x32xf32>
    %481 = math.tanh %480 : vector<8x32xf32>
    %482 = vector.extract_strided_slice %479 {offsets = [0, 32], sizes = [8, 32], strides = [1, 1]} : vector<8x96xf32> to vector<8x32xf32>
    %483 = arith.mulf %482, %420 : vector<8x32xf32>
    %484 = vector.extract_strided_slice %479 {offsets = [0, 0], sizes = [8, 32], strides = [1, 1]} : vector<8x96xf32> to vector<8x32xf32>
    %485 = arith.mulf %484, %481 : vector<8x32xf32>
    %486 = arith.addf %483, %485 : vector<8x32xf32>
    %487 = vector.extract_strided_slice %479 {offsets = [0, 64], sizes = [8, 32], strides = [1, 1]} : vector<8x96xf32> to vector<8x32xf32>
    %488 = math.tanh %486 : vector<8x32xf32>
    %489 = arith.mulf %487, %488 : vector<8x32xf32>
    %490 = vector.broadcast %473 : vector<8x1xf32> to vector<8x32xf32>
    %491 = arith.mulf %490, %489 : vector<8x32xf32>
    %cst_106 = arith.constant 1.000000e+00 : f32
    %492 = vector.broadcast %cst_106 : f32 to vector<8x1xf32>
    %493 = arith.subf %492, %473 : vector<8x1xf32>
    %494 = vector.broadcast %493 : vector<8x1xf32> to vector<8x32xf32>
    %495 = arith.mulf %494, %413 : vector<8x32xf32>
    %496 = arith.addf %491, %495 : vector<8x32xf32>
    %497 = vector.broadcast %473 : vector<8x1xf32> to vector<8x32xf32>
    %498 = arith.mulf %497, %486 : vector<8x32xf32>
    %cst_107 = arith.constant 1.000000e+00 : f32
    %499 = vector.broadcast %cst_107 : f32 to vector<8x1xf32>
    %500 = arith.subf %499, %473 : vector<8x1xf32>
    %501 = vector.broadcast %500 : vector<8x1xf32> to vector<8x32xf32>
    %502 = arith.mulf %501, %420 : vector<8x32xf32>
    %503 = arith.addf %498, %502 : vector<8x32xf32>
    %504 = arith.index_cast %426 : i32 to index
    %c0_108 = arith.constant 0 : index
    %505 = vector.load %arg14[%504, %c0_108] : memref<64x64xf32, #tpu.memory_space<vmem>>, vector<8x32xf32>
    tpu.vector_store %arg14[%504, %c0_108], %464 {strides = array<i32>} : memref<64x64xf32, #tpu.memory_space<vmem>>, vector<8x32xf32>,
    %506 = arith.index_cast %429 : i32 to index
    %c32_109 = arith.constant 32 : index
    %507 = vector.load %arg14[%506, %c32_109] : memref<64x64xf32, #tpu.memory_space<vmem>>, vector<8x32xf32>
    tpu.vector_store %arg14[%506, %c32_109], %496 {strides = array<i32>} : memref<64x64xf32, #tpu.memory_space<vmem>>, vector<8x32xf32>,
    %c6_i32 = arith.constant 6 : i32
    %c8_i32_110 = arith.constant 8 : i32
    %508 = arith.muli %c6_i32, %c8_i32_110 : i32
    %509 = tpu.assume_multiple %508, 8 : i32
    %c7_i32_111 = arith.constant 7 : i32
    %510 = arith.subi %c7_i32_111, %c6_i32 : i32
    %c8_i32_112 = arith.constant 8 : i32
    %511 = arith.muli %510, %c8_i32_112 : i32
    %512 = tpu.assume_multiple %511, 8 : i32
    %513 = arith.index_cast %509 : i32 to index
    %c0_113 = arith.constant 0 : index
    %514 = vector.load %arg13[%513, %c0_113] : memref<64x256xf32, #tpu.memory_space<vmem>>, vector<8x128xf32>
    %515 = arith.truncf %464 : vector<8x32xf32> to vector<8x32xbf16>
    %cst_114 = arith.constant dense<0.000000e+00> : vector<8x128xf32>
    %516 = tpu.matmul %515, %7, %cst_114 {dimension_numbers = #tpu.dot_dimension_numbers<[1], [0], [0], [1], [0, 0, 1, 1], [], []>} : vector<8x32xbf16>, vector<32x128xbf16>, vector<8x128xf32> -> vector<8x128xf32>
    %517 = arith.addf %514, %516 : vector<8x128xf32>
    %518 = arith.index_cast %512 : i32 to index
    %c128_115 = arith.constant 128 : index
    %519 = vector.load %arg13[%518, %c128_115] : memref<64x256xf32, #tpu.memory_space<vmem>>, vector<8x128xf32>
    %520 = arith.truncf %496 : vector<8x32xf32> to vector<8x32xbf16>
    %cst_116 = arith.constant dense<0.000000e+00> : vector<8x128xf32>
    %521 = tpu.matmul %520, %8, %cst_116 {dimension_numbers = #tpu.dot_dimension_numbers<[1], [0], [0], [1], [0, 0, 1, 1], [], []>} : vector<8x32xbf16>, vector<32x128xbf16>, vector<8x128xf32> -> vector<8x128xf32>
    %522 = arith.addf %519, %521 : vector<8x128xf32>
    %523 = arith.index_cast %509 : i32 to index
    %c0_117 = arith.constant 0 : index
    %524 = vector.load %arg1[%523, %c0_117] : memref<64x1xf32, #tpu.memory_space<vmem>>, vector<8x1xf32>
    %525 = vector.extract_strided_slice %517 {offsets = [0, 0], sizes = [8, 96], strides = [1, 1]} : vector<8x128xf32> to vector<8x96xf32>
    %526 = arith.negf %525 : vector<8x96xf32>
    %527 = math.exp %526 : vector<8x96xf32>
    %cst_118 = arith.constant 1.000000e+00 : f32
    %528 = vector.broadcast %cst_118 : f32 to vector<8x96xf32>
    %529 = arith.addf %528, %527 : vector<8x96xf32>
    %530 = arith.divf %528, %529 : vector<8x96xf32>
    %531 = vector.extract_strided_slice %517 {offsets = [0, 96], sizes = [8, 32], strides = [1, 1]} : vector<8x128xf32> to vector<8x32xf32>
    %532 = math.tanh %531 : vector<8x32xf32>
    %533 = vector.extract_strided_slice %530 {offsets = [0, 32], sizes = [8, 32], strides = [1, 1]} : vector<8x96xf32> to vector<8x32xf32>
    %534 = arith.mulf %533, %471 : vector<8x32xf32>
    %535 = vector.extract_strided_slice %530 {offsets = [0, 0], sizes = [8, 32], strides = [1, 1]} : vector<8x96xf32> to vector<8x32xf32>
    %536 = arith.mulf %535, %532 : vector<8x32xf32>
    %537 = arith.addf %534, %536 : vector<8x32xf32>
    %538 = vector.extract_strided_slice %530 {offsets = [0, 64], sizes = [8, 32], strides = [1, 1]} : vector<8x96xf32> to vector<8x32xf32>
    %539 = math.tanh %537 : vector<8x32xf32>
    %540 = arith.mulf %538, %539 : vector<8x32xf32>
    %541 = vector.broadcast %524 : vector<8x1xf32> to vector<8x32xf32>
    %542 = arith.mulf %541, %540 : vector<8x32xf32>
    %cst_119 = arith.constant 1.000000e+00 : f32
    %543 = vector.broadcast %cst_119 : f32 to vector<8x1xf32>
    %544 = arith.subf %543, %524 : vector<8x1xf32>
    %545 = vector.broadcast %544 : vector<8x1xf32> to vector<8x32xf32>
    %546 = arith.mulf %545, %464 : vector<8x32xf32>
    %547 = arith.addf %542, %546 : vector<8x32xf32>
    %548 = vector.broadcast %524 : vector<8x1xf32> to vector<8x32xf32>
    %549 = arith.mulf %548, %537 : vector<8x32xf32>
    %cst_120 = arith.constant 1.000000e+00 : f32
    %550 = vector.broadcast %cst_120 : f32 to vector<8x1xf32>
    %551 = arith.subf %550, %524 : vector<8x1xf32>
    %552 = vector.broadcast %551 : vector<8x1xf32> to vector<8x32xf32>
    %553 = arith.mulf %552, %471 : vector<8x32xf32>
    %554 = arith.addf %549, %553 : vector<8x32xf32>
    %555 = arith.index_cast %512 : i32 to index
    %c0_121 = arith.constant 0 : index
    %556 = vector.load %arg1[%555, %c0_121] : memref<64x1xf32, #tpu.memory_space<vmem>>, vector<8x1xf32>
    %557 = vector.extract_strided_slice %522 {offsets = [0, 0], sizes = [8, 96], strides = [1, 1]} : vector<8x128xf32> to vector<8x96xf32>
    %558 = arith.negf %557 : vector<8x96xf32>
    %559 = math.exp %558 : vector<8x96xf32>
    %cst_122 = arith.constant 1.000000e+00 : f32
    %560 = vector.broadcast %cst_122 : f32 to vector<8x96xf32>
    %561 = arith.addf %560, %559 : vector<8x96xf32>
    %562 = arith.divf %560, %561 : vector<8x96xf32>
    %563 = vector.extract_strided_slice %522 {offsets = [0, 96], sizes = [8, 32], strides = [1, 1]} : vector<8x128xf32> to vector<8x32xf32>
    %564 = math.tanh %563 : vector<8x32xf32>
    %565 = vector.extract_strided_slice %562 {offsets = [0, 32], sizes = [8, 32], strides = [1, 1]} : vector<8x96xf32> to vector<8x32xf32>
    %566 = arith.mulf %565, %503 : vector<8x32xf32>
    %567 = vector.extract_strided_slice %562 {offsets = [0, 0], sizes = [8, 32], strides = [1, 1]} : vector<8x96xf32> to vector<8x32xf32>
    %568 = arith.mulf %567, %564 : vector<8x32xf32>
    %569 = arith.addf %566, %568 : vector<8x32xf32>
    %570 = vector.extract_strided_slice %562 {offsets = [0, 64], sizes = [8, 32], strides = [1, 1]} : vector<8x96xf32> to vector<8x32xf32>
    %571 = math.tanh %569 : vector<8x32xf32>
    %572 = arith.mulf %570, %571 : vector<8x32xf32>
    %573 = vector.broadcast %556 : vector<8x1xf32> to vector<8x32xf32>
    %574 = arith.mulf %573, %572 : vector<8x32xf32>
    %cst_123 = arith.constant 1.000000e+00 : f32
    %575 = vector.broadcast %cst_123 : f32 to vector<8x1xf32>
    %576 = arith.subf %575, %556 : vector<8x1xf32>
    %577 = vector.broadcast %576 : vector<8x1xf32> to vector<8x32xf32>
    %578 = arith.mulf %577, %496 : vector<8x32xf32>
    %579 = arith.addf %574, %578 : vector<8x32xf32>
    %580 = vector.broadcast %556 : vector<8x1xf32> to vector<8x32xf32>
    %581 = arith.mulf %580, %569 : vector<8x32xf32>
    %cst_124 = arith.constant 1.000000e+00 : f32
    %582 = vector.broadcast %cst_124 : f32 to vector<8x1xf32>
    %583 = arith.subf %582, %556 : vector<8x1xf32>
    %584 = vector.broadcast %583 : vector<8x1xf32> to vector<8x32xf32>
    %585 = arith.mulf %584, %503 : vector<8x32xf32>
    %586 = arith.addf %581, %585 : vector<8x32xf32>
    %587 = arith.index_cast %509 : i32 to index
    %c0_125 = arith.constant 0 : index
    %588 = vector.load %arg14[%587, %c0_125] : memref<64x64xf32, #tpu.memory_space<vmem>>, vector<8x32xf32>
    tpu.vector_store %arg14[%587, %c0_125], %547 {strides = array<i32>} : memref<64x64xf32, #tpu.memory_space<vmem>>, vector<8x32xf32>,
    %589 = arith.index_cast %512 : i32 to index
    %c32_126 = arith.constant 32 : index
    %590 = vector.load %arg14[%589, %c32_126] : memref<64x64xf32, #tpu.memory_space<vmem>>, vector<8x32xf32>
    tpu.vector_store %arg14[%589, %c32_126], %579 {strides = array<i32>} : memref<64x64xf32, #tpu.memory_space<vmem>>, vector<8x32xf32>,
    %c7_i32_127 = arith.constant 7 : i32
    %c8_i32_128 = arith.constant 8 : i32
    %591 = arith.muli %c7_i32_127, %c8_i32_128 : i32
    %592 = tpu.assume_multiple %591, 8 : i32
    %c7_i32_129 = arith.constant 7 : i32
    %593 = arith.subi %c7_i32_129, %c7_i32_127 : i32
    %c8_i32_130 = arith.constant 8 : i32
    %594 = arith.muli %593, %c8_i32_130 : i32
    %595 = tpu.assume_multiple %594, 8 : i32
    %596 = arith.index_cast %592 : i32 to index
    %c0_131 = arith.constant 0 : index
    %597 = vector.load %arg13[%596, %c0_131] : memref<64x256xf32, #tpu.memory_space<vmem>>, vector<8x128xf32>
    %598 = arith.truncf %547 : vector<8x32xf32> to vector<8x32xbf16>
    %cst_132 = arith.constant dense<0.000000e+00> : vector<8x128xf32>
    %599 = tpu.matmul %598, %7, %cst_132 {dimension_numbers = #tpu.dot_dimension_numbers<[1], [0], [0], [1], [0, 0, 1, 1], [], []>} : vector<8x32xbf16>, vector<32x128xbf16>, vector<8x128xf32> -> vector<8x128xf32>
    %600 = arith.addf %597, %599 : vector<8x128xf32>
    %601 = arith.index_cast %595 : i32 to index
    %c128_133 = arith.constant 128 : index
    %602 = vector.load %arg13[%601, %c128_133] : memref<64x256xf32, #tpu.memory_space<vmem>>, vector<8x128xf32>
    %603 = arith.truncf %579 : vector<8x32xf32> to vector<8x32xbf16>
    %cst_134 = arith.constant dense<0.000000e+00> : vector<8x128xf32>
    %604 = tpu.matmul %603, %8, %cst_134 {dimension_numbers = #tpu.dot_dimension_numbers<[1], [0], [0], [1], [0, 0, 1, 1], [], []>} : vector<8x32xbf16>, vector<32x128xbf16>, vector<8x128xf32> -> vector<8x128xf32>
    %605 = arith.addf %602, %604 : vector<8x128xf32>
    %606 = arith.index_cast %592 : i32 to index
    %c0_135 = arith.constant 0 : index
    %607 = vector.load %arg1[%606, %c0_135] : memref<64x1xf32, #tpu.memory_space<vmem>>, vector<8x1xf32>
    %608 = vector.extract_strided_slice %600 {offsets = [0, 0], sizes = [8, 96], strides = [1, 1]} : vector<8x128xf32> to vector<8x96xf32>
    %609 = arith.negf %608 : vector<8x96xf32>
    %610 = math.exp %609 : vector<8x96xf32>
    %cst_136 = arith.constant 1.000000e+00 : f32
    %611 = vector.broadcast %cst_136 : f32 to vector<8x96xf32>
    %612 = arith.addf %611, %610 : vector<8x96xf32>
    %613 = arith.divf %611, %612 : vector<8x96xf32>
    %614 = vector.extract_strided_slice %600 {offsets = [0, 96], sizes = [8, 32], strides = [1, 1]} : vector<8x128xf32> to vector<8x32xf32>
    %615 = math.tanh %614 : vector<8x32xf32>
    %616 = vector.extract_strided_slice %613 {offsets = [0, 32], sizes = [8, 32], strides = [1, 1]} : vector<8x96xf32> to vector<8x32xf32>
    %617 = arith.mulf %616, %554 : vector<8x32xf32>
    %618 = vector.extract_strided_slice %613 {offsets = [0, 0], sizes = [8, 32], strides = [1, 1]} : vector<8x96xf32> to vector<8x32xf32>
    %619 = arith.mulf %618, %615 : vector<8x32xf32>
    %620 = arith.addf %617, %619 : vector<8x32xf32>
    %621 = vector.extract_strided_slice %613 {offsets = [0, 64], sizes = [8, 32], strides = [1, 1]} : vector<8x96xf32> to vector<8x32xf32>
    %622 = math.tanh %620 : vector<8x32xf32>
    %623 = arith.mulf %621, %622 : vector<8x32xf32>
    %624 = vector.broadcast %607 : vector<8x1xf32> to vector<8x32xf32>
    %625 = arith.mulf %624, %623 : vector<8x32xf32>
    %cst_137 = arith.constant 1.000000e+00 : f32
    %626 = vector.broadcast %cst_137 : f32 to vector<8x1xf32>
    %627 = arith.subf %626, %607 : vector<8x1xf32>
    %628 = vector.broadcast %627 : vector<8x1xf32> to vector<8x32xf32>
    %629 = arith.mulf %628, %547 : vector<8x32xf32>
    %630 = arith.addf %625, %629 : vector<8x32xf32>
    %631 = vector.broadcast %607 : vector<8x1xf32> to vector<8x32xf32>
    %632 = arith.mulf %631, %620 : vector<8x32xf32>
    %cst_138 = arith.constant 1.000000e+00 : f32
    %633 = vector.broadcast %cst_138 : f32 to vector<8x1xf32>
    %634 = arith.subf %633, %607 : vector<8x1xf32>
    %635 = vector.broadcast %634 : vector<8x1xf32> to vector<8x32xf32>
    %636 = arith.mulf %635, %554 : vector<8x32xf32>
    %637 = arith.addf %632, %636 : vector<8x32xf32>
    %638 = arith.index_cast %595 : i32 to index
    %c0_139 = arith.constant 0 : index
    %639 = vector.load %arg1[%638, %c0_139] : memref<64x1xf32, #tpu.memory_space<vmem>>, vector<8x1xf32>
    %640 = vector.extract_strided_slice %605 {offsets = [0, 0], sizes = [8, 96], strides = [1, 1]} : vector<8x128xf32> to vector<8x96xf32>
    %641 = arith.negf %640 : vector<8x96xf32>
    %642 = math.exp %641 : vector<8x96xf32>
    %cst_140 = arith.constant 1.000000e+00 : f32
    %643 = vector.broadcast %cst_140 : f32 to vector<8x96xf32>
    %644 = arith.addf %643, %642 : vector<8x96xf32>
    %645 = arith.divf %643, %644 : vector<8x96xf32>
    %646 = vector.extract_strided_slice %605 {offsets = [0, 96], sizes = [8, 32], strides = [1, 1]} : vector<8x128xf32> to vector<8x32xf32>
    %647 = math.tanh %646 : vector<8x32xf32>
    %648 = vector.extract_strided_slice %645 {offsets = [0, 32], sizes = [8, 32], strides = [1, 1]} : vector<8x96xf32> to vector<8x32xf32>
    %649 = arith.mulf %648, %586 : vector<8x32xf32>
    %650 = vector.extract_strided_slice %645 {offsets = [0, 0], sizes = [8, 32], strides = [1, 1]} : vector<8x96xf32> to vector<8x32xf32>
    %651 = arith.mulf %650, %647 : vector<8x32xf32>
    %652 = arith.addf %649, %651 : vector<8x32xf32>
    %653 = vector.extract_strided_slice %645 {offsets = [0, 64], sizes = [8, 32], strides = [1, 1]} : vector<8x96xf32> to vector<8x32xf32>
    %654 = math.tanh %652 : vector<8x32xf32>
    %655 = arith.mulf %653, %654 : vector<8x32xf32>
    %656 = vector.broadcast %639 : vector<8x1xf32> to vector<8x32xf32>
    %657 = arith.mulf %656, %655 : vector<8x32xf32>
    %cst_141 = arith.constant 1.000000e+00 : f32
    %658 = vector.broadcast %cst_141 : f32 to vector<8x1xf32>
    %659 = arith.subf %658, %639 : vector<8x1xf32>
    %660 = vector.broadcast %659 : vector<8x1xf32> to vector<8x32xf32>
    %661 = arith.mulf %660, %579 : vector<8x32xf32>
    %662 = arith.addf %657, %661 : vector<8x32xf32>
    %663 = vector.broadcast %639 : vector<8x1xf32> to vector<8x32xf32>
    %664 = arith.mulf %663, %652 : vector<8x32xf32>
    %cst_142 = arith.constant 1.000000e+00 : f32
    %665 = vector.broadcast %cst_142 : f32 to vector<8x1xf32>
    %666 = arith.subf %665, %639 : vector<8x1xf32>
    %667 = vector.broadcast %666 : vector<8x1xf32> to vector<8x32xf32>
    %668 = arith.mulf %667, %586 : vector<8x32xf32>
    %669 = arith.addf %664, %668 : vector<8x32xf32>
    %670 = arith.index_cast %592 : i32 to index
    %c0_143 = arith.constant 0 : index
    %671 = vector.load %arg14[%670, %c0_143] : memref<64x64xf32, #tpu.memory_space<vmem>>, vector<8x32xf32>
    tpu.vector_store %arg14[%670, %c0_143], %630 {strides = array<i32>} : memref<64x64xf32, #tpu.memory_space<vmem>>, vector<8x32xf32>,
    %672 = arith.index_cast %595 : i32 to index
    %c32_144 = arith.constant 32 : index
    %673 = vector.load %arg14[%672, %c32_144] : memref<64x64xf32, #tpu.memory_space<vmem>>, vector<8x32xf32>
    tpu.vector_store %arg14[%672, %c32_144], %662 {strides = array<i32>} : memref<64x64xf32, #tpu.memory_space<vmem>>, vector<8x32xf32>,
    %c8_i32_145 = arith.constant 8 : i32
    %c0_146 = arith.constant 0 : index
    %c0_147 = arith.constant 0 : index
    %674 = vector.load %arg14[%c0_146, %c0_147] : memref<64x64xf32, #tpu.memory_space<vmem>>, vector<64x64xf32>
    %675 = arith.truncf %674 : vector<64x64xf32> to vector<64x64xbf16>
    %c0_148 = arith.constant 0 : index
    %c0_149 = arith.constant 0 : index
    %676 = vector.load %arg6[%c0_148, %c0_149] : memref<64x256xbf16, #tpu.memory_space<vmem>>, vector<64x256xbf16>
    %cst_150 = arith.constant dense<0.000000e+00> : vector<64x256xf32>
    %677 = tpu.matmul %675, %676, %cst_150 {dimension_numbers = #tpu.dot_dimension_numbers<[1], [0], [0], [1], [0, 0, 1, 1], [], []>} : vector<64x64xbf16>, vector<64x256xbf16>, vector<64x256xf32> -> vector<64x256xf32>
    %c0_151 = arith.constant 0 : index
    %c0_152 = arith.constant 0 : index
    %678 = vector.load %arg9[%c0_151, %c0_152] : memref<1x256xf32, #tpu.memory_space<vmem>>, vector<1x256xf32>
    %679 = vector.broadcast %678 : vector<1x256xf32> to vector<64x256xf32>
    %680 = arith.addf %677, %679 : vector<64x256xf32>
    %c0_153 = arith.constant 0 : index
    %c0_154 = arith.constant 0 : index
    %681 = vector.load %arg13[%c0_153, %c0_154] : memref<64x256xf32, #tpu.memory_space<vmem>>, vector<64x256xf32>
    tpu.vector_store %arg13[%c0_153, %c0_154], %680 {strides = array<i32>} : memref<64x256xf32, #tpu.memory_space<vmem>>, vector<64x256xf32>,
    %c0_155 = arith.constant 0 : index
    %c0_156 = arith.constant 0 : index
    %682 = vector.load %arg7[%c0_155, %c0_156] : memref<32x128xbf16, #tpu.memory_space<vmem>>, vector<32x128xbf16>
    %c0_157 = arith.constant 0 : index
    %c0_158 = arith.constant 0 : index
    %683 = vector.load %arg8[%c0_157, %c0_158] : memref<32x128xbf16, #tpu.memory_space<vmem>>, vector<32x128xbf16>
    %cst_159 = arith.constant 0.000000e+00 : f32
    %684 = vector.broadcast %cst_159 : f32 to vector<8x32xf32>
    %c0_i32_160 = arith.constant 0 : i32
    %c8_i32_161 = arith.constant 8 : i32
    %685 = arith.muli %c0_i32_160, %c8_i32_161 : i32
    %686 = tpu.assume_multiple %685, 8 : i32
    %c7_i32_162 = arith.constant 7 : i32
    %687 = arith.subi %c7_i32_162, %c0_i32_160 : i32
    %c8_i32_163 = arith.constant 8 : i32
    %688 = arith.muli %687, %c8_i32_163 : i32
    %689 = tpu.assume_multiple %688, 8 : i32
    %690 = arith.index_cast %686 : i32 to index
    %c0_164 = arith.constant 0 : index
    %691 = vector.load %arg13[%690, %c0_164] : memref<64x256xf32, #tpu.memory_space<vmem>>, vector<8x128xf32>
    %692 = arith.truncf %684 : vector<8x32xf32> to vector<8x32xbf16>
    %cst_165 = arith.constant dense<0.000000e+00> : vector<8x128xf32>
    %693 = tpu.matmul %692, %682, %cst_165 {dimension_numbers = #tpu.dot_dimension_numbers<[1], [0], [0], [1], [0, 0, 1, 1], [], []>} : vector<8x32xbf16>, vector<32x128xbf16>, vector<8x128xf32> -> vector<8x128xf32>
    %694 = arith.addf %691, %693 : vector<8x128xf32>
    %695 = arith.index_cast %689 : i32 to index
    %c128_166 = arith.constant 128 : index
    %696 = vector.load %arg13[%695, %c128_166] : memref<64x256xf32, #tpu.memory_space<vmem>>, vector<8x128xf32>
    %697 = arith.truncf %684 : vector<8x32xf32> to vector<8x32xbf16>
    %cst_167 = arith.constant dense<0.000000e+00> : vector<8x128xf32>
    %698 = tpu.matmul %697, %683, %cst_167 {dimension_numbers = #tpu.dot_dimension_numbers<[1], [0], [0], [1], [0, 0, 1, 1], [], []>} : vector<8x32xbf16>, vector<32x128xbf16>, vector<8x128xf32> -> vector<8x128xf32>
    %699 = arith.addf %696, %698 : vector<8x128xf32>
    %700 = arith.index_cast %686 : i32 to index
    %c0_168 = arith.constant 0 : index
    %701 = vector.load %arg1[%700, %c0_168] : memref<64x1xf32, #tpu.memory_space<vmem>>, vector<8x1xf32>
    %702 = vector.extract_strided_slice %694 {offsets = [0, 0], sizes = [8, 96], strides = [1, 1]} : vector<8x128xf32> to vector<8x96xf32>
    %703 = arith.negf %702 : vector<8x96xf32>
    %704 = math.exp %703 : vector<8x96xf32>
    %cst_169 = arith.constant 1.000000e+00 : f32
    %705 = vector.broadcast %cst_169 : f32 to vector<8x96xf32>
    %706 = arith.addf %705, %704 : vector<8x96xf32>
    %707 = arith.divf %705, %706 : vector<8x96xf32>
    %708 = vector.extract_strided_slice %694 {offsets = [0, 96], sizes = [8, 32], strides = [1, 1]} : vector<8x128xf32> to vector<8x32xf32>
    %709 = math.tanh %708 : vector<8x32xf32>
    %710 = vector.extract_strided_slice %707 {offsets = [0, 32], sizes = [8, 32], strides = [1, 1]} : vector<8x96xf32> to vector<8x32xf32>
    %711 = arith.mulf %710, %684 : vector<8x32xf32>
    %712 = vector.extract_strided_slice %707 {offsets = [0, 0], sizes = [8, 32], strides = [1, 1]} : vector<8x96xf32> to vector<8x32xf32>
    %713 = arith.mulf %712, %709 : vector<8x32xf32>
    %714 = arith.addf %711, %713 : vector<8x32xf32>
    %715 = vector.extract_strided_slice %707 {offsets = [0, 64], sizes = [8, 32], strides = [1, 1]} : vector<8x96xf32> to vector<8x32xf32>
    %716 = math.tanh %714 : vector<8x32xf32>
    %717 = arith.mulf %715, %716 : vector<8x32xf32>
    %718 = vector.broadcast %701 : vector<8x1xf32> to vector<8x32xf32>
    %719 = arith.mulf %718, %717 : vector<8x32xf32>
    %cst_170 = arith.constant 1.000000e+00 : f32
    %720 = vector.broadcast %cst_170 : f32 to vector<8x1xf32>
    %721 = arith.subf %720, %701 : vector<8x1xf32>
    %722 = vector.broadcast %721 : vector<8x1xf32> to vector<8x32xf32>
    %723 = arith.mulf %722, %684 : vector<8x32xf32>
    %724 = arith.addf %719, %723 : vector<8x32xf32>
    %725 = vector.broadcast %701 : vector<8x1xf32> to vector<8x32xf32>
    %726 = arith.mulf %725, %714 : vector<8x32xf32>
    %cst_171 = arith.constant 1.000000e+00 : f32
    %727 = vector.broadcast %cst_171 : f32 to vector<8x1xf32>
    %728 = arith.subf %727, %701 : vector<8x1xf32>
    %729 = vector.broadcast %728 : vector<8x1xf32> to vector<8x32xf32>
    %730 = arith.mulf %729, %684 : vector<8x32xf32>
    %731 = arith.addf %726, %730 : vector<8x32xf32>
    %732 = arith.index_cast %689 : i32 to index
    %c0_172 = arith.constant 0 : index
    %733 = vector.load %arg1[%732, %c0_172] : memref<64x1xf32, #tpu.memory_space<vmem>>, vector<8x1xf32>
    %734 = vector.extract_strided_slice %699 {offsets = [0, 0], sizes = [8, 96], strides = [1, 1]} : vector<8x128xf32> to vector<8x96xf32>
    %735 = arith.negf %734 : vector<8x96xf32>
    %736 = math.exp %735 : vector<8x96xf32>
    %cst_173 = arith.constant 1.000000e+00 : f32
    %737 = vector.broadcast %cst_173 : f32 to vector<8x96xf32>
    %738 = arith.addf %737, %736 : vector<8x96xf32>
    %739 = arith.divf %737, %738 : vector<8x96xf32>
    %740 = vector.extract_strided_slice %699 {offsets = [0, 96], sizes = [8, 32], strides = [1, 1]} : vector<8x128xf32> to vector<8x32xf32>
    %741 = math.tanh %740 : vector<8x32xf32>
    %742 = vector.extract_strided_slice %739 {offsets = [0, 32], sizes = [8, 32], strides = [1, 1]} : vector<8x96xf32> to vector<8x32xf32>
    %743 = arith.mulf %742, %684 : vector<8x32xf32>
    %744 = vector.extract_strided_slice %739 {offsets = [0, 0], sizes = [8, 32], strides = [1, 1]} : vector<8x96xf32> to vector<8x32xf32>
    %745 = arith.mulf %744, %741 : vector<8x32xf32>
    %746 = arith.addf %743, %745 : vector<8x32xf32>
    %747 = vector.extract_strided_slice %739 {offsets = [0, 64], sizes = [8, 32], strides = [1, 1]} : vector<8x96xf32> to vector<8x32xf32>
    %748 = math.tanh %746 : vector<8x32xf32>
    %749 = arith.mulf %747, %748 : vector<8x32xf32>
    %750 = vector.broadcast %733 : vector<8x1xf32> to vector<8x32xf32>
    %751 = arith.mulf %750, %749 : vector<8x32xf32>
    %cst_174 = arith.constant 1.000000e+00 : f32
    %752 = vector.broadcast %cst_174 : f32 to vector<8x1xf32>
    %753 = arith.subf %752, %733 : vector<8x1xf32>
    %754 = vector.broadcast %753 : vector<8x1xf32> to vector<8x32xf32>
    %755 = arith.mulf %754, %684 : vector<8x32xf32>
    %756 = arith.addf %751, %755 : vector<8x32xf32>
    %757 = vector.broadcast %733 : vector<8x1xf32> to vector<8x32xf32>
    %758 = arith.mulf %757, %746 : vector<8x32xf32>
    %cst_175 = arith.constant 1.000000e+00 : f32
    %759 = vector.broadcast %cst_175 : f32 to vector<8x1xf32>
    %760 = arith.subf %759, %733 : vector<8x1xf32>
    %761 = vector.broadcast %760 : vector<8x1xf32> to vector<8x32xf32>
    %762 = arith.mulf %761, %684 : vector<8x32xf32>
    %763 = arith.addf %758, %762 : vector<8x32xf32>
    %c1_i32_176 = arith.constant 1 : i32
    %c8_i32_177 = arith.constant 8 : i32
    %764 = arith.muli %c1_i32_176, %c8_i32_177 : i32
    %765 = tpu.assume_multiple %764, 8 : i32
    %c7_i32_178 = arith.constant 7 : i32
    %766 = arith.subi %c7_i32_178, %c1_i32_176 : i32
    %c8_i32_179 = arith.constant 8 : i32
    %767 = arith.muli %766, %c8_i32_179 : i32
    %768 = tpu.assume_multiple %767, 8 : i32
    %769 = arith.index_cast %765 : i32 to index
    %c0_180 = arith.constant 0 : index
    %770 = vector.load %arg13[%769, %c0_180] : memref<64x256xf32, #tpu.memory_space<vmem>>, vector<8x128xf32>
    %771 = arith.truncf %724 : vector<8x32xf32> to vector<8x32xbf16>
    %cst_181 = arith.constant dense<0.000000e+00> : vector<8x128xf32>
    %772 = tpu.matmul %771, %682, %cst_181 {dimension_numbers = #tpu.dot_dimension_numbers<[1], [0], [0], [1], [0, 0, 1, 1], [], []>} : vector<8x32xbf16>, vector<32x128xbf16>, vector<8x128xf32> -> vector<8x128xf32>
    %773 = arith.addf %770, %772 : vector<8x128xf32>
    %774 = arith.index_cast %768 : i32 to index
    %c128_182 = arith.constant 128 : index
    %775 = vector.load %arg13[%774, %c128_182] : memref<64x256xf32, #tpu.memory_space<vmem>>, vector<8x128xf32>
    %776 = arith.truncf %756 : vector<8x32xf32> to vector<8x32xbf16>
    %cst_183 = arith.constant dense<0.000000e+00> : vector<8x128xf32>
    %777 = tpu.matmul %776, %683, %cst_183 {dimension_numbers = #tpu.dot_dimension_numbers<[1], [0], [0], [1], [0, 0, 1, 1], [], []>} : vector<8x32xbf16>, vector<32x128xbf16>, vector<8x128xf32> -> vector<8x128xf32>
    %778 = arith.addf %775, %777 : vector<8x128xf32>
    %779 = arith.index_cast %765 : i32 to index
    %c0_184 = arith.constant 0 : index
    %780 = vector.load %arg1[%779, %c0_184] : memref<64x1xf32, #tpu.memory_space<vmem>>, vector<8x1xf32>
    %781 = vector.extract_strided_slice %773 {offsets = [0, 0], sizes = [8, 96], strides = [1, 1]} : vector<8x128xf32> to vector<8x96xf32>
    %782 = arith.negf %781 : vector<8x96xf32>
    %783 = math.exp %782 : vector<8x96xf32>
    %cst_185 = arith.constant 1.000000e+00 : f32
    %784 = vector.broadcast %cst_185 : f32 to vector<8x96xf32>
    %785 = arith.addf %784, %783 : vector<8x96xf32>
    %786 = arith.divf %784, %785 : vector<8x96xf32>
    %787 = vector.extract_strided_slice %773 {offsets = [0, 96], sizes = [8, 32], strides = [1, 1]} : vector<8x128xf32> to vector<8x32xf32>
    %788 = math.tanh %787 : vector<8x32xf32>
    %789 = vector.extract_strided_slice %786 {offsets = [0, 32], sizes = [8, 32], strides = [1, 1]} : vector<8x96xf32> to vector<8x32xf32>
    %790 = arith.mulf %789, %731 : vector<8x32xf32>
    %791 = vector.extract_strided_slice %786 {offsets = [0, 0], sizes = [8, 32], strides = [1, 1]} : vector<8x96xf32> to vector<8x32xf32>
    %792 = arith.mulf %791, %788 : vector<8x32xf32>
    %793 = arith.addf %790, %792 : vector<8x32xf32>
    %794 = vector.extract_strided_slice %786 {offsets = [0, 64], sizes = [8, 32], strides = [1, 1]} : vector<8x96xf32> to vector<8x32xf32>
    %795 = math.tanh %793 : vector<8x32xf32>
    %796 = arith.mulf %794, %795 : vector<8x32xf32>
    %797 = vector.broadcast %780 : vector<8x1xf32> to vector<8x32xf32>
    %798 = arith.mulf %797, %796 : vector<8x32xf32>
    %cst_186 = arith.constant 1.000000e+00 : f32
    %799 = vector.broadcast %cst_186 : f32 to vector<8x1xf32>
    %800 = arith.subf %799, %780 : vector<8x1xf32>
    %801 = vector.broadcast %800 : vector<8x1xf32> to vector<8x32xf32>
    %802 = arith.mulf %801, %724 : vector<8x32xf32>
    %803 = arith.addf %798, %802 : vector<8x32xf32>
    %804 = vector.broadcast %780 : vector<8x1xf32> to vector<8x32xf32>
    %805 = arith.mulf %804, %793 : vector<8x32xf32>
    %cst_187 = arith.constant 1.000000e+00 : f32
    %806 = vector.broadcast %cst_187 : f32 to vector<8x1xf32>
    %807 = arith.subf %806, %780 : vector<8x1xf32>
    %808 = vector.broadcast %807 : vector<8x1xf32> to vector<8x32xf32>
    %809 = arith.mulf %808, %731 : vector<8x32xf32>
    %810 = arith.addf %805, %809 : vector<8x32xf32>
    %811 = arith.index_cast %768 : i32 to index
    %c0_188 = arith.constant 0 : index
    %812 = vector.load %arg1[%811, %c0_188] : memref<64x1xf32, #tpu.memory_space<vmem>>, vector<8x1xf32>
    %813 = vector.extract_strided_slice %778 {offsets = [0, 0], sizes = [8, 96], strides = [1, 1]} : vector<8x128xf32> to vector<8x96xf32>
    %814 = arith.negf %813 : vector<8x96xf32>
    %815 = math.exp %814 : vector<8x96xf32>
    %cst_189 = arith.constant 1.000000e+00 : f32
    %816 = vector.broadcast %cst_189 : f32 to vector<8x96xf32>
    %817 = arith.addf %816, %815 : vector<8x96xf32>
    %818 = arith.divf %816, %817 : vector<8x96xf32>
    %819 = vector.extract_strided_slice %778 {offsets = [0, 96], sizes = [8, 32], strides = [1, 1]} : vector<8x128xf32> to vector<8x32xf32>
    %820 = math.tanh %819 : vector<8x32xf32>
    %821 = vector.extract_strided_slice %818 {offsets = [0, 32], sizes = [8, 32], strides = [1, 1]} : vector<8x96xf32> to vector<8x32xf32>
    %822 = arith.mulf %821, %763 : vector<8x32xf32>
    %823 = vector.extract_strided_slice %818 {offsets = [0, 0], sizes = [8, 32], strides = [1, 1]} : vector<8x96xf32> to vector<8x32xf32>
    %824 = arith.mulf %823, %820 : vector<8x32xf32>
    %825 = arith.addf %822, %824 : vector<8x32xf32>
    %826 = vector.extract_strided_slice %818 {offsets = [0, 64], sizes = [8, 32], strides = [1, 1]} : vector<8x96xf32> to vector<8x32xf32>
    %827 = math.tanh %825 : vector<8x32xf32>
    %828 = arith.mulf %826, %827 : vector<8x32xf32>
    %829 = vector.broadcast %812 : vector<8x1xf32> to vector<8x32xf32>
    %830 = arith.mulf %829, %828 : vector<8x32xf32>
    %cst_190 = arith.constant 1.000000e+00 : f32
    %831 = vector.broadcast %cst_190 : f32 to vector<8x1xf32>
    %832 = arith.subf %831, %812 : vector<8x1xf32>
    %833 = vector.broadcast %832 : vector<8x1xf32> to vector<8x32xf32>
    %834 = arith.mulf %833, %756 : vector<8x32xf32>
    %835 = arith.addf %830, %834 : vector<8x32xf32>
    %836 = vector.broadcast %812 : vector<8x1xf32> to vector<8x32xf32>
    %837 = arith.mulf %836, %825 : vector<8x32xf32>
    %cst_191 = arith.constant 1.000000e+00 : f32
    %838 = vector.broadcast %cst_191 : f32 to vector<8x1xf32>
    %839 = arith.subf %838, %812 : vector<8x1xf32>
    %840 = vector.broadcast %839 : vector<8x1xf32> to vector<8x32xf32>
    %841 = arith.mulf %840, %763 : vector<8x32xf32>
    %842 = arith.addf %837, %841 : vector<8x32xf32>
    %c2_i32_192 = arith.constant 2 : i32
    %c8_i32_193 = arith.constant 8 : i32
    %843 = arith.muli %c2_i32_192, %c8_i32_193 : i32
    %844 = tpu.assume_multiple %843, 8 : i32
    %c7_i32_194 = arith.constant 7 : i32
    %845 = arith.subi %c7_i32_194, %c2_i32_192 : i32
    %c8_i32_195 = arith.constant 8 : i32
    %846 = arith.muli %845, %c8_i32_195 : i32
    %847 = tpu.assume_multiple %846, 8 : i32
    %848 = arith.index_cast %844 : i32 to index
    %c0_196 = arith.constant 0 : index
    %849 = vector.load %arg13[%848, %c0_196] : memref<64x256xf32, #tpu.memory_space<vmem>>, vector<8x128xf32>
    %850 = arith.truncf %803 : vector<8x32xf32> to vector<8x32xbf16>
    %cst_197 = arith.constant dense<0.000000e+00> : vector<8x128xf32>
    %851 = tpu.matmul %850, %682, %cst_197 {dimension_numbers = #tpu.dot_dimension_numbers<[1], [0], [0], [1], [0, 0, 1, 1], [], []>} : vector<8x32xbf16>, vector<32x128xbf16>, vector<8x128xf32> -> vector<8x128xf32>
    %852 = arith.addf %849, %851 : vector<8x128xf32>
    %853 = arith.index_cast %847 : i32 to index
    %c128_198 = arith.constant 128 : index
    %854 = vector.load %arg13[%853, %c128_198] : memref<64x256xf32, #tpu.memory_space<vmem>>, vector<8x128xf32>
    %855 = arith.truncf %835 : vector<8x32xf32> to vector<8x32xbf16>
    %cst_199 = arith.constant dense<0.000000e+00> : vector<8x128xf32>
    %856 = tpu.matmul %855, %683, %cst_199 {dimension_numbers = #tpu.dot_dimension_numbers<[1], [0], [0], [1], [0, 0, 1, 1], [], []>} : vector<8x32xbf16>, vector<32x128xbf16>, vector<8x128xf32> -> vector<8x128xf32>
    %857 = arith.addf %854, %856 : vector<8x128xf32>
    %858 = arith.index_cast %844 : i32 to index
    %c0_200 = arith.constant 0 : index
    %859 = vector.load %arg1[%858, %c0_200] : memref<64x1xf32, #tpu.memory_space<vmem>>, vector<8x1xf32>
    %860 = vector.extract_strided_slice %852 {offsets = [0, 0], sizes = [8, 96], strides = [1, 1]} : vector<8x128xf32> to vector<8x96xf32>
    %861 = arith.negf %860 : vector<8x96xf32>
    %862 = math.exp %861 : vector<8x96xf32>
    %cst_201 = arith.constant 1.000000e+00 : f32
    %863 = vector.broadcast %cst_201 : f32 to vector<8x96xf32>
    %864 = arith.addf %863, %862 : vector<8x96xf32>
    %865 = arith.divf %863, %864 : vector<8x96xf32>
    %866 = vector.extract_strided_slice %852 {offsets = [0, 96], sizes = [8, 32], strides = [1, 1]} : vector<8x128xf32> to vector<8x32xf32>
    %867 = math.tanh %866 : vector<8x32xf32>
    %868 = vector.extract_strided_slice %865 {offsets = [0, 32], sizes = [8, 32], strides = [1, 1]} : vector<8x96xf32> to vector<8x32xf32>
    %869 = arith.mulf %868, %810 : vector<8x32xf32>
    %870 = vector.extract_strided_slice %865 {offsets = [0, 0], sizes = [8, 32], strides = [1, 1]} : vector<8x96xf32> to vector<8x32xf32>
    %871 = arith.mulf %870, %867 : vector<8x32xf32>
    %872 = arith.addf %869, %871 : vector<8x32xf32>
    %873 = vector.extract_strided_slice %865 {offsets = [0, 64], sizes = [8, 32], strides = [1, 1]} : vector<8x96xf32> to vector<8x32xf32>
    %874 = math.tanh %872 : vector<8x32xf32>
    %875 = arith.mulf %873, %874 : vector<8x32xf32>
    %876 = vector.broadcast %859 : vector<8x1xf32> to vector<8x32xf32>
    %877 = arith.mulf %876, %875 : vector<8x32xf32>
    %cst_202 = arith.constant 1.000000e+00 : f32
    %878 = vector.broadcast %cst_202 : f32 to vector<8x1xf32>
    %879 = arith.subf %878, %859 : vector<8x1xf32>
    %880 = vector.broadcast %879 : vector<8x1xf32> to vector<8x32xf32>
    %881 = arith.mulf %880, %803 : vector<8x32xf32>
    %882 = arith.addf %877, %881 : vector<8x32xf32>
    %883 = vector.broadcast %859 : vector<8x1xf32> to vector<8x32xf32>
    %884 = arith.mulf %883, %872 : vector<8x32xf32>
    %cst_203 = arith.constant 1.000000e+00 : f32
    %885 = vector.broadcast %cst_203 : f32 to vector<8x1xf32>
    %886 = arith.subf %885, %859 : vector<8x1xf32>
    %887 = vector.broadcast %886 : vector<8x1xf32> to vector<8x32xf32>
    %888 = arith.mulf %887, %810 : vector<8x32xf32>
    %889 = arith.addf %884, %888 : vector<8x32xf32>
    %890 = arith.index_cast %847 : i32 to index
    %c0_204 = arith.constant 0 : index
    %891 = vector.load %arg1[%890, %c0_204] : memref<64x1xf32, #tpu.memory_space<vmem>>, vector<8x1xf32>
    %892 = vector.extract_strided_slice %857 {offsets = [0, 0], sizes = [8, 96], strides = [1, 1]} : vector<8x128xf32> to vector<8x96xf32>
    %893 = arith.negf %892 : vector<8x96xf32>
    %894 = math.exp %893 : vector<8x96xf32>
    %cst_205 = arith.constant 1.000000e+00 : f32
    %895 = vector.broadcast %cst_205 : f32 to vector<8x96xf32>
    %896 = arith.addf %895, %894 : vector<8x96xf32>
    %897 = arith.divf %895, %896 : vector<8x96xf32>
    %898 = vector.extract_strided_slice %857 {offsets = [0, 96], sizes = [8, 32], strides = [1, 1]} : vector<8x128xf32> to vector<8x32xf32>
    %899 = math.tanh %898 : vector<8x32xf32>
    %900 = vector.extract_strided_slice %897 {offsets = [0, 32], sizes = [8, 32], strides = [1, 1]} : vector<8x96xf32> to vector<8x32xf32>
    %901 = arith.mulf %900, %842 : vector<8x32xf32>
    %902 = vector.extract_strided_slice %897 {offsets = [0, 0], sizes = [8, 32], strides = [1, 1]} : vector<8x96xf32> to vector<8x32xf32>
    %903 = arith.mulf %902, %899 : vector<8x32xf32>
    %904 = arith.addf %901, %903 : vector<8x32xf32>
    %905 = vector.extract_strided_slice %897 {offsets = [0, 64], sizes = [8, 32], strides = [1, 1]} : vector<8x96xf32> to vector<8x32xf32>
    %906 = math.tanh %904 : vector<8x32xf32>
    %907 = arith.mulf %905, %906 : vector<8x32xf32>
    %908 = vector.broadcast %891 : vector<8x1xf32> to vector<8x32xf32>
    %909 = arith.mulf %908, %907 : vector<8x32xf32>
    %cst_206 = arith.constant 1.000000e+00 : f32
    %910 = vector.broadcast %cst_206 : f32 to vector<8x1xf32>
    %911 = arith.subf %910, %891 : vector<8x1xf32>
    %912 = vector.broadcast %911 : vector<8x1xf32> to vector<8x32xf32>
    %913 = arith.mulf %912, %835 : vector<8x32xf32>
    %914 = arith.addf %909, %913 : vector<8x32xf32>
    %915 = vector.broadcast %891 : vector<8x1xf32> to vector<8x32xf32>
    %916 = arith.mulf %915, %904 : vector<8x32xf32>
    %cst_207 = arith.constant 1.000000e+00 : f32
    %917 = vector.broadcast %cst_207 : f32 to vector<8x1xf32>
    %918 = arith.subf %917, %891 : vector<8x1xf32>
    %919 = vector.broadcast %918 : vector<8x1xf32> to vector<8x32xf32>
    %920 = arith.mulf %919, %842 : vector<8x32xf32>
    %921 = arith.addf %916, %920 : vector<8x32xf32>
    %c3_i32_208 = arith.constant 3 : i32
    %c8_i32_209 = arith.constant 8 : i32
    %922 = arith.muli %c3_i32_208, %c8_i32_209 : i32
    %923 = tpu.assume_multiple %922, 8 : i32
    %c7_i32_210 = arith.constant 7 : i32
    %924 = arith.subi %c7_i32_210, %c3_i32_208 : i32
    %c8_i32_211 = arith.constant 8 : i32
    %925 = arith.muli %924, %c8_i32_211 : i32
    %926 = tpu.assume_multiple %925, 8 : i32
    %927 = arith.index_cast %923 : i32 to index
    %c0_212 = arith.constant 0 : index
    %928 = vector.load %arg13[%927, %c0_212] : memref<64x256xf32, #tpu.memory_space<vmem>>, vector<8x128xf32>
    %929 = arith.truncf %882 : vector<8x32xf32> to vector<8x32xbf16>
    %cst_213 = arith.constant dense<0.000000e+00> : vector<8x128xf32>
    %930 = tpu.matmul %929, %682, %cst_213 {dimension_numbers = #tpu.dot_dimension_numbers<[1], [0], [0], [1], [0, 0, 1, 1], [], []>} : vector<8x32xbf16>, vector<32x128xbf16>, vector<8x128xf32> -> vector<8x128xf32>
    %931 = arith.addf %928, %930 : vector<8x128xf32>
    %932 = arith.index_cast %926 : i32 to index
    %c128_214 = arith.constant 128 : index
    %933 = vector.load %arg13[%932, %c128_214] : memref<64x256xf32, #tpu.memory_space<vmem>>, vector<8x128xf32>
    %934 = arith.truncf %914 : vector<8x32xf32> to vector<8x32xbf16>
    %cst_215 = arith.constant dense<0.000000e+00> : vector<8x128xf32>
    %935 = tpu.matmul %934, %683, %cst_215 {dimension_numbers = #tpu.dot_dimension_numbers<[1], [0], [0], [1], [0, 0, 1, 1], [], []>} : vector<8x32xbf16>, vector<32x128xbf16>, vector<8x128xf32> -> vector<8x128xf32>
    %936 = arith.addf %933, %935 : vector<8x128xf32>
    %937 = arith.index_cast %923 : i32 to index
    %c0_216 = arith.constant 0 : index
    %938 = vector.load %arg1[%937, %c0_216] : memref<64x1xf32, #tpu.memory_space<vmem>>, vector<8x1xf32>
    %939 = vector.extract_strided_slice %931 {offsets = [0, 0], sizes = [8, 96], strides = [1, 1]} : vector<8x128xf32> to vector<8x96xf32>
    %940 = arith.negf %939 : vector<8x96xf32>
    %941 = math.exp %940 : vector<8x96xf32>
    %cst_217 = arith.constant 1.000000e+00 : f32
    %942 = vector.broadcast %cst_217 : f32 to vector<8x96xf32>
    %943 = arith.addf %942, %941 : vector<8x96xf32>
    %944 = arith.divf %942, %943 : vector<8x96xf32>
    %945 = vector.extract_strided_slice %931 {offsets = [0, 96], sizes = [8, 32], strides = [1, 1]} : vector<8x128xf32> to vector<8x32xf32>
    %946 = math.tanh %945 : vector<8x32xf32>
    %947 = vector.extract_strided_slice %944 {offsets = [0, 32], sizes = [8, 32], strides = [1, 1]} : vector<8x96xf32> to vector<8x32xf32>
    %948 = arith.mulf %947, %889 : vector<8x32xf32>
    %949 = vector.extract_strided_slice %944 {offsets = [0, 0], sizes = [8, 32], strides = [1, 1]} : vector<8x96xf32> to vector<8x32xf32>
    %950 = arith.mulf %949, %946 : vector<8x32xf32>
    %951 = arith.addf %948, %950 : vector<8x32xf32>
    %952 = vector.extract_strided_slice %944 {offsets = [0, 64], sizes = [8, 32], strides = [1, 1]} : vector<8x96xf32> to vector<8x32xf32>
    %953 = math.tanh %951 : vector<8x32xf32>
    %954 = arith.mulf %952, %953 : vector<8x32xf32>
    %955 = vector.broadcast %938 : vector<8x1xf32> to vector<8x32xf32>
    %956 = arith.mulf %955, %954 : vector<8x32xf32>
    %cst_218 = arith.constant 1.000000e+00 : f32
    %957 = vector.broadcast %cst_218 : f32 to vector<8x1xf32>
    %958 = arith.subf %957, %938 : vector<8x1xf32>
    %959 = vector.broadcast %958 : vector<8x1xf32> to vector<8x32xf32>
    %960 = arith.mulf %959, %882 : vector<8x32xf32>
    %961 = arith.addf %956, %960 : vector<8x32xf32>
    %962 = vector.broadcast %938 : vector<8x1xf32> to vector<8x32xf32>
    %963 = arith.mulf %962, %951 : vector<8x32xf32>
    %cst_219 = arith.constant 1.000000e+00 : f32
    %964 = vector.broadcast %cst_219 : f32 to vector<8x1xf32>
    %965 = arith.subf %964, %938 : vector<8x1xf32>
    %966 = vector.broadcast %965 : vector<8x1xf32> to vector<8x32xf32>
    %967 = arith.mulf %966, %889 : vector<8x32xf32>
    %968 = arith.addf %963, %967 : vector<8x32xf32>
    %969 = arith.index_cast %926 : i32 to index
    %c0_220 = arith.constant 0 : index
    %970 = vector.load %arg1[%969, %c0_220] : memref<64x1xf32, #tpu.memory_space<vmem>>, vector<8x1xf32>
    %971 = vector.extract_strided_slice %936 {offsets = [0, 0], sizes = [8, 96], strides = [1, 1]} : vector<8x128xf32> to vector<8x96xf32>
    %972 = arith.negf %971 : vector<8x96xf32>
    %973 = math.exp %972 : vector<8x96xf32>
    %cst_221 = arith.constant 1.000000e+00 : f32
    %974 = vector.broadcast %cst_221 : f32 to vector<8x96xf32>
    %975 = arith.addf %974, %973 : vector<8x96xf32>
    %976 = arith.divf %974, %975 : vector<8x96xf32>
    %977 = vector.extract_strided_slice %936 {offsets = [0, 96], sizes = [8, 32], strides = [1, 1]} : vector<8x128xf32> to vector<8x32xf32>
    %978 = math.tanh %977 : vector<8x32xf32>
    %979 = vector.extract_strided_slice %976 {offsets = [0, 32], sizes = [8, 32], strides = [1, 1]} : vector<8x96xf32> to vector<8x32xf32>
    %980 = arith.mulf %979, %921 : vector<8x32xf32>
    %981 = vector.extract_strided_slice %976 {offsets = [0, 0], sizes = [8, 32], strides = [1, 1]} : vector<8x96xf32> to vector<8x32xf32>
    %982 = arith.mulf %981, %978 : vector<8x32xf32>
    %983 = arith.addf %980, %982 : vector<8x32xf32>
    %984 = vector.extract_strided_slice %976 {offsets = [0, 64], sizes = [8, 32], strides = [1, 1]} : vector<8x96xf32> to vector<8x32xf32>
    %985 = math.tanh %983 : vector<8x32xf32>
    %986 = arith.mulf %984, %985 : vector<8x32xf32>
    %987 = vector.broadcast %970 : vector<8x1xf32> to vector<8x32xf32>
    %988 = arith.mulf %987, %986 : vector<8x32xf32>
    %cst_222 = arith.constant 1.000000e+00 : f32
    %989 = vector.broadcast %cst_222 : f32 to vector<8x1xf32>
    %990 = arith.subf %989, %970 : vector<8x1xf32>
    %991 = vector.broadcast %990 : vector<8x1xf32> to vector<8x32xf32>
    %992 = arith.mulf %991, %914 : vector<8x32xf32>
    %993 = arith.addf %988, %992 : vector<8x32xf32>
    %994 = vector.broadcast %970 : vector<8x1xf32> to vector<8x32xf32>
    %995 = arith.mulf %994, %983 : vector<8x32xf32>
    %cst_223 = arith.constant 1.000000e+00 : f32
    %996 = vector.broadcast %cst_223 : f32 to vector<8x1xf32>
    %997 = arith.subf %996, %970 : vector<8x1xf32>
    %998 = vector.broadcast %997 : vector<8x1xf32> to vector<8x32xf32>
    %999 = arith.mulf %998, %921 : vector<8x32xf32>
    %1000 = arith.addf %995, %999 : vector<8x32xf32>
    %c4_i32_224 = arith.constant 4 : i32
    %c8_i32_225 = arith.constant 8 : i32
    %1001 = arith.muli %c4_i32_224, %c8_i32_225 : i32
    %1002 = tpu.assume_multiple %1001, 8 : i32
    %c7_i32_226 = arith.constant 7 : i32
    %1003 = arith.subi %c7_i32_226, %c4_i32_224 : i32
    %c8_i32_227 = arith.constant 8 : i32
    %1004 = arith.muli %1003, %c8_i32_227 : i32
    %1005 = tpu.assume_multiple %1004, 8 : i32
    %1006 = arith.index_cast %1002 : i32 to index
    %c0_228 = arith.constant 0 : index
    %1007 = vector.load %arg13[%1006, %c0_228] : memref<64x256xf32, #tpu.memory_space<vmem>>, vector<8x128xf32>
    %1008 = arith.truncf %961 : vector<8x32xf32> to vector<8x32xbf16>
    %cst_229 = arith.constant dense<0.000000e+00> : vector<8x128xf32>
    %1009 = tpu.matmul %1008, %682, %cst_229 {dimension_numbers = #tpu.dot_dimension_numbers<[1], [0], [0], [1], [0, 0, 1, 1], [], []>} : vector<8x32xbf16>, vector<32x128xbf16>, vector<8x128xf32> -> vector<8x128xf32>
    %1010 = arith.addf %1007, %1009 : vector<8x128xf32>
    %1011 = arith.index_cast %1005 : i32 to index
    %c128_230 = arith.constant 128 : index
    %1012 = vector.load %arg13[%1011, %c128_230] : memref<64x256xf32, #tpu.memory_space<vmem>>, vector<8x128xf32>
    %1013 = arith.truncf %993 : vector<8x32xf32> to vector<8x32xbf16>
    %cst_231 = arith.constant dense<0.000000e+00> : vector<8x128xf32>
    %1014 = tpu.matmul %1013, %683, %cst_231 {dimension_numbers = #tpu.dot_dimension_numbers<[1], [0], [0], [1], [0, 0, 1, 1], [], []>} : vector<8x32xbf16>, vector<32x128xbf16>, vector<8x128xf32> -> vector<8x128xf32>
    %1015 = arith.addf %1012, %1014 : vector<8x128xf32>
    %1016 = arith.index_cast %1002 : i32 to index
    %c0_232 = arith.constant 0 : index
    %1017 = vector.load %arg1[%1016, %c0_232] : memref<64x1xf32, #tpu.memory_space<vmem>>, vector<8x1xf32>
    %1018 = vector.extract_strided_slice %1010 {offsets = [0, 0], sizes = [8, 96], strides = [1, 1]} : vector<8x128xf32> to vector<8x96xf32>
    %1019 = arith.negf %1018 : vector<8x96xf32>
    %1020 = math.exp %1019 : vector<8x96xf32>
    %cst_233 = arith.constant 1.000000e+00 : f32
    %1021 = vector.broadcast %cst_233 : f32 to vector<8x96xf32>
    %1022 = arith.addf %1021, %1020 : vector<8x96xf32>
    %1023 = arith.divf %1021, %1022 : vector<8x96xf32>
    %1024 = vector.extract_strided_slice %1010 {offsets = [0, 96], sizes = [8, 32], strides = [1, 1]} : vector<8x128xf32> to vector<8x32xf32>
    %1025 = math.tanh %1024 : vector<8x32xf32>
    %1026 = vector.extract_strided_slice %1023 {offsets = [0, 32], sizes = [8, 32], strides = [1, 1]} : vector<8x96xf32> to vector<8x32xf32>
    %1027 = arith.mulf %1026, %968 : vector<8x32xf32>
    %1028 = vector.extract_strided_slice %1023 {offsets = [0, 0], sizes = [8, 32], strides = [1, 1]} : vector<8x96xf32> to vector<8x32xf32>
    %1029 = arith.mulf %1028, %1025 : vector<8x32xf32>
    %1030 = arith.addf %1027, %1029 : vector<8x32xf32>
    %1031 = vector.extract_strided_slice %1023 {offsets = [0, 64], sizes = [8, 32], strides = [1, 1]} : vector<8x96xf32> to vector<8x32xf32>
    %1032 = math.tanh %1030 : vector<8x32xf32>
    %1033 = arith.mulf %1031, %1032 : vector<8x32xf32>
    %1034 = vector.broadcast %1017 : vector<8x1xf32> to vector<8x32xf32>
    %1035 = arith.mulf %1034, %1033 : vector<8x32xf32>
    %cst_234 = arith.constant 1.000000e+00 : f32
    %1036 = vector.broadcast %cst_234 : f32 to vector<8x1xf32>
    %1037 = arith.subf %1036, %1017 : vector<8x1xf32>
    %1038 = vector.broadcast %1037 : vector<8x1xf32> to vector<8x32xf32>
    %1039 = arith.mulf %1038, %961 : vector<8x32xf32>
    %1040 = arith.addf %1035, %1039 : vector<8x32xf32>
    %1041 = vector.broadcast %1017 : vector<8x1xf32> to vector<8x32xf32>
    %1042 = arith.mulf %1041, %1030 : vector<8x32xf32>
    %cst_235 = arith.constant 1.000000e+00 : f32
    %1043 = vector.broadcast %cst_235 : f32 to vector<8x1xf32>
    %1044 = arith.subf %1043, %1017 : vector<8x1xf32>
    %1045 = vector.broadcast %1044 : vector<8x1xf32> to vector<8x32xf32>
    %1046 = arith.mulf %1045, %968 : vector<8x32xf32>
    %1047 = arith.addf %1042, %1046 : vector<8x32xf32>
    %1048 = arith.index_cast %1005 : i32 to index
    %c0_236 = arith.constant 0 : index
    %1049 = vector.load %arg1[%1048, %c0_236] : memref<64x1xf32, #tpu.memory_space<vmem>>, vector<8x1xf32>
    %1050 = vector.extract_strided_slice %1015 {offsets = [0, 0], sizes = [8, 96], strides = [1, 1]} : vector<8x128xf32> to vector<8x96xf32>
    %1051 = arith.negf %1050 : vector<8x96xf32>
    %1052 = math.exp %1051 : vector<8x96xf32>
    %cst_237 = arith.constant 1.000000e+00 : f32
    %1053 = vector.broadcast %cst_237 : f32 to vector<8x96xf32>
    %1054 = arith.addf %1053, %1052 : vector<8x96xf32>
    %1055 = arith.divf %1053, %1054 : vector<8x96xf32>
    %1056 = vector.extract_strided_slice %1015 {offsets = [0, 96], sizes = [8, 32], strides = [1, 1]} : vector<8x128xf32> to vector<8x32xf32>
    %1057 = math.tanh %1056 : vector<8x32xf32>
    %1058 = vector.extract_strided_slice %1055 {offsets = [0, 32], sizes = [8, 32], strides = [1, 1]} : vector<8x96xf32> to vector<8x32xf32>
    %1059 = arith.mulf %1058, %1000 : vector<8x32xf32>
    %1060 = vector.extract_strided_slice %1055 {offsets = [0, 0], sizes = [8, 32], strides = [1, 1]} : vector<8x96xf32> to vector<8x32xf32>
    %1061 = arith.mulf %1060, %1057 : vector<8x32xf32>
    %1062 = arith.addf %1059, %1061 : vector<8x32xf32>
    %1063 = vector.extract_strided_slice %1055 {offsets = [0, 64], sizes = [8, 32], strides = [1, 1]} : vector<8x96xf32> to vector<8x32xf32>
    %1064 = math.tanh %1062 : vector<8x32xf32>
    %1065 = arith.mulf %1063, %1064 : vector<8x32xf32>
    %1066 = vector.broadcast %1049 : vector<8x1xf32> to vector<8x32xf32>
    %1067 = arith.mulf %1066, %1065 : vector<8x32xf32>
    %cst_238 = arith.constant 1.000000e+00 : f32
    %1068 = vector.broadcast %cst_238 : f32 to vector<8x1xf32>
    %1069 = arith.subf %1068, %1049 : vector<8x1xf32>
    %1070 = vector.broadcast %1069 : vector<8x1xf32> to vector<8x32xf32>
    %1071 = arith.mulf %1070, %993 : vector<8x32xf32>
    %1072 = arith.addf %1067, %1071 : vector<8x32xf32>
    %1073 = vector.broadcast %1049 : vector<8x1xf32> to vector<8x32xf32>
    %1074 = arith.mulf %1073, %1062 : vector<8x32xf32>
    %cst_239 = arith.constant 1.000000e+00 : f32
    %1075 = vector.broadcast %cst_239 : f32 to vector<8x1xf32>
    %1076 = arith.subf %1075, %1049 : vector<8x1xf32>
    %1077 = vector.broadcast %1076 : vector<8x1xf32> to vector<8x32xf32>
    %1078 = arith.mulf %1077, %1000 : vector<8x32xf32>
    %1079 = arith.addf %1074, %1078 : vector<8x32xf32>
    %c5_i32_240 = arith.constant 5 : i32
    %c8_i32_241 = arith.constant 8 : i32
    %1080 = arith.muli %c5_i32_240, %c8_i32_241 : i32
    %1081 = tpu.assume_multiple %1080, 8 : i32
    %c7_i32_242 = arith.constant 7 : i32
    %1082 = arith.subi %c7_i32_242, %c5_i32_240 : i32
    %c8_i32_243 = arith.constant 8 : i32
    %1083 = arith.muli %1082, %c8_i32_243 : i32
    %1084 = tpu.assume_multiple %1083, 8 : i32
    %1085 = arith.index_cast %1081 : i32 to index
    %c0_244 = arith.constant 0 : index
    %1086 = vector.load %arg13[%1085, %c0_244] : memref<64x256xf32, #tpu.memory_space<vmem>>, vector<8x128xf32>
    %1087 = arith.truncf %1040 : vector<8x32xf32> to vector<8x32xbf16>
    %cst_245 = arith.constant dense<0.000000e+00> : vector<8x128xf32>
    %1088 = tpu.matmul %1087, %682, %cst_245 {dimension_numbers = #tpu.dot_dimension_numbers<[1], [0], [0], [1], [0, 0, 1, 1], [], []>} : vector<8x32xbf16>, vector<32x128xbf16>, vector<8x128xf32> -> vector<8x128xf32>
    %1089 = arith.addf %1086, %1088 : vector<8x128xf32>
    %1090 = arith.index_cast %1084 : i32 to index
    %c128_246 = arith.constant 128 : index
    %1091 = vector.load %arg13[%1090, %c128_246] : memref<64x256xf32, #tpu.memory_space<vmem>>, vector<8x128xf32>
    %1092 = arith.truncf %1072 : vector<8x32xf32> to vector<8x32xbf16>
    %cst_247 = arith.constant dense<0.000000e+00> : vector<8x128xf32>
    %1093 = tpu.matmul %1092, %683, %cst_247 {dimension_numbers = #tpu.dot_dimension_numbers<[1], [0], [0], [1], [0, 0, 1, 1], [], []>} : vector<8x32xbf16>, vector<32x128xbf16>, vector<8x128xf32> -> vector<8x128xf32>
    %1094 = arith.addf %1091, %1093 : vector<8x128xf32>
    %1095 = arith.index_cast %1081 : i32 to index
    %c0_248 = arith.constant 0 : index
    %1096 = vector.load %arg1[%1095, %c0_248] : memref<64x1xf32, #tpu.memory_space<vmem>>, vector<8x1xf32>
    %1097 = vector.extract_strided_slice %1089 {offsets = [0, 0], sizes = [8, 96], strides = [1, 1]} : vector<8x128xf32> to vector<8x96xf32>
    %1098 = arith.negf %1097 : vector<8x96xf32>
    %1099 = math.exp %1098 : vector<8x96xf32>
    %cst_249 = arith.constant 1.000000e+00 : f32
    %1100 = vector.broadcast %cst_249 : f32 to vector<8x96xf32>
    %1101 = arith.addf %1100, %1099 : vector<8x96xf32>
    %1102 = arith.divf %1100, %1101 : vector<8x96xf32>
    %1103 = vector.extract_strided_slice %1089 {offsets = [0, 96], sizes = [8, 32], strides = [1, 1]} : vector<8x128xf32> to vector<8x32xf32>
    %1104 = math.tanh %1103 : vector<8x32xf32>
    %1105 = vector.extract_strided_slice %1102 {offsets = [0, 32], sizes = [8, 32], strides = [1, 1]} : vector<8x96xf32> to vector<8x32xf32>
    %1106 = arith.mulf %1105, %1047 : vector<8x32xf32>
    %1107 = vector.extract_strided_slice %1102 {offsets = [0, 0], sizes = [8, 32], strides = [1, 1]} : vector<8x96xf32> to vector<8x32xf32>
    %1108 = arith.mulf %1107, %1104 : vector<8x32xf32>
    %1109 = arith.addf %1106, %1108 : vector<8x32xf32>
    %1110 = vector.extract_strided_slice %1102 {offsets = [0, 64], sizes = [8, 32], strides = [1, 1]} : vector<8x96xf32> to vector<8x32xf32>
    %1111 = math.tanh %1109 : vector<8x32xf32>
    %1112 = arith.mulf %1110, %1111 : vector<8x32xf32>
    %1113 = vector.broadcast %1096 : vector<8x1xf32> to vector<8x32xf32>
    %1114 = arith.mulf %1113, %1112 : vector<8x32xf32>
    %cst_250 = arith.constant 1.000000e+00 : f32
    %1115 = vector.broadcast %cst_250 : f32 to vector<8x1xf32>
    %1116 = arith.subf %1115, %1096 : vector<8x1xf32>
    %1117 = vector.broadcast %1116 : vector<8x1xf32> to vector<8x32xf32>
    %1118 = arith.mulf %1117, %1040 : vector<8x32xf32>
    %1119 = arith.addf %1114, %1118 : vector<8x32xf32>
    %1120 = vector.broadcast %1096 : vector<8x1xf32> to vector<8x32xf32>
    %1121 = arith.mulf %1120, %1109 : vector<8x32xf32>
    %cst_251 = arith.constant 1.000000e+00 : f32
    %1122 = vector.broadcast %cst_251 : f32 to vector<8x1xf32>
    %1123 = arith.subf %1122, %1096 : vector<8x1xf32>
    %1124 = vector.broadcast %1123 : vector<8x1xf32> to vector<8x32xf32>
    %1125 = arith.mulf %1124, %1047 : vector<8x32xf32>
    %1126 = arith.addf %1121, %1125 : vector<8x32xf32>
    %1127 = arith.index_cast %1084 : i32 to index
    %c0_252 = arith.constant 0 : index
    %1128 = vector.load %arg1[%1127, %c0_252] : memref<64x1xf32, #tpu.memory_space<vmem>>, vector<8x1xf32>
    %1129 = vector.extract_strided_slice %1094 {offsets = [0, 0], sizes = [8, 96], strides = [1, 1]} : vector<8x128xf32> to vector<8x96xf32>
    %1130 = arith.negf %1129 : vector<8x96xf32>
    %1131 = math.exp %1130 : vector<8x96xf32>
    %cst_253 = arith.constant 1.000000e+00 : f32
    %1132 = vector.broadcast %cst_253 : f32 to vector<8x96xf32>
    %1133 = arith.addf %1132, %1131 : vector<8x96xf32>
    %1134 = arith.divf %1132, %1133 : vector<8x96xf32>
    %1135 = vector.extract_strided_slice %1094 {offsets = [0, 96], sizes = [8, 32], strides = [1, 1]} : vector<8x128xf32> to vector<8x32xf32>
    %1136 = math.tanh %1135 : vector<8x32xf32>
    %1137 = vector.extract_strided_slice %1134 {offsets = [0, 32], sizes = [8, 32], strides = [1, 1]} : vector<8x96xf32> to vector<8x32xf32>
    %1138 = arith.mulf %1137, %1079 : vector<8x32xf32>
    %1139 = vector.extract_strided_slice %1134 {offsets = [0, 0], sizes = [8, 32], strides = [1, 1]} : vector<8x96xf32> to vector<8x32xf32>
    %1140 = arith.mulf %1139, %1136 : vector<8x32xf32>
    %1141 = arith.addf %1138, %1140 : vector<8x32xf32>
    %1142 = vector.extract_strided_slice %1134 {offsets = [0, 64], sizes = [8, 32], strides = [1, 1]} : vector<8x96xf32> to vector<8x32xf32>
    %1143 = math.tanh %1141 : vector<8x32xf32>
    %1144 = arith.mulf %1142, %1143 : vector<8x32xf32>
    %1145 = vector.broadcast %1128 : vector<8x1xf32> to vector<8x32xf32>
    %1146 = arith.mulf %1145, %1144 : vector<8x32xf32>
    %cst_254 = arith.constant 1.000000e+00 : f32
    %1147 = vector.broadcast %cst_254 : f32 to vector<8x1xf32>
    %1148 = arith.subf %1147, %1128 : vector<8x1xf32>
    %1149 = vector.broadcast %1148 : vector<8x1xf32> to vector<8x32xf32>
    %1150 = arith.mulf %1149, %1072 : vector<8x32xf32>
    %1151 = arith.addf %1146, %1150 : vector<8x32xf32>
    %1152 = vector.broadcast %1128 : vector<8x1xf32> to vector<8x32xf32>
    %1153 = arith.mulf %1152, %1141 : vector<8x32xf32>
    %cst_255 = arith.constant 1.000000e+00 : f32
    %1154 = vector.broadcast %cst_255 : f32 to vector<8x1xf32>
    %1155 = arith.subf %1154, %1128 : vector<8x1xf32>
    %1156 = vector.broadcast %1155 : vector<8x1xf32> to vector<8x32xf32>
    %1157 = arith.mulf %1156, %1079 : vector<8x32xf32>
    %1158 = arith.addf %1153, %1157 : vector<8x32xf32>
    %c6_i32_256 = arith.constant 6 : i32
    %c8_i32_257 = arith.constant 8 : i32
    %1159 = arith.muli %c6_i32_256, %c8_i32_257 : i32
    %1160 = tpu.assume_multiple %1159, 8 : i32
    %c7_i32_258 = arith.constant 7 : i32
    %1161 = arith.subi %c7_i32_258, %c6_i32_256 : i32
    %c8_i32_259 = arith.constant 8 : i32
    %1162 = arith.muli %1161, %c8_i32_259 : i32
    %1163 = tpu.assume_multiple %1162, 8 : i32
    %1164 = arith.index_cast %1160 : i32 to index
    %c0_260 = arith.constant 0 : index
    %1165 = vector.load %arg13[%1164, %c0_260] : memref<64x256xf32, #tpu.memory_space<vmem>>, vector<8x128xf32>
    %1166 = arith.truncf %1119 : vector<8x32xf32> to vector<8x32xbf16>
    %cst_261 = arith.constant dense<0.000000e+00> : vector<8x128xf32>
    %1167 = tpu.matmul %1166, %682, %cst_261 {dimension_numbers = #tpu.dot_dimension_numbers<[1], [0], [0], [1], [0, 0, 1, 1], [], []>} : vector<8x32xbf16>, vector<32x128xbf16>, vector<8x128xf32> -> vector<8x128xf32>
    %1168 = arith.addf %1165, %1167 : vector<8x128xf32>
    %1169 = arith.index_cast %1163 : i32 to index
    %c128_262 = arith.constant 128 : index
    %1170 = vector.load %arg13[%1169, %c128_262] : memref<64x256xf32, #tpu.memory_space<vmem>>, vector<8x128xf32>
    %1171 = arith.truncf %1151 : vector<8x32xf32> to vector<8x32xbf16>
    %cst_263 = arith.constant dense<0.000000e+00> : vector<8x128xf32>
    %1172 = tpu.matmul %1171, %683, %cst_263 {dimension_numbers = #tpu.dot_dimension_numbers<[1], [0], [0], [1], [0, 0, 1, 1], [], []>} : vector<8x32xbf16>, vector<32x128xbf16>, vector<8x128xf32> -> vector<8x128xf32>
    %1173 = arith.addf %1170, %1172 : vector<8x128xf32>
    %1174 = arith.index_cast %1160 : i32 to index
    %c0_264 = arith.constant 0 : index
    %1175 = vector.load %arg1[%1174, %c0_264] : memref<64x1xf32, #tpu.memory_space<vmem>>, vector<8x1xf32>
    %1176 = vector.extract_strided_slice %1168 {offsets = [0, 0], sizes = [8, 96], strides = [1, 1]} : vector<8x128xf32> to vector<8x96xf32>
    %1177 = arith.negf %1176 : vector<8x96xf32>
    %1178 = math.exp %1177 : vector<8x96xf32>
    %cst_265 = arith.constant 1.000000e+00 : f32
    %1179 = vector.broadcast %cst_265 : f32 to vector<8x96xf32>
    %1180 = arith.addf %1179, %1178 : vector<8x96xf32>
    %1181 = arith.divf %1179, %1180 : vector<8x96xf32>
    %1182 = vector.extract_strided_slice %1168 {offsets = [0, 96], sizes = [8, 32], strides = [1, 1]} : vector<8x128xf32> to vector<8x32xf32>
    %1183 = math.tanh %1182 : vector<8x32xf32>
    %1184 = vector.extract_strided_slice %1181 {offsets = [0, 32], sizes = [8, 32], strides = [1, 1]} : vector<8x96xf32> to vector<8x32xf32>
    %1185 = arith.mulf %1184, %1126 : vector<8x32xf32>
    %1186 = vector.extract_strided_slice %1181 {offsets = [0, 0], sizes = [8, 32], strides = [1, 1]} : vector<8x96xf32> to vector<8x32xf32>
    %1187 = arith.mulf %1186, %1183 : vector<8x32xf32>
    %1188 = arith.addf %1185, %1187 : vector<8x32xf32>
    %1189 = vector.extract_strided_slice %1181 {offsets = [0, 64], sizes = [8, 32], strides = [1, 1]} : vector<8x96xf32> to vector<8x32xf32>
    %1190 = math.tanh %1188 : vector<8x32xf32>
    %1191 = arith.mulf %1189, %1190 : vector<8x32xf32>
    %1192 = vector.broadcast %1175 : vector<8x1xf32> to vector<8x32xf32>
    %1193 = arith.mulf %1192, %1191 : vector<8x32xf32>
    %cst_266 = arith.constant 1.000000e+00 : f32
    %1194 = vector.broadcast %cst_266 : f32 to vector<8x1xf32>
    %1195 = arith.subf %1194, %1175 : vector<8x1xf32>
    %1196 = vector.broadcast %1195 : vector<8x1xf32> to vector<8x32xf32>
    %1197 = arith.mulf %1196, %1119 : vector<8x32xf32>
    %1198 = arith.addf %1193, %1197 : vector<8x32xf32>
    %1199 = vector.broadcast %1175 : vector<8x1xf32> to vector<8x32xf32>
    %1200 = arith.mulf %1199, %1188 : vector<8x32xf32>
    %cst_267 = arith.constant 1.000000e+00 : f32
    %1201 = vector.broadcast %cst_267 : f32 to vector<8x1xf32>
    %1202 = arith.subf %1201, %1175 : vector<8x1xf32>
    %1203 = vector.broadcast %1202 : vector<8x1xf32> to vector<8x32xf32>
    %1204 = arith.mulf %1203, %1126 : vector<8x32xf32>
    %1205 = arith.addf %1200, %1204 : vector<8x32xf32>
    %1206 = arith.index_cast %1163 : i32 to index
    %c0_268 = arith.constant 0 : index
    %1207 = vector.load %arg1[%1206, %c0_268] : memref<64x1xf32, #tpu.memory_space<vmem>>, vector<8x1xf32>
    %1208 = vector.extract_strided_slice %1173 {offsets = [0, 0], sizes = [8, 96], strides = [1, 1]} : vector<8x128xf32> to vector<8x96xf32>
    %1209 = arith.negf %1208 : vector<8x96xf32>
    %1210 = math.exp %1209 : vector<8x96xf32>
    %cst_269 = arith.constant 1.000000e+00 : f32
    %1211 = vector.broadcast %cst_269 : f32 to vector<8x96xf32>
    %1212 = arith.addf %1211, %1210 : vector<8x96xf32>
    %1213 = arith.divf %1211, %1212 : vector<8x96xf32>
    %1214 = vector.extract_strided_slice %1173 {offsets = [0, 96], sizes = [8, 32], strides = [1, 1]} : vector<8x128xf32> to vector<8x32xf32>
    %1215 = math.tanh %1214 : vector<8x32xf32>
    %1216 = vector.extract_strided_slice %1213 {offsets = [0, 32], sizes = [8, 32], strides = [1, 1]} : vector<8x96xf32> to vector<8x32xf32>
    %1217 = arith.mulf %1216, %1158 : vector<8x32xf32>
    %1218 = vector.extract_strided_slice %1213 {offsets = [0, 0], sizes = [8, 32], strides = [1, 1]} : vector<8x96xf32> to vector<8x32xf32>
    %1219 = arith.mulf %1218, %1215 : vector<8x32xf32>
    %1220 = arith.addf %1217, %1219 : vector<8x32xf32>
    %1221 = vector.extract_strided_slice %1213 {offsets = [0, 64], sizes = [8, 32], strides = [1, 1]} : vector<8x96xf32> to vector<8x32xf32>
    %1222 = math.tanh %1220 : vector<8x32xf32>
    %1223 = arith.mulf %1221, %1222 : vector<8x32xf32>
    %1224 = vector.broadcast %1207 : vector<8x1xf32> to vector<8x32xf32>
    %1225 = arith.mulf %1224, %1223 : vector<8x32xf32>
    %cst_270 = arith.constant 1.000000e+00 : f32
    %1226 = vector.broadcast %cst_270 : f32 to vector<8x1xf32>
    %1227 = arith.subf %1226, %1207 : vector<8x1xf32>
    %1228 = vector.broadcast %1227 : vector<8x1xf32> to vector<8x32xf32>
    %1229 = arith.mulf %1228, %1151 : vector<8x32xf32>
    %1230 = arith.addf %1225, %1229 : vector<8x32xf32>
    %1231 = vector.broadcast %1207 : vector<8x1xf32> to vector<8x32xf32>
    %1232 = arith.mulf %1231, %1220 : vector<8x32xf32>
    %cst_271 = arith.constant 1.000000e+00 : f32
    %1233 = vector.broadcast %cst_271 : f32 to vector<8x1xf32>
    %1234 = arith.subf %1233, %1207 : vector<8x1xf32>
    %1235 = vector.broadcast %1234 : vector<8x1xf32> to vector<8x32xf32>
    %1236 = arith.mulf %1235, %1158 : vector<8x32xf32>
    %1237 = arith.addf %1232, %1236 : vector<8x32xf32>
    %c7_i32_272 = arith.constant 7 : i32
    %c8_i32_273 = arith.constant 8 : i32
    %1238 = arith.muli %c7_i32_272, %c8_i32_273 : i32
    %1239 = tpu.assume_multiple %1238, 8 : i32
    %c7_i32_274 = arith.constant 7 : i32
    %1240 = arith.subi %c7_i32_274, %c7_i32_272 : i32
    %c8_i32_275 = arith.constant 8 : i32
    %1241 = arith.muli %1240, %c8_i32_275 : i32
    %1242 = tpu.assume_multiple %1241, 8 : i32
    %1243 = arith.index_cast %1239 : i32 to index
    %c0_276 = arith.constant 0 : index
    %1244 = vector.load %arg13[%1243, %c0_276] : memref<64x256xf32, #tpu.memory_space<vmem>>, vector<8x128xf32>
    %1245 = arith.truncf %1198 : vector<8x32xf32> to vector<8x32xbf16>
    %cst_277 = arith.constant dense<0.000000e+00> : vector<8x128xf32>
    %1246 = tpu.matmul %1245, %682, %cst_277 {dimension_numbers = #tpu.dot_dimension_numbers<[1], [0], [0], [1], [0, 0, 1, 1], [], []>} : vector<8x32xbf16>, vector<32x128xbf16>, vector<8x128xf32> -> vector<8x128xf32>
    %1247 = arith.addf %1244, %1246 : vector<8x128xf32>
    %1248 = arith.index_cast %1242 : i32 to index
    %c128_278 = arith.constant 128 : index
    %1249 = vector.load %arg13[%1248, %c128_278] : memref<64x256xf32, #tpu.memory_space<vmem>>, vector<8x128xf32>
    %1250 = arith.truncf %1230 : vector<8x32xf32> to vector<8x32xbf16>
    %cst_279 = arith.constant dense<0.000000e+00> : vector<8x128xf32>
    %1251 = tpu.matmul %1250, %683, %cst_279 {dimension_numbers = #tpu.dot_dimension_numbers<[1], [0], [0], [1], [0, 0, 1, 1], [], []>} : vector<8x32xbf16>, vector<32x128xbf16>, vector<8x128xf32> -> vector<8x128xf32>
    %1252 = arith.addf %1249, %1251 : vector<8x128xf32>
    %1253 = arith.index_cast %1239 : i32 to index
    %c0_280 = arith.constant 0 : index
    %1254 = vector.load %arg1[%1253, %c0_280] : memref<64x1xf32, #tpu.memory_space<vmem>>, vector<8x1xf32>
    %1255 = vector.extract_strided_slice %1247 {offsets = [0, 0], sizes = [8, 96], strides = [1, 1]} : vector<8x128xf32> to vector<8x96xf32>
    %1256 = arith.negf %1255 : vector<8x96xf32>
    %1257 = math.exp %1256 : vector<8x96xf32>
    %cst_281 = arith.constant 1.000000e+00 : f32
    %1258 = vector.broadcast %cst_281 : f32 to vector<8x96xf32>
    %1259 = arith.addf %1258, %1257 : vector<8x96xf32>
    %1260 = arith.divf %1258, %1259 : vector<8x96xf32>
    %1261 = vector.extract_strided_slice %1247 {offsets = [0, 96], sizes = [8, 32], strides = [1, 1]} : vector<8x128xf32> to vector<8x32xf32>
    %1262 = math.tanh %1261 : vector<8x32xf32>
    %1263 = vector.extract_strided_slice %1260 {offsets = [0, 32], sizes = [8, 32], strides = [1, 1]} : vector<8x96xf32> to vector<8x32xf32>
    %1264 = arith.mulf %1263, %1205 : vector<8x32xf32>
    %1265 = vector.extract_strided_slice %1260 {offsets = [0, 0], sizes = [8, 32], strides = [1, 1]} : vector<8x96xf32> to vector<8x32xf32>
    %1266 = arith.mulf %1265, %1262 : vector<8x32xf32>
    %1267 = arith.addf %1264, %1266 : vector<8x32xf32>
    %1268 = vector.extract_strided_slice %1260 {offsets = [0, 64], sizes = [8, 32], strides = [1, 1]} : vector<8x96xf32> to vector<8x32xf32>
    %1269 = math.tanh %1267 : vector<8x32xf32>
    %1270 = arith.mulf %1268, %1269 : vector<8x32xf32>
    %1271 = vector.broadcast %1254 : vector<8x1xf32> to vector<8x32xf32>
    %1272 = arith.mulf %1271, %1270 : vector<8x32xf32>
    %cst_282 = arith.constant 1.000000e+00 : f32
    %1273 = vector.broadcast %cst_282 : f32 to vector<8x1xf32>
    %1274 = arith.subf %1273, %1254 : vector<8x1xf32>
    %1275 = vector.broadcast %1274 : vector<8x1xf32> to vector<8x32xf32>
    %1276 = arith.mulf %1275, %1198 : vector<8x32xf32>
    %1277 = arith.addf %1272, %1276 : vector<8x32xf32>
    %1278 = vector.broadcast %1254 : vector<8x1xf32> to vector<8x32xf32>
    %1279 = arith.mulf %1278, %1267 : vector<8x32xf32>
    %cst_283 = arith.constant 1.000000e+00 : f32
    %1280 = vector.broadcast %cst_283 : f32 to vector<8x1xf32>
    %1281 = arith.subf %1280, %1254 : vector<8x1xf32>
    %1282 = vector.broadcast %1281 : vector<8x1xf32> to vector<8x32xf32>
    %1283 = arith.mulf %1282, %1205 : vector<8x32xf32>
    %1284 = arith.addf %1279, %1283 : vector<8x32xf32>
    %1285 = arith.index_cast %1242 : i32 to index
    %c0_284 = arith.constant 0 : index
    %1286 = vector.load %arg1[%1285, %c0_284] : memref<64x1xf32, #tpu.memory_space<vmem>>, vector<8x1xf32>
    %1287 = vector.extract_strided_slice %1252 {offsets = [0, 0], sizes = [8, 96], strides = [1, 1]} : vector<8x128xf32> to vector<8x96xf32>
    %1288 = arith.negf %1287 : vector<8x96xf32>
    %1289 = math.exp %1288 : vector<8x96xf32>
    %cst_285 = arith.constant 1.000000e+00 : f32
    %1290 = vector.broadcast %cst_285 : f32 to vector<8x96xf32>
    %1291 = arith.addf %1290, %1289 : vector<8x96xf32>
    %1292 = arith.divf %1290, %1291 : vector<8x96xf32>
    %1293 = vector.extract_strided_slice %1252 {offsets = [0, 96], sizes = [8, 32], strides = [1, 1]} : vector<8x128xf32> to vector<8x32xf32>
    %1294 = math.tanh %1293 : vector<8x32xf32>
    %1295 = vector.extract_strided_slice %1292 {offsets = [0, 32], sizes = [8, 32], strides = [1, 1]} : vector<8x96xf32> to vector<8x32xf32>
    %1296 = arith.mulf %1295, %1237 : vector<8x32xf32>
    %1297 = vector.extract_strided_slice %1292 {offsets = [0, 0], sizes = [8, 32], strides = [1, 1]} : vector<8x96xf32> to vector<8x32xf32>
    %1298 = arith.mulf %1297, %1294 : vector<8x32xf32>
    %1299 = arith.addf %1296, %1298 : vector<8x32xf32>
    %1300 = vector.extract_strided_slice %1292 {offsets = [0, 64], sizes = [8, 32], strides = [1, 1]} : vector<8x96xf32> to vector<8x32xf32>
    %1301 = math.tanh %1299 : vector<8x32xf32>
    %1302 = arith.mulf %1300, %1301 : vector<8x32xf32>
    %1303 = vector.broadcast %1286 : vector<8x1xf32> to vector<8x32xf32>
    %1304 = arith.mulf %1303, %1302 : vector<8x32xf32>
    %cst_286 = arith.constant 1.000000e+00 : f32
    %1305 = vector.broadcast %cst_286 : f32 to vector<8x1xf32>
    %1306 = arith.subf %1305, %1286 : vector<8x1xf32>
    %1307 = vector.broadcast %1306 : vector<8x1xf32> to vector<8x32xf32>
    %1308 = arith.mulf %1307, %1230 : vector<8x32xf32>
    %1309 = arith.addf %1304, %1308 : vector<8x32xf32>
    %1310 = vector.broadcast %1286 : vector<8x1xf32> to vector<8x32xf32>
    %1311 = arith.mulf %1310, %1299 : vector<8x32xf32>
    %cst_287 = arith.constant 1.000000e+00 : f32
    %1312 = vector.broadcast %cst_287 : f32 to vector<8x1xf32>
    %1313 = arith.subf %1312, %1286 : vector<8x1xf32>
    %1314 = vector.broadcast %1313 : vector<8x1xf32> to vector<8x32xf32>
    %1315 = arith.mulf %1314, %1237 : vector<8x32xf32>
    %1316 = arith.addf %1311, %1315 : vector<8x32xf32>
    %c8_i32_288 = arith.constant 8 : i32
    %c0_289 = arith.constant 0 : index
    %c0_290 = arith.constant 0 : index
    %1317 = vector.load %arg15[%c0_289, %c0_290] : memref<8x256xf32, #tpu.memory_space<vmem>>, vector<8x32xf32>
    tpu.vector_store %arg15[%c0_289, %c0_290], %630 {strides = array<i32>} : memref<8x256xf32, #tpu.memory_space<vmem>>, vector<8x32xf32>,
    %c0_291 = arith.constant 0 : index
    %c32_292 = arith.constant 32 : index
    %1318 = vector.load %arg15[%c0_291, %c32_292] : memref<8x256xf32, #tpu.memory_space<vmem>>, vector<8x32xf32>
    tpu.vector_store %arg15[%c0_291, %c32_292], %637 {strides = array<i32>} : memref<8x256xf32, #tpu.memory_space<vmem>>, vector<8x32xf32>,
    %c0_293 = arith.constant 0 : index
    %c64 = arith.constant 64 : index
    %1319 = vector.load %arg15[%c0_293, %c64] : memref<8x256xf32, #tpu.memory_space<vmem>>, vector<8x32xf32>
    tpu.vector_store %arg15[%c0_293, %c64], %1277 {strides = array<i32>} : memref<8x256xf32, #tpu.memory_space<vmem>>, vector<8x32xf32>,
    %c0_294 = arith.constant 0 : index
    %c96 = arith.constant 96 : index
    %1320 = vector.load %arg15[%c0_294, %c96] : memref<8x256xf32, #tpu.memory_space<vmem>>, vector<8x32xf32>
    tpu.vector_store %arg15[%c0_294, %c96], %1284 {strides = array<i32>} : memref<8x256xf32, #tpu.memory_space<vmem>>, vector<8x32xf32>,
    %c0_295 = arith.constant 0 : index
    %c128_296 = arith.constant 128 : index
    %1321 = vector.load %arg15[%c0_295, %c128_296] : memref<8x256xf32, #tpu.memory_space<vmem>>, vector<8x32xf32>
    tpu.vector_store %arg15[%c0_295, %c128_296], %662 {strides = array<i32>} : memref<8x256xf32, #tpu.memory_space<vmem>>, vector<8x32xf32>,
    %c0_297 = arith.constant 0 : index
    %c160 = arith.constant 160 : index
    %1322 = vector.load %arg15[%c0_297, %c160] : memref<8x256xf32, #tpu.memory_space<vmem>>, vector<8x32xf32>
    tpu.vector_store %arg15[%c0_297, %c160], %669 {strides = array<i32>} : memref<8x256xf32, #tpu.memory_space<vmem>>, vector<8x32xf32>,
    %c0_298 = arith.constant 0 : index
    %c192 = arith.constant 192 : index
    %1323 = vector.load %arg15[%c0_298, %c192] : memref<8x256xf32, #tpu.memory_space<vmem>>, vector<8x32xf32>
    tpu.vector_store %arg15[%c0_298, %c192], %1309 {strides = array<i32>} : memref<8x256xf32, #tpu.memory_space<vmem>>, vector<8x32xf32>,
    %c0_299 = arith.constant 0 : index
    %c224 = arith.constant 224 : index
    %1324 = vector.load %arg15[%c0_299, %c224] : memref<8x256xf32, #tpu.memory_space<vmem>>, vector<8x32xf32>
    tpu.vector_store %arg15[%c0_299, %c224], %1316 {strides = array<i32>} : memref<8x256xf32, #tpu.memory_space<vmem>>, vector<8x32xf32>,
    %c0_300 = arith.constant 0 : index
    %c0_301 = arith.constant 0 : index
    %1325 = vector.load %arg15[%c0_300, %c0_301] : memref<8x256xf32, #tpu.memory_space<vmem>>, vector<8x256xf32>
    %1326 = arith.truncf %1325 : vector<8x256xf32> to vector<8x256xbf16>
    %c0_302 = arith.constant 0 : index
    %c0_303 = arith.constant 0 : index
    %1327 = vector.load %arg10[%c0_302, %c0_303] : memref<256x16xbf16, #tpu.memory_space<vmem>>, vector<256x16xbf16>
    %cst_304 = arith.constant dense<0.000000e+00> : vector<8x16xf32>
    %1328 = tpu.matmul %1326, %1327, %cst_304 {dimension_numbers = #tpu.dot_dimension_numbers<[1], [0], [0], [1], [0, 0, 1, 1], [], []>} : vector<8x256xbf16>, vector<256x16xbf16>, vector<8x16xf32> -> vector<8x16xf32>
    %c0_305 = arith.constant 0 : index
    %c0_306 = arith.constant 0 : index
    %1329 = vector.load %arg11[%c0_305, %c0_306] : memref<1x16xf32, #tpu.memory_space<vmem>>, vector<1x16xf32>
    %1330 = vector.broadcast %1329 : vector<1x16xf32> to vector<8x16xf32>
    %1331 = arith.addf %1328, %1330 : vector<8x16xf32>
    %cst_307 = arith.constant 0.000000e+00 : f32
    %1332 = vector.broadcast %cst_307 : f32 to vector<8x16xf32>
    %1333 = arith.maximumf %1331, %1332 : vector<8x16xf32>
    %c0_308 = arith.constant 0 : index
    %c0_309 = arith.constant 0 : index
    %1334 = vector.load %arg12[%c0_308, %c0_309] : memref<8x16xf32, #tpu.memory_space<vmem>>, vector<8x16xf32>
    tpu.vector_store %arg12[%c0_308, %c0_309], %1333 {strides = array<i32>} : memref<8x16xf32, #tpu.memory_space<vmem>>, vector<8x16xf32>,
    return
  }
}

</mosaic_0001>

<llo_original>
// kernel: tpu_custom_call.1
$region0: #{tpu_custom_call.1}
  #allocation0 [shape = 'u32[]', space=smem, size = 0x4, offset = 0x4, fixed_abs, tag = 'smem constant byte address 0x4 - core index']
  #allocation1 [shape = 'u32[144,128]{1,0:T(1,128)}', space=vmem, size = 0x12000, scoped, tag = 'internal scratch']
  #allocation2 [shape = 'f32[64,256]{1,0:T(8,128)}', space=vmem, size = 0x10000, scoped, tag = 'scratch operand']
  #allocation3 [shape = 'f32[64,64]{1,0:T(8,128)}', space=vmem, size = 0x8000, scoped, tag = 'scratch operand']
  #allocation4 [shape = 'f32[8,256]{1,0:T(8,128)}', space=vmem, size = 0x2000, scoped, tag = 'scratch operand']
  %s0 = inlined_call_operand.vmem [shape: bf16[64,32], index: 0, kind: input, shape index: {}]
  %s1 = inlined_call_operand.vmem [shape: f32[64,1], index: 1, kind: input, shape index: {}]
  %s2 = inlined_call_operand.vmem [shape: bf16[32,256], index: 2, kind: input, shape index: {}]
  %s3 = inlined_call_operand.vmem [shape: bf16[32,128], index: 3, kind: input, shape index: {}]
  %s4 = inlined_call_operand.vmem [shape: bf16[32,128], index: 4, kind: input, shape index: {}]
  %s5 = inlined_call_operand.vmem [shape: f32[1,256], index: 5, kind: input, shape index: {}]
  %s6 = inlined_call_operand.vmem [shape: bf16[64,256], index: 6, kind: input, shape index: {}]
  %s7 = inlined_call_operand.vmem [shape: bf16[32,128], index: 7, kind: input, shape index: {}]
  %s8 = inlined_call_operand.vmem [shape: bf16[32,128], index: 8, kind: input, shape index: {}]
  %s9 = inlined_call_operand.vmem [shape: f32[1,256], index: 9, kind: input, shape index: {}]
  %s10 = inlined_call_operand.vmem [shape: bf16[256,16], index: 10, kind: input, shape index: {}]
  %s11 = inlined_call_operand.vmem [shape: f32[1,16], index: 11, kind: input, shape index: {}]
  %s12 = inlined_call_operand.hbm [shape: f32[8,16], index: 12, kind: output, shape index: {}]
  %s13 = sld [smem:[#allocation0]]
  $region58: #{tpu_custom_call.1} parent=0
    _
  %s15 = ssub.s32 1, %s13
  %s16 = scalar_select 0, %s15, %s13
  $region1: #{tpu_custom_call.1} parent=0
    #allocation5 [shape = 'u8[4096]{0}', space=vmem, size = 0x1000, scoped, tag = 'output window, operand 0, single buffered']
    #allocation6 [shape = 's32[1]{0}', space=sflag, size = 0x4, scoped, tag = 'scoped memory for tpu_custom_call.1']
    %17 = vsyncpa [#allocation6], 0
    // Predicated region
    $region2: #{tpu_custom_call.1} parent=1 // pred_check
      _
    $region3: #{tpu_custom_call.1} parent=1 // pred_check_branch
      %19 = sbr.rel (0) target = $region5
    $region4: #{tpu_custom_call.1} parent=1 // pred_region
      _
    $region5: #{tpu_custom_call.1} parent=1 // pred_fallthru
      _
    // Predicated region
    $region6: #{tpu_custom_call.1} parent=1 // pred_check
      _
    $region7: #{tpu_custom_call.1} parent=1 // pred_check_branch
      %21 = sbr.rel (0) target = $region9
    $region8: #{tpu_custom_call.1} parent=1 // pred_region
      _
    $region9: #{tpu_custom_call.1} parent=1 // pred_fallthru
      _
    // Predicated region
    $region10: #{tpu_custom_call.1} parent=1 // pred_check
      _
    $region11: #{tpu_custom_call.1} parent=1 // pred_check_branch
      %23 = sbr.rel (0) target = $region13
    $region12: #{tpu_custom_call.1} parent=1 // pred_region
      _
    $region13: #{tpu_custom_call.1} parent=1 // pred_fallthru
      _
    // Predicated region
    $region14: #{tpu_custom_call.1} parent=1 // pred_check
      _
    $region15: #{tpu_custom_call.1} parent=1 // pred_check_branch
      %25 = sbr.rel (0) target = $region17
    $region16: #{tpu_custom_call.1} parent=1 // pred_region
      _
    $region17: #{tpu_custom_call.1} parent=1 // pred_fallthru
      _
    // Predicated region
    $region18: #{tpu_custom_call.1} parent=1 // pred_check
      _
    $region19: #{tpu_custom_call.1} parent=1 // pred_check_branch
      %27 = sbr.rel (0) target = $region21
    $region20: #{tpu_custom_call.1} parent=1 // pred_region
      _
    $region21: #{tpu_custom_call.1} parent=1 // pred_fallthru
      _
    // Predicated region
    $region22: #{tpu_custom_call.1} parent=1 // pred_check
      _
    $region23: #{tpu_custom_call.1} parent=1 // pred_check_branch
      %29 = sbr.rel (0) target = $region25
    $region24: #{tpu_custom_call.1} parent=1 // pred_region
      _
    $region25: #{tpu_custom_call.1} parent=1 // pred_fallthru
      _
    // Predicated region
    $region26: #{tpu_custom_call.1} parent=1 // pred_check
      _
    $region27: #{tpu_custom_call.1} parent=1 // pred_check_branch
      %31 = sbr.rel (0) target = $region29
    $region28: #{tpu_custom_call.1} parent=1 // pred_region
      _
    $region29: #{tpu_custom_call.1} parent=1 // pred_fallthru
      _
    // Predicated region
    $region30: #{tpu_custom_call.1} parent=1 // pred_check
      _
    $region31: #{tpu_custom_call.1} parent=1 // pred_check_branch
      %33 = sbr.rel (0) target = $region33
    $region32: #{tpu_custom_call.1} parent=1 // pred_region
      _
    $region33: #{tpu_custom_call.1} parent=1 // pred_fallthru
      _
    // Predicated region
    $region34: #{tpu_custom_call.1} parent=1 // pred_check
      _
    $region35: #{tpu_custom_call.1} parent=1 // pred_check_branch
      %35 = sbr.rel (0) target = $region37
    $region36: #{tpu_custom_call.1} parent=1 // pred_region
      _
    $region37: #{tpu_custom_call.1} parent=1 // pred_fallthru
      _
    // Predicated region
    $region38: #{tpu_custom_call.1} parent=1 // pred_check
      _
    $region39: #{tpu_custom_call.1} parent=1 // pred_check_branch
      %37 = sbr.rel (0) target = $region41
    $region40: #{tpu_custom_call.1} parent=1 // pred_region
      _
    $region41: #{tpu_custom_call.1} parent=1 // pred_fallthru
      _
    // Predicated region
    $region42: #{tpu_custom_call.1} parent=1 // pred_check
      _
    $region43: #{tpu_custom_call.1} parent=1 // pred_check_branch
      %39 = sbr.rel (0) target = $region45
    $region44: #{tpu_custom_call.1} parent=1 // pred_region
      _
    $region45: #{tpu_custom_call.1} parent=1 // pred_fallthru
      _
    // Predicated region
    $region46: #{tpu_custom_call.1} parent=1 // pred_check
      _
    $region47: #{tpu_custom_call.1} parent=1 // pred_check_branch
      %41 = sbr.rel (0) target = $region49
    $region48: #{tpu_custom_call.1} parent=1 // pred_region
      _
    $region49: #{tpu_custom_call.1} parent=1 // pred_fallthru
      _
    %v43 = vld [vmem:[%s0] sm:$0xf]
    %v44 = vld [vmem:[%s0 + $0x4] sm:$0xf]
    %v45 = vld [vmem:[%s0 + $0x8] sm:$0xf]
    %v46 = vld [vmem:[%s0 + $0xc] sm:$0xf]
    %v47 = vld [vmem:[%s0 + $0x10] sm:$0xf]
    %v48 = vld [vmem:[%s0 + $0x14] sm:$0xf]
    %v49 = vld [vmem:[%s0 + $0x18] sm:$0xf]
    %v50 = vld [vmem:[%s0 + $0x1c] sm:$0xf]
    %v51 = vld [vmem:[%s2] sm:$0xff]
    %v52 = vld [vmem:[%s2 + $0x8] sm:$0xff]
    %v53 = vld [vmem:[%s2 + $0x10] sm:$0xff]
    %v54 = vld [vmem:[%s2 + $0x18] sm:$0xff]
    %v55 = vld [vmem:[%s5] sm:$0x3]
    %v57 = vlaneseq
    %v58 = vshrl.u32 %v57, 7
    %v59 = vsub.s32 0, %v58
    %v60 = vrot.slane %v55, %v59
    %v61 = vlaneseq
    %v62 = vshrl.u32 %v61, 7
    %v63 = vsub.s32 1, %v62
    %v64 = vrot.slane %v55, %v63
    %v75 = vunpack.c.l.b16 %v43
    %v76 = vunpack.c.l.b16 %v44
    %v77 = vunpack.c.l.b16 %v45
    %v78 = vunpack.c.l.b16 %v46
    %v79 = vunpack.c.l.b16 %v47
    %v80 = vunpack.c.l.b16 %v48
    %v81 = vunpack.c.l.b16 %v49
    %v82 = vunpack.c.l.b16 %v50
    %v83 = vpack.c.b16 %v76, %v75
    %v84 = vpack.c.b16 %v78, %v77
    %v85 = vpack.c.b16 %v80, %v79
    %v86 = vpack.c.b16 %v82, %v81
    %v91 = vunpack.c.l.b16 %v51
    %v92 = vunpack.c.h.b16 %v51
    %v93 = vunpack.c.l.b16 %v52
    %v94 = vunpack.c.h.b16 %v52
    %v95 = vunpack.c.l.b16 %v53
    %v96 = vunpack.c.h.b16 %v53
    %v97 = vunpack.c.l.b16 %v54
    %v98 = vunpack.c.h.b16 %v54
    %v99 = vpack.c.b16 %v93, %v91
    %v100 = vpack.c.b16 %v94, %v92
    %v101 = vpack.c.b16 %v97, %v95
    %v102 = vpack.c.b16 %v98, %v96
    %vm107 = vcmask 261120
    %v109 = vsel %vm107, %v83, 0
    %v112 = vsel %vm107, %v84, 0
    %v115 = vsel %vm107, %v85, 0
    %v118 = vsel %vm107, %v86, 0
    %120 = vmatprep.subr.bf16.mxu0 0
    %121 = vmatpush1.bf16.msra.mxu0 0
    %122 = vmatprep.subr.bf16.mxu0 0
    %123 = vmatpush1.bf16.msra.mxu0 0
    %124 = vmatprep.subr.bf16.mxu0 0
    %125 = vmatpush1.bf16.msra.mxu0 0
    %126 = vmatprep.subr.bf16.mxu0 0
    %127 = vmatpush1.bf16.msra.mxu0 0
    %128 = vmatprep.subr.bf16.mxu0 0
    %129 = vmatpush1.bf16.msra.mxu0 0
    %130 = vmatprep.subr.bf16.mxu0 0
    %131 = vmatpush1.bf16.msra.mxu0 0
    %132 = vmatprep.subr.bf16.mxu0 %v102
    %133 = vmatpush1.bf16.msra.mxu0 %v101
    %134 = vmatprep.subr.bf16.mxu0 %v100
    %135 = vmatpush1.bf16.msra.mxu0 %v99
    %136 = vmatprep.subr.bf16.mxu0 0
    %137 = vmatpush2.bf16.msra.mxu0 0
    %138 = vmatprep.subr.bf16.mxu0 0
    %139 = vmatpush2.bf16.msra.mxu0 0
    %140 = vmatprep.subr.bf16.mxu0 0
    %141 = vmatpush2.bf16.msra.mxu0 0
    %142 = vmatprep.subr.bf16.mxu0 0
    %143 = vmatpush2.bf16.msra.mxu0 0
    %144 = vmatprep.subr.bf16.mxu0 0
    %145 = vmatpush2.bf16.msra.mxu0 0
    %146 = vmatprep.subr.bf16.mxu0 0
    %147 = vmatpush2.bf16.msra.mxu0 0
    %148 = vmatprep.subr.bf16.mxu0 0
    %149 = vmatpush2.bf16.msra.mxu0 0
    %150 = vmatprep.subr.bf16.mxu0 0
    %151 = vmatpush2.bf16.msra.mxu0 0
    %152 = vmatprep.mubr.bf16.mxu0 0
    %153 = vmatmul.mubr.bf16.gmra.mxu0 %v109
    %v154 = vpop.f32.mrf.mxu0
    %v155 = vadd.f32 %v60, %v154
    %v156 = vpop.f32.mrf.mxu0
    %v157 = vadd.f32 %v64, %v156
    %v158 = vpop.f32.mrf.mxu0
    %v159 = vadd.f32 %v60, %v158
    %v160 = vpop.f32.mrf.mxu0
    %v161 = vadd.f32 %v64, %v160
    %162 = vmatprep.mubr.bf16.mxu0 0
    %163 = vmatmul.mubr.bf16.gmra.mxu0 %v112
    %v164 = vpop.f32.mrf.mxu0
    %v165 = vadd.f32 %v60, %v164
    %v166 = vpop.f32.mrf.mxu0
    %v167 = vadd.f32 %v64, %v166
    %v168 = vpop.f32.mrf.mxu0
    %v169 = vadd.f32 %v60, %v168
    %v170 = vpop.f32.mrf.mxu0
    %v171 = vadd.f32 %v64, %v170
    %172 = vmatprep.mubr.bf16.mxu0 0
    %173 = vmatmul.mubr.bf16.gmra.mxu0 %v115
    %v174 = vpop.f32.mrf.mxu0
    %v175 = vadd.f32 %v60, %v174
    %v176 = vpop.f32.mrf.mxu0
    %v177 = vadd.f32 %v64, %v176
    %v178 = vpop.f32.mrf.mxu0
    %v179 = vadd.f32 %v60, %v178
    %v180 = vpop.f32.mrf.mxu0
    %v181 = vadd.f32 %v64, %v180
    %182 = vmatprep.mubr.bf16.mxu0 0
    %183 = vmatmul.mubr.bf16.gmra.mxu0 %v118
    %v184 = vpop.f32.mrf.mxu0
    %v185 = vadd.f32 %v60, %v184
    %v186 = vpop.f32.mrf.mxu0
    %v187 = vadd.f32 %v64, %v186
    %v188 = vpop.f32.mrf.mxu0
    %v189 = vadd.f32 %v60, %v188
    %v190 = vpop.f32.mrf.mxu0
    %v191 = vadd.f32 %v64, %v190
    %192 = vdwg.mxu0
    %193 = vst [vmem:[#allocation2] sm:$0xff] %v155
    %194 = vst [vmem:[#allocation2 + $0x8] sm:$0xff] %v157
    %195 = vst [vmem:[#allocation2 + $0x10] sm:$0xff] %v159
    %196 = vst [vmem:[#allocation2 + $0x18] sm:$0xff] %v161
    %197 = vst [vmem:[#allocation2 + $0x20] sm:$0xff] %v165
    %198 = vst [vmem:[#allocation2 + $0x28] sm:$0xff] %v167
    %199 = vst [vmem:[#allocation2 + $0x30] sm:$0xff] %v169
    %200 = vst [vmem:[#allocation2 + $0x38] sm:$0xff] %v171
    %201 = vst [vmem:[#allocation2 + $0x40] sm:$0xff] %v175
    %202 = vst [vmem:[#allocation2 + $0x48] sm:$0xff] %v177
    %203 = vst [vmem:[#allocation2 + $0x50] sm:$0xff] %v179
    %204 = vst [vmem:[#allocation2 + $0x58] sm:$0xff] %v181
    %205 = vst [vmem:[#allocation2 + $0x60] sm:$0xff] %v185
    %206 = vst [vmem:[#allocation2 + $0x68] sm:$0xff] %v187
    %207 = vst [vmem:[#allocation2 + $0x70] sm:$0xff] %v189
    %208 = vst [vmem:[#allocation2 + $0x78] sm:$0xff] %v191
    %v209 = vld [vmem:[%s3] sm:$0xf]
    %v210 = vld [vmem:[%s3 + $0x4] sm:$0xf]
    %v211 = vld [vmem:[%s3 + $0x8] sm:$0xf]
    %v212 = vld [vmem:[%s3 + $0xc] sm:$0xf]
    %v213 = vld [vmem:[%s4] sm:$0xf]
    %v214 = vld [vmem:[%s4 + $0x4] sm:$0xf]
    %v215 = vld [vmem:[%s4 + $0x8] sm:$0xf]
    %v216 = vld [vmem:[%s4 + $0xc] sm:$0xf]
    %s217 = smul.u32 0, 2
    %s218 = smul.addr %s217, 8
    %s219 = scalar_lea.vmem [#allocation2], %s218
    %v220 = vld [vmem:[%s219] sm:$0xff]
    %v225 = vunpack.c.l.b16 %v209
    %v226 = vunpack.c.l.b16 %v210
    %v227 = vunpack.c.l.b16 %v211
    %v228 = vunpack.c.l.b16 %v212
    %v229 = vpack.c.b16 %v226, %v225
    %v230 = vpack.c.b16 %v228, %v227
    %v234 = vsel %vm107, 0, 0
    %236 = vmatprep.subr.bf16.mxu0 0
    %237 = vmatpush1.bf16.msra.mxu0 0
    %238 = vmatprep.subr.bf16.mxu0 0
    %239 = vmatpush1.bf16.msra.mxu0 0
    %240 = vmatprep.subr.bf16.mxu0 0
    %241 = vmatpush1.bf16.msra.mxu0 0
    %242 = vmatprep.subr.bf16.mxu0 0
    %243 = vmatpush1.bf16.msra.mxu0 0
    %244 = vmatprep.subr.bf16.mxu0 0
    %245 = vmatpush1.bf16.msra.mxu0 0
    %246 = vmatprep.subr.bf16.mxu0 0
    %247 = vmatpush1.bf16.msra.mxu0 0
    %248 = vmatprep.subr.bf16.mxu0 0
    %249 = vmatpush1.bf16.msra.mxu0 %v230
    %250 = vmatprep.subr.bf16.mxu0 0
    %251 = vmatpush1.bf16.msra.mxu0 %v229
    %252 = vmatprep.subr.bf16.mxu0 0
    %253 = vmatpush2.bf16.msra.mxu0 0
    %254 = vmatprep.subr.bf16.mxu0 0
    %255 = vmatpush2.bf16.msra.mxu0 0
    %256 = vmatprep.subr.bf16.mxu0 0
    %257 = vmatpush2.bf16.msra.mxu0 0
    %258 = vmatprep.subr.bf16.mxu0 0
    %259 = vmatpush2.bf16.msra.mxu0 0
    %260 = vmatprep.subr.bf16.mxu0 0
    %261 = vmatpush2.bf16.msra.mxu0 0
    %262 = vmatprep.subr.bf16.mxu0 0
    %263 = vmatpush2.bf16.msra.mxu0 0
    %264 = vmatprep.subr.bf16.mxu0 0
    %265 = vmatpush2.bf16.msra.mxu0 0
    %266 = vmatprep.subr.bf16.mxu0 0
    %267 = vmatpush2.bf16.msra.mxu0 0
    %268 = vmatprep.mubr.bf16.mxu0 0
    %269 = vmatmul.mubr.bf16.gmra.mxu0 %v234
    %v270 = vpop.f32.mrf.mxu0
    %v271 = vadd.f32 0.0, %v270
    %v272 = vpop.f32.mrf.mxu0
    %v273 = vpop.f32.mrf.mxu0
    %v274 = vpop.f32.mrf.mxu0
    %275 = vdwg.mxu0
    %v276 = vadd.f32 %v220, %v271
    %s277 = smul.u32 7, 2
    %s278 = smul.addr %s277, 8
    %s279 = scalar_lea.vmem [#allocation2], %s278
    %v280 = vld [vmem:[%s279 + $0x8] sm:$0xff]
    %v285 = vunpack.c.l.b16 %v213
    %v286 = vunpack.c.l.b16 %v214
    %v287 = vunpack.c.l.b16 %v215
    %v288 = vunpack.c.l.b16 %v216
    %v289 = vpack.c.b16 %v286, %v285
    %v290 = vpack.c.b16 %v288, %v287
    %293 = vmatprep.subr.bf16.mxu0 0
    %294 = vmatpush1.bf16.msra.mxu0 0
    %295 = vmatprep.subr.bf16.mxu0 0
    %296 = vmatpush1.bf16.msra.mxu0 0
    %297 = vmatprep.subr.bf16.mxu0 0
    %298 = vmatpush1.bf16.msra.mxu0 0
    %299 = vmatprep.subr.bf16.mxu0 0
    %300 = vmatpush1.bf16.msra.mxu0 0
    %301 = vmatprep.subr.bf16.mxu0 0
    %302 = vmatpush1.bf16.msra.mxu0 0
    %303 = vmatprep.subr.bf16.mxu0 0
    %304 = vmatpush1.bf16.msra.mxu0 0
    %305 = vmatprep.subr.bf16.mxu0 0
    %306 = vmatpush1.bf16.msra.mxu0 %v290
    %307 = vmatprep.subr.bf16.mxu0 0
    %308 = vmatpush1.bf16.msra.mxu0 %v289
    %309 = vmatprep.subr.bf16.mxu0 0
    %310 = vmatpush2.bf16.msra.mxu0 0
    %311 = vmatprep.subr.bf16.mxu0 0
    %312 = vmatpush2.bf16.msra.mxu0 0
    %313 = vmatprep.subr.bf16.mxu0 0
    %314 = vmatpush2.bf16.msra.mxu0 0
    %315 = vmatprep.subr.bf16.mxu0 0
    %316 = vmatpush2.bf16.msra.mxu0 0
    %317 = vmatprep.subr.bf16.mxu0 0
    %318 = vmatpush2.bf16.msra.mxu0 0
    %319 = vmatprep.subr.bf16.mxu0 0
    %320 = vmatpush2.bf16.msra.mxu0 0
    %321 = vmatprep.subr.bf16.mxu0 0
    %322 = vmatpush2.bf16.msra.mxu0 0
    %323 = vmatprep.subr.bf16.mxu0 0
    %324 = vmatpush2.bf16.msra.mxu0 0
    %325 = vmatprep.mubr.bf16.mxu0 0
    %326 = vmatmul.mubr.bf16.gmra.mxu0 %v234
    %v327 = vpop.f32.mrf.mxu0
    %v328 = vadd.f32 0.0, %v327
    %v329 = vpop.f32.mrf.mxu0
    %v330 = vpop.f32.mrf.mxu0
    %v331 = vpop.f32.mrf.mxu0
    %332 = vdwg.mxu0
    %v333 = vadd.f32 %v280, %v328
    %v334 = vld [vmem:[%s1] sm:$0xff]
    %v335 = vxor.u32 %v276, 2147483648
    %v336 = vmul.f32 %v335, 1.442695
    %v337 = vpow.pop %v336
    %v338 = vadd.f32 %v337, 1.0
    %v339 = vrcp.pop %v338
    %v340 = vmul.f32 1.0, %v339
    %v341 = vtanh.pop %v276
    %v342 = vmul.f32 %v340, 0.0
    %344 = vrot.lane.b32.xlu0 %v341, 32
    %v345 = vpop.permute.xlu0 %344
    %v347 = vmul.f32 %v340, %v345
    %349 = vrot.lane.b32.xlu0 %v347, 32
    %v350 = vpop.permute.xlu0 %349
    %v352 = vadd.f32 %v342, %v350
    %v353 = vtanh.pop %v352
    %355 = vrot.lane.b32.xlu0 %v353, 32
    %v356 = vpop.permute.xlu0 %355
    %v358 = vmul.f32 %v340, %v356
    %360 = vset.pattern.permute.xlu0 0
    %361 = vperm.xlu0 %360, %v334
    %v362 = vpop.permute.xlu0 %361
    %v364 = vmul.f32 %v362, %v358
    %v365 = vsub.f32 1.0, %v334
    %367 = vset.pattern.permute.xlu0 0
    %368 = vperm.xlu0 %367, %v365
    %v369 = vpop.permute.xlu0 %368
    %v371 = vmul.f32 %v369, 0.0
    %v372 = vadd.f32 %v364, %v371
    %v373 = vmul.f32 %v362, %v352
    %v374 = vadd.f32 %v373, %v371
    %s375 = scalar_lea.vmem %s1, 56
    %v376 = vld [vmem:[%s375] sm:$0xff]
    %v377 = vxor.u32 %v333, 2147483648
    %v378 = vmul.f32 %v377, 1.442695
    %v379 = vpow.pop %v378
    %v380 = vadd.f32 %v379, 1.0
    %v381 = vrcp.pop %v380
    %v382 = vmul.f32 1.0, %v381
    %v383 = vtanh.pop %v333
    %v384 = vmul.f32 %v382, 0.0
    %386 = vrot.lane.b32.xlu0 %v383, 32
    %v387 = vpop.permute.xlu0 %386
    %v389 = vmul.f32 %v382, %v387
    %391 = vrot.lane.b32.xlu0 %v389, 32
    %v392 = vpop.permute.xlu0 %391
    %v394 = vadd.f32 %v384, %v392
    %v395 = vtanh.pop %v394
    %397 = vrot.lane.b32.xlu0 %v395, 32
    %v398 = vpop.permute.xlu0 %397
    %v400 = vmul.f32 %v382, %v398
    %402 = vset.pattern.permute.xlu0 0
    %403 = vperm.xlu0 %402, %v376
    %v404 = vpop.permute.xlu0 %403
    %v406 = vmul.f32 %v404, %v400
    %v407 = vsub.f32 1.0, %v376
    %409 = vset.pattern.permute.xlu0 0
    %410 = vperm.xlu0 %409, %v407
    %v411 = vpop.permute.xlu0 %410
    %v413 = vmul.f32 %v411, 0.0
    %v414 = vadd.f32 %v406, %v413
    %v415 = vmul.f32 %v404, %v394
    %v416 = vadd.f32 %v415, %v413
    %418 = vrot.lane.b32.xlu0 %v372, 64
    %v419 = vpop.permute.xlu0 %418
    %421 = vst.msk [vmem:[#allocation3] sm:$0xff] %vm107, %v419
    %423 = vrot.lane.b32.xlu0 %v414, 96
    %v424 = vpop.permute.xlu0 %423
    %s426 = scalar_lea.vmem [#allocation3], 56
    %vm427 = vcmask 523520
    %428 = vst.msk [vmem:[%s426] sm:$0xff] %vm427, %v424
    %s429 = smul.u32 1, 2
    %s430 = smul.addr %s429, 8
    %s431 = scalar_lea.vmem [#allocation2], %s430
    %v432 = vld [vmem:[%s431] sm:$0xff]
    %v433 = vpack.c.bf16 %v372, %v372
    %435 = vrot.lane.b32.xlu0 %v433, 64
    %v436 = vpop.permute.xlu0 %435
    %v438 = vsel %vm107, %v436, 0
    %440 = vmatprep.subr.bf16.mxu0 0
    %441 = vmatpush1.bf16.msra.mxu0 0
    %442 = vmatprep.subr.bf16.mxu0 0
    %443 = vmatpush1.bf16.msra.mxu0 0
    %444 = vmatprep.subr.bf16.mxu0 0
    %445 = vmatpush1.bf16.msra.mxu0 0
    %446 = vmatprep.subr.bf16.mxu0 0
    %447 = vmatpush1.bf16.msra.mxu0 0
    %448 = vmatprep.subr.bf16.mxu0 0
    %449 = vmatpush1.bf16.msra.mxu0 0
    %450 = vmatprep.subr.bf16.mxu0 0
    %451 = vmatpush1.bf16.msra.mxu0 0
    %452 = vmatprep.subr.bf16.mxu0 0
    %453 = vmatpush1.bf16.msra.mxu0 %v230
    %454 = vmatprep.subr.bf16.mxu0 0
    %455 = vmatpush1.bf16.msra.mxu0 %v229
    %456 = vmatprep.subr.bf16.mxu0 0
    %457 = vmatpush2.bf16.msra.mxu0 0
    %458 = vmatprep.subr.bf16.mxu0 0
    %459 = vmatpush2.bf16.msra.mxu0 0
    %460 = vmatprep.subr.bf16.mxu0 0
    %461 = vmatpush2.bf16.msra.mxu0 0
    %462 = vmatprep.subr.bf16.mxu0 0
    %463 = vmatpush2.bf16.msra.mxu0 0
    %464 = vmatprep.subr.bf16.mxu0 0
    %465 = vmatpush2.bf16.msra.mxu0 0
    %466 = vmatprep.subr.bf16.mxu0 0
    %467 = vmatpush2.bf16.msra.mxu0 0
    %468 = vmatprep.subr.bf16.mxu0 0
    %469 = vmatpush2.bf16.msra.mxu0 0
    %470 = vmatprep.subr.bf16.mxu0 0
    %471 = vmatpush2.bf16.msra.mxu0 0
    %472 = vmatprep.mubr.bf16.mxu0 0
    %473 = vmatmul.mubr.bf16.gmra.mxu0 %v438
    %v474 = vpop.f32.mrf.mxu0
    %v475 = vadd.f32 0.0, %v474
    %v476 = vpop.f32.mrf.mxu0
    %v477 = vpop.f32.mrf.mxu0
    %v478 = vpop.f32.mrf.mxu0
    %479 = vdwg.mxu0
    %v480 = vadd.f32 %v432, %v475
    %s481 = smul.u32 6, 2
    %s482 = smul.addr %s481, 8
    %s483 = scalar_lea.vmem [#allocation2], %s482
    %v484 = vld [vmem:[%s483 + $0x8] sm:$0xff]
    %v485 = vpack.c.bf16 %v414, %v414
    %487 = vrot.lane.b32.xlu0 %v485, 64
    %v488 = vpop.permute.xlu0 %487
    %v490 = vsel %vm107, %v488, 0
    %492 = vmatprep.subr.bf16.mxu0 0
    %493 = vmatpush1.bf16.msra.mxu0 0
    %494 = vmatprep.subr.bf16.mxu0 0
    %495 = vmatpush1.bf16.msra.mxu0 0
    %496 = vmatprep.subr.bf16.mxu0 0
    %497 = vmatpush1.bf16.msra.mxu0 0
    %498 = vmatprep.subr.bf16.mxu0 0
    %499 = vmatpush1.bf16.msra.mxu0 0
    %500 = vmatprep.subr.bf16.mxu0 0
    %501 = vmatpush1.bf16.msra.mxu0 0
    %502 = vmatprep.subr.bf16.mxu0 0
    %503 = vmatpush1.bf16.msra.mxu0 0
    %504 = vmatprep.subr.bf16.mxu0 0
    %505 = vmatpush1.bf16.msra.mxu0 %v290
    %506 = vmatprep.subr.bf16.mxu0 0
    %507 = vmatpush1.bf16.msra.mxu0 %v289
    %508 = vmatprep.subr.bf16.mxu0 0
    %509 = vmatpush2.bf16.msra.mxu0 0
    %510 = vmatprep.subr.bf16.mxu0 0
    %511 = vmatpush2.bf16.msra.mxu0 0
    %512 = vmatprep.subr.bf16.mxu0 0
    %513 = vmatpush2.bf16.msra.mxu0 0
    %514 = vmatprep.subr.bf16.mxu0 0
    %515 = vmatpush2.bf16.msra.mxu0 0
    %516 = vmatprep.subr.bf16.mxu0 0
    %517 = vmatpush2.bf16.msra.mxu0 0
    %518 = vmatprep.subr.bf16.mxu0 0
    %519 = vmatpush2.bf16.msra.mxu0 0
    %520 = vmatprep.subr.bf16.mxu0 0
    %521 = vmatpush2.bf16.msra.mxu0 0
    %522 = vmatprep.subr.bf16.mxu0 0
    %523 = vmatpush2.bf16.msra.mxu0 0
    %524 = vmatprep.mubr.bf16.mxu0 0
    %525 = vmatmul.mubr.bf16.gmra.mxu0 %v490
    %v526 = vpop.f32.mrf.mxu0
    %v527 = vadd.f32 0.0, %v526
    %v528 = vpop.f32.mrf.mxu0
    %v529 = vpop.f32.mrf.mxu0
    %v530 = vpop.f32.mrf.mxu0
    %531 = vdwg.mxu0
    %v532 = vadd.f32 %v484, %v527
    %s533 = scalar_lea.vmem %s1, 8
    %v534 = vld [vmem:[%s533] sm:$0xff]
    %v535 = vxor.u32 %v480, 2147483648
    %v536 = vmul.f32 %v535, 1.442695
    %v537 = vpow.pop %v536
    %v538 = vadd.f32 %v537, 1.0
    %v539 = vrcp.pop %v538
    %v540 = vmul.f32 1.0, %v539
    %v541 = vtanh.pop %v480
    %v542 = vmul.f32 %v540, %v374
    %544 = vrot.lane.b32.xlu0 %v541, 32
    %v545 = vpop.permute.xlu0 %544
    %v547 = vmul.f32 %v540, %v545
    %549 = vrot.lane.b32.xlu0 %v547, 32
    %v550 = vpop.permute.xlu0 %549
    %v552 = vadd.f32 %v542, %v550
    %v553 = vtanh.pop %v552
    %555 = vrot.lane.b32.xlu0 %v553, 32
    %v556 = vpop.permute.xlu0 %555
    %v558 = vmul.f32 %v540, %v556
    %560 = vset.pattern.permute.xlu0 0
    %561 = vperm.xlu0 %560, %v534
    %v562 = vpop.permute.xlu0 %561
    %v564 = vmul.f32 %v562, %v558
    %v565 = vsub.f32 1.0, %v534
    %567 = vset.pattern.permute.xlu0 0
    %568 = vperm.xlu0 %567, %v565
    %v569 = vpop.permute.xlu0 %568
    %v571 = vmul.f32 %v569, %v372
    %v572 = vadd.f32 %v564, %v571
    %v573 = vmul.f32 %v562, %v552
    %v574 = vmul.f32 %v569, %v374
    %v575 = vadd.f32 %v573, %v574
    %s576 = scalar_lea.vmem %s1, 48
    %v577 = vld [vmem:[%s576] sm:$0xff]
    %v578 = vxor.u32 %v532, 2147483648
    %v579 = vmul.f32 %v578, 1.442695
    %v580 = vpow.pop %v579
    %v581 = vadd.f32 %v580, 1.0
    %v582 = vrcp.pop %v581
    %v583 = vmul.f32 1.0, %v582
    %v584 = vtanh.pop %v532
    %v585 = vmul.f32 %v583, %v416
    %587 = vrot.lane.b32.xlu0 %v584, 32
    %v588 = vpop.permute.xlu0 %587
    %v590 = vmul.f32 %v583, %v588
    %592 = vrot.lane.b32.xlu0 %v590, 32
    %v593 = vpop.permute.xlu0 %592
    %v595 = vadd.f32 %v585, %v593
    %v596 = vtanh.pop %v595
    %598 = vrot.lane.b32.xlu0 %v596, 32
    %v599 = vpop.permute.xlu0 %598
    %v601 = vmul.f32 %v583, %v599
    %603 = vset.pattern.permute.xlu0 0
    %604 = vperm.xlu0 %603, %v577
    %v605 = vpop.permute.xlu0 %604
    %v607 = vmul.f32 %v605, %v601
    %v608 = vsub.f32 1.0, %v577
    %610 = vset.pattern.permute.xlu0 0
    %611 = vperm.xlu0 %610, %v608
    %v612 = vpop.permute.xlu0 %611
    %v614 = vmul.f32 %v612, %v414
    %v615 = vadd.f32 %v607, %v614
    %v616 = vmul.f32 %v605, %v595
    %v617 = vmul.f32 %v612, %v416
    %v618 = vadd.f32 %v616, %v617
    %620 = vrot.lane.b32.xlu0 %v572, 64
    %v621 = vpop.permute.xlu0 %620
    %s623 = scalar_lea.vmem [#allocation3], 8
    %624 = vst.msk [vmem:[%s623] sm:$0xff] %vm107, %v621
    %626 = vrot.lane.b32.xlu0 %v615, 96
    %v627 = vpop.permute.xlu0 %626
    %s629 = scalar_lea.vmem [#allocation3], 48
    %630 = vst.msk [vmem:[%s629] sm:$0xff] %vm427, %v627
    %s631 = smul.u32 2, 2
    %s632 = smul.addr %s631, 8
    %s633 = scalar_lea.vmem [#allocation2], %s632
    %v634 = vld [vmem:[%s633] sm:$0xff]
    %v635 = vpack.c.bf16 %v572, %v572
    %637 = vrot.lane.b32.xlu0 %v635, 64
    %v638 = vpop.permute.xlu0 %637
    %v640 = vsel %vm107, %v638, 0
    %642 = vmatprep.subr.bf16.mxu0 0
    %643 = vmatpush1.bf16.msra.mxu0 0
    %644 = vmatprep.subr.bf16.mxu0 0
    %645 = vmatpush1.bf16.msra.mxu0 0
    %646 = vmatprep.subr.bf16.mxu0 0
    %647 = vmatpush1.bf16.msra.mxu0 0
    %648 = vmatprep.subr.bf16.mxu0 0
    %649 = vmatpush1.bf16.msra.mxu0 0
    %650 = vmatprep.subr.bf16.mxu0 0
    %651 = vmatpush1.bf16.msra.mxu0 0
    %652 = vmatprep.subr.bf16.mxu0 0
    %653 = vmatpush1.bf16.msra.mxu0 0
    %654 = vmatprep.subr.bf16.mxu0 0
    %655 = vmatpush1.bf16.msra.mxu0 %v230
    %656 = vmatprep.subr.bf16.mxu0 0
    %657 = vmatpush1.bf16.msra.mxu0 %v229
    %658 = vmatprep.subr.bf16.mxu0 0
    %659 = vmatpush2.bf16.msra.mxu0 0
    %660 = vmatprep.subr.bf16.mxu0 0
    %661 = vmatpush2.bf16.msra.mxu0 0
    %662 = vmatprep.subr.bf16.mxu0 0
    %663 = vmatpush2.bf16.msra.mxu0 0
    %664 = vmatprep.subr.bf16.mxu0 0
    %665 = vmatpush2.bf16.msra.mxu0 0
    %666 = vmatprep.subr.bf16.mxu0 0
    %667 = vmatpush2.bf16.msra.mxu0 0
    %668 = vmatprep.subr.bf16.mxu0 0
    %669 = vmatpush2.bf16.msra.mxu0 0
    %670 = vmatprep.subr.bf16.mxu0 0
    %671 = vmatpush2.bf16.msra.mxu0 0
    %672 = vmatprep.subr.bf16.mxu0 0
    %673 = vmatpush2.bf16.msra.mxu0 0
    %674 = vmatprep.mubr.bf16.mxu0 0
    %675 = vmatmul.mubr.bf16.gmra.mxu0 %v640
    %v676 = vpop.f32.mrf.mxu0
    %v677 = vadd.f32 0.0, %v676
    %v678 = vpop.f32.mrf.mxu0
    %v679 = vpop.f32.mrf.mxu0
    %v680 = vpop.f32.mrf.mxu0
    %681 = vdwg.mxu0
    %v682 = vadd.f32 %v634, %v677
    %s683 = smul.u32 5, 2
    %s684 = smul.addr %s683, 8
    %s685 = scalar_lea.vmem [#allocation2], %s684
    %v686 = vld [vmem:[%s685 + $0x8] sm:$0xff]
    %v687 = vpack.c.bf16 %v615, %v615
    %689 = vrot.lane.b32.xlu0 %v687, 64
    %v690 = vpop.permute.xlu0 %689
    %v692 = vsel %vm107, %v690, 0
    %694 = vmatprep.subr.bf16.mxu0 0
    %695 = vmatpush1.bf16.msra.mxu0 0
    %696 = vmatprep.subr.bf16.mxu0 0
    %697 = vmatpush1.bf16.msra.mxu0 0
    %698 = vmatprep.subr.bf16.mxu0 0
    %699 = vmatpush1.bf16.msra.mxu0 0
    %700 = vmatprep.subr.bf16.mxu0 0
    %701 = vmatpush1.bf16.msra.mxu0 0
    %702 = vmatprep.subr.bf16.mxu0 0
    %703 = vmatpush1.bf16.msra.mxu0 0
    %704 = vmatprep.subr.bf16.mxu0 0
    %705 = vmatpush1.bf16.msra.mxu0 0
    %706 = vmatprep.subr.bf16.mxu0 0
    %707 = vmatpush1.bf16.msra.mxu0 %v290
    %708 = vmatprep.subr.bf16.mxu0 0
    %709 = vmatpush1.bf16.msra.mxu0 %v289
    %710 = vmatprep.subr.bf16.mxu0 0
    %711 = vmatpush2.bf16.msra.mxu0 0
    %712 = vmatprep.subr.bf16.mxu0 0
    %713 = vmatpush2.bf16.msra.mxu0 0
    %714 = vmatprep.subr.bf16.mxu0 0
    %715 = vmatpush2.bf16.msra.mxu0 0
    %716 = vmatprep.subr.bf16.mxu0 0
    %717 = vmatpush2.bf16.msra.mxu0 0
    %718 = vmatprep.subr.bf16.mxu0 0
    %719 = vmatpush2.bf16.msra.mxu0 0
    %720 = vmatprep.subr.bf16.mxu0 0
    %721 = vmatpush2.bf16.msra.mxu0 0
    %722 = vmatprep.subr.bf16.mxu0 0
    %723 = vmatpush2.bf16.msra.mxu0 0
    %724 = vmatprep.subr.bf16.mxu0 0
    %725 = vmatpush2.bf16.msra.mxu0 0
    %726 = vmatprep.mubr.bf16.mxu0 0
    %727 = vmatmul.mubr.bf16.gmra.mxu0 %v692
    %v728 = vpop.f32.mrf.mxu0
    %v729 = vadd.f32 0.0, %v728
    %v730 = vpop.f32.mrf.mxu0
    %v731 = vpop.f32.mrf.mxu0
    %v732 = vpop.f32.mrf.mxu0
    %733 = vdwg.mxu0
    %v734 = vadd.f32 %v686, %v729
    %s735 = scalar_lea.vmem %s1, 16
    %v736 = vld [vmem:[%s735] sm:$0xff]
    %v737 = vxor.u32 %v682, 2147483648
    %v738 = vmul.f32 %v737, 1.442695
    %v739 = vpow.pop %v738
    %v740 = vadd.f32 %v739, 1.0
    %v741 = vrcp.pop %v740
    %v742 = vmul.f32 1.0, %v741
    %v743 = vtanh.pop %v682
    %v744 = vmul.f32 %v742, %v575
    %746 = vrot.lane.b32.xlu0 %v743, 32
    %v747 = vpop.permute.xlu0 %746
    %v749 = vmul.f32 %v742, %v747
    %751 = vrot.lane.b32.xlu0 %v749, 32
    %v752 = vpop.permute.xlu0 %751
    %v754 = vadd.f32 %v744, %v752
    %v755 = vtanh.pop %v754
    %757 = vrot.lane.b32.xlu0 %v755, 32
    %v758 = vpop.permute.xlu0 %757
    %v760 = vmul.f32 %v742, %v758
    %762 = vset.pattern.permute.xlu0 0
    %763 = vperm.xlu0 %762, %v736
    %v764 = vpop.permute.xlu0 %763
    %v766 = vmul.f32 %v764, %v760
    %v767 = vsub.f32 1.0, %v736
    %769 = vset.pattern.permute.xlu0 0
    %770 = vperm.xlu0 %769, %v767
    %v771 = vpop.permute.xlu0 %770
    %v773 = vmul.f32 %v771, %v572
    %v774 = vadd.f32 %v766, %v773
    %v775 = vmul.f32 %v764, %v754
    %v776 = vmul.f32 %v771, %v575
    %v777 = vadd.f32 %v775, %v776
    %s778 = scalar_lea.vmem %s1, 40
    %v779 = vld [vmem:[%s778] sm:$0xff]
    %v780 = vxor.u32 %v734, 2147483648
    %v781 = vmul.f32 %v780, 1.442695
    %v782 = vpow.pop %v781
    %v783 = vadd.f32 %v782, 1.0
    %v784 = vrcp.pop %v783
    %v785 = vmul.f32 1.0, %v784
    %v786 = vtanh.pop %v734
    %v787 = vmul.f32 %v785, %v618
    %789 = vrot.lane.b32.xlu0 %v786, 32
    %v790 = vpop.permute.xlu0 %789
    %v792 = vmul.f32 %v785, %v790
    %794 = vrot.lane.b32.xlu0 %v792, 32
    %v795 = vpop.permute.xlu0 %794
    %v797 = vadd.f32 %v787, %v795
    %v798 = vtanh.pop %v797
    %800 = vrot.lane.b32.xlu0 %v798, 32
    %v801 = vpop.permute.xlu0 %800
    %v803 = vmul.f32 %v785, %v801
    %805 = vset.pattern.permute.xlu0 0
    %806 = vperm.xlu0 %805, %v779
    %v807 = vpop.permute.xlu0 %806
    %v809 = vmul.f32 %v807, %v803
    %v810 = vsub.f32 1.0, %v779
    %812 = vset.pattern.permute.xlu0 0
    %813 = vperm.xlu0 %812, %v810
    %v814 = vpop.permute.xlu0 %813
    %v816 = vmul.f32 %v814, %v615
    %v817 = vadd.f32 %v809, %v816
    %v818 = vmul.f32 %v807, %v797
    %v819 = vmul.f32 %v814, %v618
    %v820 = vadd.f32 %v818, %v819
    %822 = vrot.lane.b32.xlu0 %v774, 64
    %v823 = vpop.permute.xlu0 %822
    %s825 = scalar_lea.vmem [#allocation3], 16
    %826 = vst.msk [vmem:[%s825] sm:$0xff] %vm107, %v823
    %828 = vrot.lane.b32.xlu0 %v817, 96
    %v829 = vpop.permute.xlu0 %828
    %s831 = scalar_lea.vmem [#allocation3], 40
    %832 = vst.msk [vmem:[%s831] sm:$0xff] %vm427, %v829
    %s833 = smul.u32 3, 2
    %s834 = smul.addr %s833, 8
    %s835 = scalar_lea.vmem [#allocation2], %s834
    %v836 = vld [vmem:[%s835] sm:$0xff]
    %v837 = vpack.c.bf16 %v774, %v774
    %839 = vrot.lane.b32.xlu0 %v837, 64
    %v840 = vpop.permute.xlu0 %839
    %v842 = vsel %vm107, %v840, 0
    %844 = vmatprep.subr.bf16.mxu0 0
    %845 = vmatpush1.bf16.msra.mxu0 0
    %846 = vmatprep.subr.bf16.mxu0 0
    %847 = vmatpush1.bf16.msra.mxu0 0
    %848 = vmatprep.subr.bf16.mxu0 0
    %849 = vmatpush1.bf16.msra.mxu0 0
    %850 = vmatprep.subr.bf16.mxu0 0
    %851 = vmatpush1.bf16.msra.mxu0 0
    %852 = vmatprep.subr.bf16.mxu0 0
    %853 = vmatpush1.bf16.msra.mxu0 0
    %854 = vmatprep.subr.bf16.mxu0 0
    %855 = vmatpush1.bf16.msra.mxu0 0
    %856 = vmatprep.subr.bf16.mxu0 0
    %857 = vmatpush1.bf16.msra.mxu0 %v230
    %858 = vmatprep.subr.bf16.mxu0 0
    %859 = vmatpush1.bf16.msra.mxu0 %v229
    %860 = vmatprep.subr.bf16.mxu0 0
    %861 = vmatpush2.bf16.msra.mxu0 0
    %862 = vmatprep.subr.bf16.mxu0 0
    %863 = vmatpush2.bf16.msra.mxu0 0
    %864 = vmatprep.subr.bf16.mxu0 0
    %865 = vmatpush2.bf16.msra.mxu0 0
    %866 = vmatprep.subr.bf16.mxu0 0
    %867 = vmatpush2.bf16.msra.mxu0 0
    %868 = vmatprep.subr.bf16.mxu0 0
    %869 = vmatpush2.bf16.msra.mxu0 0
    %870 = vmatprep.subr.bf16.mxu0 0
    %871 = vmatpush2.bf16.msra.mxu0 0
    %872 = vmatprep.subr.bf16.mxu0 0
    %873 = vmatpush2.bf16.msra.mxu0 0
    %874 = vmatprep.subr.bf16.mxu0 0
    %875 = vmatpush2.bf16.msra.mxu0 0
    %876 = vmatprep.mubr.bf16.mxu0 0
    %877 = vmatmul.mubr.bf16.gmra.mxu0 %v842
    %v878 = vpop.f32.mrf.mxu0
    %v879 = vadd.f32 0.0, %v878
    %v880 = vpop.f32.mrf.mxu0
    %v881 = vpop.f32.mrf.mxu0
    %v882 = vpop.f32.mrf.mxu0
    %883 = vdwg.mxu0
    %v884 = vadd.f32 %v836, %v879
    %s885 = smul.u32 4, 2
    %s886 = smul.addr %s885, 8
    %s887 = scalar_lea.vmem [#allocation2], %s886
    %v888 = vld [vmem:[%s887 + $0x8] sm:$0xff]
    %v889 = vpack.c.bf16 %v817, %v817
    %891 = vrot.lane.b32.xlu0 %v889, 64
    %v892 = vpop.permute.xlu0 %891
    %v894 = vsel %vm107, %v892, 0
    %896 = vmatprep.subr.bf16.mxu0 0
    %897 = vmatpush1.bf16.msra.mxu0 0
    %898 = vmatprep.subr.bf16.mxu0 0
    %899 = vmatpush1.bf16.msra.mxu0 0
    %900 = vmatprep.subr.bf16.mxu0 0
    %901 = vmatpush1.bf16.msra.mxu0 0
    %902 = vmatprep.subr.bf16.mxu0 0
    %903 = vmatpush1.bf16.msra.mxu0 0
    %904 = vmatprep.subr.bf16.mxu0 0
    %905 = vmatpush1.bf16.msra.mxu0 0
    %906 = vmatprep.subr.bf16.mxu0 0
    %907 = vmatpush1.bf16.msra.mxu0 0
    %908 = vmatprep.subr.bf16.mxu0 0
    %909 = vmatpush1.bf16.msra.mxu0 %v290
    %910 = vmatprep.subr.bf16.mxu0 0
    %911 = vmatpush1.bf16.msra.mxu0 %v289
    %912 = vmatprep.subr.bf16.mxu0 0
    %913 = vmatpush2.bf16.msra.mxu0 0
    %914 = vmatprep.subr.bf16.mxu0 0
    %915 = vmatpush2.bf16.msra.mxu0 0
    %916 = vmatprep.subr.bf16.mxu0 0
    %917 = vmatpush2.bf16.msra.mxu0 0
    %918 = vmatprep.subr.bf16.mxu0 0
    %919 = vmatpush2.bf16.msra.mxu0 0
    %920 = vmatprep.subr.bf16.mxu0 0
    %921 = vmatpush2.bf16.msra.mxu0 0
    %922 = vmatprep.subr.bf16.mxu0 0
    %923 = vmatpush2.bf16.msra.mxu0 0
    %924 = vmatprep.subr.bf16.mxu0 0
    %925 = vmatpush2.bf16.msra.mxu0 0
    %926 = vmatprep.subr.bf16.mxu0 0
    %927 = vmatpush2.bf16.msra.mxu0 0
    %928 = vmatprep.mubr.bf16.mxu0 0
    %929 = vmatmul.mubr.bf16.gmra.mxu0 %v894
    %v930 = vpop.f32.mrf.mxu0
    %v931 = vadd.f32 0.0, %v930
    %v932 = vpop.f32.mrf.mxu0
    %v933 = vpop.f32.mrf.mxu0
    %v934 = vpop.f32.mrf.mxu0
    %935 = vdwg.mxu0
    %v936 = vadd.f32 %v888, %v931
    %s937 = scalar_lea.vmem %s1, 24
    %v938 = vld [vmem:[%s937] sm:$0xff]
    %v939 = vxor.u32 %v884, 2147483648
    %v940 = vmul.f32 %v939, 1.442695
    %v941 = vpow.pop %v940
    %v942 = vadd.f32 %v941, 1.0
    %v943 = vrcp.pop %v942
    %v944 = vmul.f32 1.0, %v943
    %v945 = vtanh.pop %v884
    %v946 = vmul.f32 %v944, %v777
    %948 = vrot.lane.b32.xlu0 %v945, 32
    %v949 = vpop.permute.xlu0 %948
    %v951 = vmul.f32 %v944, %v949
    %953 = vrot.lane.b32.xlu0 %v951, 32
    %v954 = vpop.permute.xlu0 %953
    %v956 = vadd.f32 %v946, %v954
    %v957 = vtanh.pop %v956
    %959 = vrot.lane.b32.xlu0 %v957, 32
    %v960 = vpop.permute.xlu0 %959
    %v962 = vmul.f32 %v944, %v960
    %964 = vset.pattern.permute.xlu0 0
    %965 = vperm.xlu0 %964, %v938
    %v966 = vpop.permute.xlu0 %965
    %v968 = vmul.f32 %v966, %v962
    %v969 = vsub.f32 1.0, %v938
    %971 = vset.pattern.permute.xlu0 0
    %972 = vperm.xlu0 %971, %v969
    %v973 = vpop.permute.xlu0 %972
    %v975 = vmul.f32 %v973, %v774
    %v976 = vadd.f32 %v968, %v975
    %v977 = vmul.f32 %v966, %v956
    %v978 = vmul.f32 %v973, %v777
    %v979 = vadd.f32 %v977, %v978
    %s980 = scalar_lea.vmem %s1, 32
    %v981 = vld [vmem:[%s980] sm:$0xff]
    %v982 = vxor.u32 %v936, 2147483648
    %v983 = vmul.f32 %v982, 1.442695
    %v984 = vpow.pop %v983
    %v985 = vadd.f32 %v984, 1.0
    %v986 = vrcp.pop %v985
    %v987 = vmul.f32 1.0, %v986
    %v988 = vtanh.pop %v936
    %v989 = vmul.f32 %v987, %v820
    %991 = vrot.lane.b32.xlu0 %v988, 32
    %v992 = vpop.permute.xlu0 %991
    %v994 = vmul.f32 %v987, %v992
    %996 = vrot.lane.b32.xlu0 %v994, 32
    %v997 = vpop.permute.xlu0 %996
    %v999 = vadd.f32 %v989, %v997
    %v1000 = vtanh.pop %v999
    %1002 = vrot.lane.b32.xlu0 %v1000, 32
    %v1003 = vpop.permute.xlu0 %1002
    %v1005 = vmul.f32 %v987, %v1003
    %1007 = vset.pattern.permute.xlu0 0
    %1008 = vperm.xlu0 %1007, %v981
    %v1009 = vpop.permute.xlu0 %1008
    %v1011 = vmul.f32 %v1009, %v1005
    %v1012 = vsub.f32 1.0, %v981
    %1014 = vset.pattern.permute.xlu0 0
    %1015 = vperm.xlu0 %1014, %v1012
    %v1016 = vpop.permute.xlu0 %1015
    %v1018 = vmul.f32 %v1016, %v817
    %v1019 = vadd.f32 %v1011, %v1018
    %v1020 = vmul.f32 %v1009, %v999
    %v1021 = vmul.f32 %v1016, %v820
    %v1022 = vadd.f32 %v1020, %v1021
    %1024 = vrot.lane.b32.xlu0 %v976, 64
    %v1025 = vpop.permute.xlu0 %1024
    %s1027 = scalar_lea.vmem [#allocation3], 24
    %1028 = vst.msk [vmem:[%s1027] sm:$0xff] %vm107, %v1025
    %1030 = vrot.lane.b32.xlu0 %v1019, 96
    %v1031 = vpop.permute.xlu0 %1030
    %s1033 = scalar_lea.vmem [#allocation3], 32
    %1034 = vst.msk [vmem:[%s1033] sm:$0xff] %vm427, %v1031
    %v1035 = vld [vmem:[%s887] sm:$0xff]
    %v1036 = vpack.c.bf16 %v976, %v976
    %1038 = vrot.lane.b32.xlu0 %v1036, 64
    %v1039 = vpop.permute.xlu0 %1038
    %v1041 = vsel %vm107, %v1039, 0
    %1043 = vmatprep.subr.bf16.mxu0 0
    %1044 = vmatpush1.bf16.msra.mxu0 0
    %1045 = vmatprep.subr.bf16.mxu0 0
    %1046 = vmatpush1.bf16.msra.mxu0 0
    %1047 = vmatprep.subr.bf16.mxu0 0
    %1048 = vmatpush1.bf16.msra.mxu0 0
    %1049 = vmatprep.subr.bf16.mxu0 0
    %1050 = vmatpush1.bf16.msra.mxu0 0
    %1051 = vmatprep.subr.bf16.mxu0 0
    %1052 = vmatpush1.bf16.msra.mxu0 0
    %1053 = vmatprep.subr.bf16.mxu0 0
    %1054 = vmatpush1.bf16.msra.mxu0 0
    %1055 = vmatprep.subr.bf16.mxu0 0
    %1056 = vmatpush1.bf16.msra.mxu0 %v230
    %1057 = vmatprep.subr.bf16.mxu0 0
    %1058 = vmatpush1.bf16.msra.mxu0 %v229
    %1059 = vmatprep.subr.bf16.mxu0 0
    %1060 = vmatpush2.bf16.msra.mxu0 0
    %1061 = vmatprep.subr.bf16.mxu0 0
    %1062 = vmatpush2.bf16.msra.mxu0 0
    %1063 = vmatprep.subr.bf16.mxu0 0
    %1064 = vmatpush2.bf16.msra.mxu0 0
    %1065 = vmatprep.subr.bf16.mxu0 0
    %1066 = vmatpush2.bf16.msra.mxu0 0
    %1067 = vmatprep.subr.bf16.mxu0 0
    %1068 = vmatpush2.bf16.msra.mxu0 0
    %1069 = vmatprep.subr.bf16.mxu0 0
    %1070 = vmatpush2.bf16.msra.mxu0 0
    %1071 = vmatprep.subr.bf16.mxu0 0
    %1072 = vmatpush2.bf16.msra.mxu0 0
    %1073 = vmatprep.subr.bf16.mxu0 0
    %1074 = vmatpush2.bf16.msra.mxu0 0
    %1075 = vmatprep.mubr.bf16.mxu0 0
    %1076 = vmatmul.mubr.bf16.gmra.mxu0 %v1041
    %v1077 = vpop.f32.mrf.mxu0
    %v1078 = vadd.f32 0.0, %v1077
    %v1079 = vpop.f32.mrf.mxu0
    %v1080 = vpop.f32.mrf.mxu0
    %v1081 = vpop.f32.mrf.mxu0
    %1082 = vdwg.mxu0
    %v1083 = vadd.f32 %v1035, %v1078
    %v1084 = vld [vmem:[%s835 + $0x8] sm:$0xff]
    %v1085 = vpack.c.bf16 %v1019, %v1019
    %1087 = vrot.lane.b32.xlu0 %v1085, 64
    %v1088 = vpop.permute.xlu0 %1087
    %v1090 = vsel %vm107, %v1088, 0
    %1092 = vmatprep.subr.bf16.mxu0 0
    %1093 = vmatpush1.bf16.msra.mxu0 0
    %1094 = vmatprep.subr.bf16.mxu0 0
    %1095 = vmatpush1.bf16.msra.mxu0 0
    %1096 = vmatprep.subr.bf16.mxu0 0
    %1097 = vmatpush1.bf16.msra.mxu0 0
    %1098 = vmatprep.subr.bf16.mxu0 0
    %1099 = vmatpush1.bf16.msra.mxu0 0
    %1100 = vmatprep.subr.bf16.mxu0 0
    %1101 = vmatpush1.bf16.msra.mxu0 0
    %1102 = vmatprep.subr.bf16.mxu0 0
    %1103 = vmatpush1.bf16.msra.mxu0 0
    %1104 = vmatprep.subr.bf16.mxu0 0
    %1105 = vmatpush1.bf16.msra.mxu0 %v290
    %1106 = vmatprep.subr.bf16.mxu0 0
    %1107 = vmatpush1.bf16.msra.mxu0 %v289
    %1108 = vmatprep.subr.bf16.mxu0 0
    %1109 = vmatpush2.bf16.msra.mxu0 0
    %1110 = vmatprep.subr.bf16.mxu0 0
    %1111 = vmatpush2.bf16.msra.mxu0 0
    %1112 = vmatprep.subr.bf16.mxu0 0
    %1113 = vmatpush2.bf16.msra.mxu0 0
    %1114 = vmatprep.subr.bf16.mxu0 0
    %1115 = vmatpush2.bf16.msra.mxu0 0
    %1116 = vmatprep.subr.bf16.mxu0 0
    %1117 = vmatpush2.bf16.msra.mxu0 0
    %1118 = vmatprep.subr.bf16.mxu0 0
    %1119 = vmatpush2.bf16.msra.mxu0 0
    %1120 = vmatprep.subr.bf16.mxu0 0
    %1121 = vmatpush2.bf16.msra.mxu0 0
    %1122 = vmatprep.subr.bf16.mxu0 0
    %1123 = vmatpush2.bf16.msra.mxu0 0
    %1124 = vmatprep.mubr.bf16.mxu0 0
    %1125 = vmatmul.mubr.bf16.gmra.mxu0 %v1090
    %v1126 = vpop.f32.mrf.mxu0
    %v1127 = vadd.f32 0.0, %v1126
    %v1128 = vpop.f32.mrf.mxu0
    %v1129 = vpop.f32.mrf.mxu0
    %v1130 = vpop.f32.mrf.mxu0
    %1131 = vdwg.mxu0
    %v1132 = vadd.f32 %v1084, %v1127
    %v1133 = vld [vmem:[%s980] sm:$0xff]
    %v1134 = vxor.u32 %v1083, 2147483648
    %v1135 = vmul.f32 %v1134, 1.442695
    %v1136 = vpow.pop %v1135
    %v1137 = vadd.f32 %v1136, 1.0
    %v1138 = vrcp.pop %v1137
    %v1139 = vmul.f32 1.0, %v1138
    %v1140 = vtanh.pop %v1083
    %v1141 = vmul.f32 %v1139, %v979
    %1143 = vrot.lane.b32.xlu0 %v1140, 32
    %v1144 = vpop.permute.xlu0 %1143
    %v1146 = vmul.f32 %v1139, %v1144
    %1148 = vrot.lane.b32.xlu0 %v1146, 32
    %v1149 = vpop.permute.xlu0 %1148
    %v1151 = vadd.f32 %v1141, %v1149
    %v1152 = vtanh.pop %v1151
    %1154 = vrot.lane.b32.xlu0 %v1152, 32
    %v1155 = vpop.permute.xlu0 %1154
    %v1157 = vmul.f32 %v1139, %v1155
    %1159 = vset.pattern.permute.xlu0 0
    %1160 = vperm.xlu0 %1159, %v1133
    %v1161 = vpop.permute.xlu0 %1160
    %v1163 = vmul.f32 %v1161, %v1157
    %v1164 = vsub.f32 1.0, %v1133
    %1166 = vset.pattern.permute.xlu0 0
    %1167 = vperm.xlu0 %1166, %v1164
    %v1168 = vpop.permute.xlu0 %1167
    %v1170 = vmul.f32 %v1168, %v976
    %v1171 = vadd.f32 %v1163, %v1170
    %v1172 = vmul.f32 %v1161, %v1151
    %v1173 = vmul.f32 %v1168, %v979
    %v1174 = vadd.f32 %v1172, %v1173
    %v1175 = vld [vmem:[%s937] sm:$0xff]
    %v1176 = vxor.u32 %v1132, 2147483648
    %v1177 = vmul.f32 %v1176, 1.442695
    %v1178 = vpow.pop %v1177
    %v1179 = vadd.f32 %v1178, 1.0
    %v1180 = vrcp.pop %v1179
    %v1181 = vmul.f32 1.0, %v1180
    %v1182 = vtanh.pop %v1132
    %v1183 = vmul.f32 %v1181, %v1022
    %1185 = vrot.lane.b32.xlu0 %v1182, 32
    %v1186 = vpop.permute.xlu0 %1185
    %v1188 = vmul.f32 %v1181, %v1186
    %1190 = vrot.lane.b32.xlu0 %v1188, 32
    %v1191 = vpop.permute.xlu0 %1190
    %v1193 = vadd.f32 %v1183, %v1191
    %v1194 = vtanh.pop %v1193
    %1196 = vrot.lane.b32.xlu0 %v1194, 32
    %v1197 = vpop.permute.xlu0 %1196
    %v1199 = vmul.f32 %v1181, %v1197
    %1201 = vset.pattern.permute.xlu0 0
    %1202 = vperm.xlu0 %1201, %v1175
    %v1203 = vpop.permute.xlu0 %1202
    %v1205 = vmul.f32 %v1203, %v1199
    %v1206 = vsub.f32 1.0, %v1175
    %1208 = vset.pattern.permute.xlu0 0
    %1209 = vperm.xlu0 %1208, %v1206
    %v1210 = vpop.permute.xlu0 %1209
    %v1212 = vmul.f32 %v1210, %v1019
    %v1213 = vadd.f32 %v1205, %v1212
    %v1214 = vmul.f32 %v1203, %v1193
    %v1215 = vmul.f32 %v1210, %v1022
    %v1216 = vadd.f32 %v1214, %v1215
    %1218 = vrot.lane.b32.xlu0 %v1171, 64
    %v1219 = vpop.permute.xlu0 %1218
    %1221 = vst.msk [vmem:[%s1033] sm:$0xff] %vm107, %v1219
    %1223 = vrot.lane.b32.xlu0 %v1213, 96
    %v1224 = vpop.permute.xlu0 %1223
    %1226 = vst.msk [vmem:[%s1027] sm:$0xff] %vm427, %v1224
    %v1227 = vld [vmem:[%s685] sm:$0xff]
    %v1228 = vpack.c.bf16 %v1171, %v1171
    %1230 = vrot.lane.b32.xlu0 %v1228, 64
    %v1231 = vpop.permute.xlu0 %1230
    %v1233 = vsel %vm107, %v1231, 0
    %1235 = vmatprep.subr.bf16.mxu0 0
    %1236 = vmatpush1.bf16.msra.mxu0 0
    %1237 = vmatprep.subr.bf16.mxu0 0
    %1238 = vmatpush1.bf16.msra.mxu0 0
    %1239 = vmatprep.subr.bf16.mxu0 0
    %1240 = vmatpush1.bf16.msra.mxu0 0
    %1241 = vmatprep.subr.bf16.mxu0 0
    %1242 = vmatpush1.bf16.msra.mxu0 0
    %1243 = vmatprep.subr.bf16.mxu0 0
    %1244 = vmatpush1.bf16.msra.mxu0 0
    %1245 = vmatprep.subr.bf16.mxu0 0
    %1246 = vmatpush1.bf16.msra.mxu0 0
    %1247 = vmatprep.subr.bf16.mxu0 0
    %1248 = vmatpush1.bf16.msra.mxu0 %v230
    %1249 = vmatprep.subr.bf16.mxu0 0
    %1250 = vmatpush1.bf16.msra.mxu0 %v229
    %1251 = vmatprep.subr.bf16.mxu0 0
    %1252 = vmatpush2.bf16.msra.mxu0 0
    %1253 = vmatprep.subr.bf16.mxu0 0
    %1254 = vmatpush2.bf16.msra.mxu0 0
    %1255 = vmatprep.subr.bf16.mxu0 0
    %1256 = vmatpush2.bf16.msra.mxu0 0
    %1257 = vmatprep.subr.bf16.mxu0 0
    %1258 = vmatpush2.bf16.msra.mxu0 0
    %1259 = vmatprep.subr.bf16.mxu0 0
    %1260 = vmatpush2.bf16.msra.mxu0 0
    %1261 = vmatprep.subr.bf16.mxu0 0
    %1262 = vmatpush2.bf16.msra.mxu0 0
    %1263 = vmatprep.subr.bf16.mxu0 0
    %1264 = vmatpush2.bf16.msra.mxu0 0
    %1265 = vmatprep.subr.bf16.mxu0 0
    %1266 = vmatpush2.bf16.msra.mxu0 0
    %1267 = vmatprep.mubr.bf16.mxu0 0
    %1268 = vmatmul.mubr.bf16.gmra.mxu0 %v1233
    %v1269 = vpop.f32.mrf.mxu0
    %v1270 = vadd.f32 0.0, %v1269
    %v1271 = vpop.f32.mrf.mxu0
    %v1272 = vpop.f32.mrf.mxu0
    %v1273 = vpop.f32.mrf.mxu0
    %1274 = vdwg.mxu0
    %v1275 = vadd.f32 %v1227, %v1270
    %v1276 = vld [vmem:[%s633 + $0x8] sm:$0xff]
    %v1277 = vpack.c.bf16 %v1213, %v1213
    %1279 = vrot.lane.b32.xlu0 %v1277, 64
    %v1280 = vpop.permute.xlu0 %1279
    %v1282 = vsel %vm107, %v1280, 0
    %1284 = vmatprep.subr.bf16.mxu0 0
    %1285 = vmatpush1.bf16.msra.mxu0 0
    %1286 = vmatprep.subr.bf16.mxu0 0
    %1287 = vmatpush1.bf16.msra.mxu0 0
    %1288 = vmatprep.subr.bf16.mxu0 0
    %1289 = vmatpush1.bf16.msra.mxu0 0
    %1290 = vmatprep.subr.bf16.mxu0 0
    %1291 = vmatpush1.bf16.msra.mxu0 0
    %1292 = vmatprep.subr.bf16.mxu0 0
    %1293 = vmatpush1.bf16.msra.mxu0 0
    %1294 = vmatprep.subr.bf16.mxu0 0
    %1295 = vmatpush1.bf16.msra.mxu0 0
    %1296 = vmatprep.subr.bf16.mxu0 0
    %1297 = vmatpush1.bf16.msra.mxu0 %v290
    %1298 = vmatprep.subr.bf16.mxu0 0
    %1299 = vmatpush1.bf16.msra.mxu0 %v289
    %1300 = vmatprep.subr.bf16.mxu0 0
    %1301 = vmatpush2.bf16.msra.mxu0 0
    %1302 = vmatprep.subr.bf16.mxu0 0
    %1303 = vmatpush2.bf16.msra.mxu0 0
    %1304 = vmatprep.subr.bf16.mxu0 0
    %1305 = vmatpush2.bf16.msra.mxu0 0
    %1306 = vmatprep.subr.bf16.mxu0 0
    %1307 = vmatpush2.bf16.msra.mxu0 0
    %1308 = vmatprep.subr.bf16.mxu0 0
    %1309 = vmatpush2.bf16.msra.mxu0 0
    %1310 = vmatprep.subr.bf16.mxu0 0
    %1311 = vmatpush2.bf16.msra.mxu0 0
    %1312 = vmatprep.subr.bf16.mxu0 0
    %1313 = vmatpush2.bf16.msra.mxu0 0
    %1314 = vmatprep.subr.bf16.mxu0 0
    %1315 = vmatpush2.bf16.msra.mxu0 0
    %1316 = vmatprep.mubr.bf16.mxu0 0
    %1317 = vmatmul.mubr.bf16.gmra.mxu0 %v1282
    %v1318 = vpop.f32.mrf.mxu0
    %v1319 = vadd.f32 0.0, %v1318
    %v1320 = vpop.f32.mrf.mxu0
    %v1321 = vpop.f32.mrf.mxu0
    %v1322 = vpop.f32.mrf.mxu0
    %1323 = vdwg.mxu0
    %v1324 = vadd.f32 %v1276, %v1319
    %v1325 = vld [vmem:[%s778] sm:$0xff]
    %v1326 = vxor.u32 %v1275, 2147483648
    %v1327 = vmul.f32 %v1326, 1.442695
    %v1328 = vpow.pop %v1327
    %v1329 = vadd.f32 %v1328, 1.0
    %v1330 = vrcp.pop %v1329
    %v1331 = vmul.f32 1.0, %v1330
    %v1332 = vtanh.pop %v1275
    %v1333 = vmul.f32 %v1331, %v1174
    %1335 = vrot.lane.b32.xlu0 %v1332, 32
    %v1336 = vpop.permute.xlu0 %1335
    %v1338 = vmul.f32 %v1331, %v1336
    %1340 = vrot.lane.b32.xlu0 %v1338, 32
    %v1341 = vpop.permute.xlu0 %1340
    %v1343 = vadd.f32 %v1333, %v1341
    %v1344 = vtanh.pop %v1343
    %1346 = vrot.lane.b32.xlu0 %v1344, 32
    %v1347 = vpop.permute.xlu0 %1346
    %v1349 = vmul.f32 %v1331, %v1347
    %1351 = vset.pattern.permute.xlu0 0
    %1352 = vperm.xlu0 %1351, %v1325
    %v1353 = vpop.permute.xlu0 %1352
    %v1355 = vmul.f32 %v1353, %v1349
    %v1356 = vsub.f32 1.0, %v1325
    %1358 = vset.pattern.permute.xlu0 0
    %1359 = vperm.xlu0 %1358, %v1356
    %v1360 = vpop.permute.xlu0 %1359
    %v1362 = vmul.f32 %v1360, %v1171
    %v1363 = vadd.f32 %v1355, %v1362
    %v1364 = vmul.f32 %v1353, %v1343
    %v1365 = vmul.f32 %v1360, %v1174
    %v1366 = vadd.f32 %v1364, %v1365
    %v1367 = vld [vmem:[%s735] sm:$0xff]
    %v1368 = vxor.u32 %v1324, 2147483648
    %v1369 = vmul.f32 %v1368, 1.442695
    %v1370 = vpow.pop %v1369
    %v1371 = vadd.f32 %v1370, 1.0
    %v1372 = vrcp.pop %v1371
    %v1373 = vmul.f32 1.0, %v1372
    %v1374 = vtanh.pop %v1324
    %v1375 = vmul.f32 %v1373, %v1216
    %1377 = vrot.lane.b32.xlu0 %v1374, 32
    %v1378 = vpop.permute.xlu0 %1377
    %v1380 = vmul.f32 %v1373, %v1378
    %1382 = vrot.lane.b32.xlu0 %v1380, 32
    %v1383 = vpop.permute.xlu0 %1382
    %v1385 = vadd.f32 %v1375, %v1383
    %v1386 = vtanh.pop %v1385
    %1388 = vrot.lane.b32.xlu0 %v1386, 32
    %v1389 = vpop.permute.xlu0 %1388
    %v1391 = vmul.f32 %v1373, %v1389
    %1393 = vset.pattern.permute.xlu0 0
    %1394 = vperm.xlu0 %1393, %v1367
    %v1395 = vpop.permute.xlu0 %1394
    %v1397 = vmul.f32 %v1395, %v1391
    %v1398 = vsub.f32 1.0, %v1367
    %1400 = vset.pattern.permute.xlu0 0
    %1401 = vperm.xlu0 %1400, %v1398
    %v1402 = vpop.permute.xlu0 %1401
    %v1404 = vmul.f32 %v1402, %v1213
    %v1405 = vadd.f32 %v1397, %v1404
    %v1406 = vmul.f32 %v1395, %v1385
    %v1407 = vmul.f32 %v1402, %v1216
    %v1408 = vadd.f32 %v1406, %v1407
    %1410 = vrot.lane.b32.xlu0 %v1363, 64
    %v1411 = vpop.permute.xlu0 %1410
    %1413 = vst.msk [vmem:[%s831] sm:$0xff] %vm107, %v1411
    %1415 = vrot.lane.b32.xlu0 %v1405, 96
    %v1416 = vpop.permute.xlu0 %1415
    %1418 = vst.msk [vmem:[%s825] sm:$0xff] %vm427, %v1416
    %v1419 = vld [vmem:[%s483] sm:$0xff]
    %v1420 = vpack.c.bf16 %v1363, %v1363
    %1422 = vrot.lane.b32.xlu0 %v1420, 64
    %v1423 = vpop.permute.xlu0 %1422
    %v1425 = vsel %vm107, %v1423, 0
    %1427 = vmatprep.subr.bf16.mxu0 0
    %1428 = vmatpush1.bf16.msra.mxu0 0
    %1429 = vmatprep.subr.bf16.mxu0 0
    %1430 = vmatpush1.bf16.msra.mxu0 0
    %1431 = vmatprep.subr.bf16.mxu0 0
    %1432 = vmatpush1.bf16.msra.mxu0 0
    %1433 = vmatprep.subr.bf16.mxu0 0
    %1434 = vmatpush1.bf16.msra.mxu0 0
    %1435 = vmatprep.subr.bf16.mxu0 0
    %1436 = vmatpush1.bf16.msra.mxu0 0
    %1437 = vmatprep.subr.bf16.mxu0 0
    %1438 = vmatpush1.bf16.msra.mxu0 0
    %1439 = vmatprep.subr.bf16.mxu0 0
    %1440 = vmatpush1.bf16.msra.mxu0 %v230
    %1441 = vmatprep.subr.bf16.mxu0 0
    %1442 = vmatpush1.bf16.msra.mxu0 %v229
    %1443 = vmatprep.subr.bf16.mxu0 0
    %1444 = vmatpush2.bf16.msra.mxu0 0
    %1445 = vmatprep.subr.bf16.mxu0 0
    %1446 = vmatpush2.bf16.msra.mxu0 0
    %1447 = vmatprep.subr.bf16.mxu0 0
    %1448 = vmatpush2.bf16.msra.mxu0 0
    %1449 = vmatprep.subr.bf16.mxu0 0
    %1450 = vmatpush2.bf16.msra.mxu0 0
    %1451 = vmatprep.subr.bf16.mxu0 0
    %1452 = vmatpush2.bf16.msra.mxu0 0
    %1453 = vmatprep.subr.bf16.mxu0 0
    %1454 = vmatpush2.bf16.msra.mxu0 0
    %1455 = vmatprep.subr.bf16.mxu0 0
    %1456 = vmatpush2.bf16.msra.mxu0 0
    %1457 = vmatprep.subr.bf16.mxu0 0
    %1458 = vmatpush2.bf16.msra.mxu0 0
    %1459 = vmatprep.mubr.bf16.mxu0 0
    %1460 = vmatmul.mubr.bf16.gmra.mxu0 %v1425
    %v1461 = vpop.f32.mrf.mxu0
    %v1462 = vadd.f32 0.0, %v1461
    %v1463 = vpop.f32.mrf.mxu0
    %v1464 = vpop.f32.mrf.mxu0
    %v1465 = vpop.f32.mrf.mxu0
    %1466 = vdwg.mxu0
    %v1467 = vadd.f32 %v1419, %v1462
    %v1468 = vld [vmem:[%s431 + $0x8] sm:$0xff]
    %v1469 = vpack.c.bf16 %v1405, %v1405
    %1471 = vrot.lane.b32.xlu0 %v1469, 64
    %v1472 = vpop.permute.xlu0 %1471
    %v1474 = vsel %vm107, %v1472, 0
    %1476 = vmatprep.subr.bf16.mxu0 0
    %1477 = vmatpush1.bf16.msra.mxu0 0
    %1478 = vmatprep.subr.bf16.mxu0 0
    %1479 = vmatpush1.bf16.msra.mxu0 0
    %1480 = vmatprep.subr.bf16.mxu0 0
    %1481 = vmatpush1.bf16.msra.mxu0 0
    %1482 = vmatprep.subr.bf16.mxu0 0
    %1483 = vmatpush1.bf16.msra.mxu0 0
    %1484 = vmatprep.subr.bf16.mxu0 0
    %1485 = vmatpush1.bf16.msra.mxu0 0
    %1486 = vmatprep.subr.bf16.mxu0 0
    %1487 = vmatpush1.bf16.msra.mxu0 0
    %1488 = vmatprep.subr.bf16.mxu0 0
    %1489 = vmatpush1.bf16.msra.mxu0 %v290
    %1490 = vmatprep.subr.bf16.mxu0 0
    %1491 = vmatpush1.bf16.msra.mxu0 %v289
    %1492 = vmatprep.subr.bf16.mxu0 0
    %1493 = vmatpush2.bf16.msra.mxu0 0
    %1494 = vmatprep.subr.bf16.mxu0 0
    %1495 = vmatpush2.bf16.msra.mxu0 0
    %1496 = vmatprep.subr.bf16.mxu0 0
    %1497 = vmatpush2.bf16.msra.mxu0 0
    %1498 = vmatprep.subr.bf16.mxu0 0
    %1499 = vmatpush2.bf16.msra.mxu0 0
    %1500 = vmatprep.subr.bf16.mxu0 0
    %1501 = vmatpush2.bf16.msra.mxu0 0
    %1502 = vmatprep.subr.bf16.mxu0 0
    %1503 = vmatpush2.bf16.msra.mxu0 0
    %1504 = vmatprep.subr.bf16.mxu0 0
    %1505 = vmatpush2.bf16.msra.mxu0 0
    %1506 = vmatprep.subr.bf16.mxu0 0
    %1507 = vmatpush2.bf16.msra.mxu0 0
    %1508 = vmatprep.mubr.bf16.mxu0 0
    %1509 = vmatmul.mubr.bf16.gmra.mxu0 %v1474
    %v1510 = vpop.f32.mrf.mxu0
    %v1511 = vadd.f32 0.0, %v1510
    %v1512 = vpop.f32.mrf.mxu0
    %v1513 = vpop.f32.mrf.mxu0
    %v1514 = vpop.f32.mrf.mxu0
    %1515 = vdwg.mxu0
    %v1516 = vadd.f32 %v1468, %v1511
    %v1517 = vld [vmem:[%s576] sm:$0xff]
    %v1518 = vxor.u32 %v1467, 2147483648
    %v1519 = vmul.f32 %v1518, 1.442695
    %v1520 = vpow.pop %v1519
    %v1521 = vadd.f32 %v1520, 1.0
    %v1522 = vrcp.pop %v1521
    %v1523 = vmul.f32 1.0, %v1522
    %v1524 = vtanh.pop %v1467
    %v1525 = vmul.f32 %v1523, %v1366
    %1527 = vrot.lane.b32.xlu0 %v1524, 32
    %v1528 = vpop.permute.xlu0 %1527
    %v1530 = vmul.f32 %v1523, %v1528
    %1532 = vrot.lane.b32.xlu0 %v1530, 32
    %v1533 = vpop.permute.xlu0 %1532
    %v1535 = vadd.f32 %v1525, %v1533
    %v1536 = vtanh.pop %v1535
    %1538 = vrot.lane.b32.xlu0 %v1536, 32
    %v1539 = vpop.permute.xlu0 %1538
    %v1541 = vmul.f32 %v1523, %v1539
    %1543 = vset.pattern.permute.xlu0 0
    %1544 = vperm.xlu0 %1543, %v1517
    %v1545 = vpop.permute.xlu0 %1544
    %v1547 = vmul.f32 %v1545, %v1541
    %v1548 = vsub.f32 1.0, %v1517
    %1550 = vset.pattern.permute.xlu0 0
    %1551 = vperm.xlu0 %1550, %v1548
    %v1552 = vpop.permute.xlu0 %1551
    %v1554 = vmul.f32 %v1552, %v1363
    %v1555 = vadd.f32 %v1547, %v1554
    %v1556 = vmul.f32 %v1545, %v1535
    %v1557 = vmul.f32 %v1552, %v1366
    %v1558 = vadd.f32 %v1556, %v1557
    %v1559 = vld [vmem:[%s533] sm:$0xff]
    %v1560 = vxor.u32 %v1516, 2147483648
    %v1561 = vmul.f32 %v1560, 1.442695
    %v1562 = vpow.pop %v1561
    %v1563 = vadd.f32 %v1562, 1.0
    %v1564 = vrcp.pop %v1563
    %v1565 = vmul.f32 1.0, %v1564
    %v1566 = vtanh.pop %v1516
    %v1567 = vmul.f32 %v1565, %v1408
    %1569 = vrot.lane.b32.xlu0 %v1566, 32
    %v1570 = vpop.permute.xlu0 %1569
    %v1572 = vmul.f32 %v1565, %v1570
    %1574 = vrot.lane.b32.xlu0 %v1572, 32
    %v1575 = vpop.permute.xlu0 %1574
    %v1577 = vadd.f32 %v1567, %v1575
    %v1578 = vtanh.pop %v1577
    %1580 = vrot.lane.b32.xlu0 %v1578, 32
    %v1581 = vpop.permute.xlu0 %1580
    %v1583 = vmul.f32 %v1565, %v1581
    %1585 = vset.pattern.permute.xlu0 0
    %1586 = vperm.xlu0 %1585, %v1559
    %v1587 = vpop.permute.xlu0 %1586
    %v1589 = vmul.f32 %v1587, %v1583
    %v1590 = vsub.f32 1.0, %v1559
    %1592 = vset.pattern.permute.xlu0 0
    %1593 = vperm.xlu0 %1592, %v1590
    %v1594 = vpop.permute.xlu0 %1593
    %v1596 = vmul.f32 %v1594, %v1405
    %v1597 = vadd.f32 %v1589, %v1596
    %v1598 = vmul.f32 %v1587, %v1577
    %v1599 = vmul.f32 %v1594, %v1408
    %v1600 = vadd.f32 %v1598, %v1599
    %1602 = vrot.lane.b32.xlu0 %v1555, 64
    %v1603 = vpop.permute.xlu0 %1602
    %1605 = vst.msk [vmem:[%s629] sm:$0xff] %vm107, %v1603
    %1607 = vrot.lane.b32.xlu0 %v1597, 96
    %v1608 = vpop.permute.xlu0 %1607
    %1610 = vst.msk [vmem:[%s623] sm:$0xff] %vm427, %v1608
    %v1611 = vld [vmem:[%s279] sm:$0xff]
    %v1612 = vpack.c.bf16 %v1555, %v1555
    %1614 = vrot.lane.b32.xlu0 %v1612, 64
    %v1615 = vpop.permute.xlu0 %1614
    %v1617 = vsel %vm107, %v1615, 0
    %1619 = vmatprep.subr.bf16.mxu0 0
    %1620 = vmatpush1.bf16.msra.mxu0 0
    %1621 = vmatprep.subr.bf16.mxu0 0
    %1622 = vmatpush1.bf16.msra.mxu0 0
    %1623 = vmatprep.subr.bf16.mxu0 0
    %1624 = vmatpush1.bf16.msra.mxu0 0
    %1625 = vmatprep.subr.bf16.mxu0 0
    %1626 = vmatpush1.bf16.msra.mxu0 0
    %1627 = vmatprep.subr.bf16.mxu0 0
    %1628 = vmatpush1.bf16.msra.mxu0 0
    %1629 = vmatprep.subr.bf16.mxu0 0
    %1630 = vmatpush1.bf16.msra.mxu0 0
    %1631 = vmatprep.subr.bf16.mxu0 0
    %1632 = vmatpush1.bf16.msra.mxu0 %v230
    %1633 = vmatprep.subr.bf16.mxu0 0
    %1634 = vmatpush1.bf16.msra.mxu0 %v229
    %1635 = vmatprep.subr.bf16.mxu0 0
    %1636 = vmatpush2.bf16.msra.mxu0 0
    %1637 = vmatprep.subr.bf16.mxu0 0
    %1638 = vmatpush2.bf16.msra.mxu0 0
    %1639 = vmatprep.subr.bf16.mxu0 0
    %1640 = vmatpush2.bf16.msra.mxu0 0
    %1641 = vmatprep.subr.bf16.mxu0 0
    %1642 = vmatpush2.bf16.msra.mxu0 0
    %1643 = vmatprep.subr.bf16.mxu0 0
    %1644 = vmatpush2.bf16.msra.mxu0 0
    %1645 = vmatprep.subr.bf16.mxu0 0
    %1646 = vmatpush2.bf16.msra.mxu0 0
    %1647 = vmatprep.subr.bf16.mxu0 0
    %1648 = vmatpush2.bf16.msra.mxu0 0
    %1649 = vmatprep.subr.bf16.mxu0 0
    %1650 = vmatpush2.bf16.msra.mxu0 0
    %1651 = vmatprep.mubr.bf16.mxu0 0
    %1652 = vmatmul.mubr.bf16.gmra.mxu0 %v1617
    %v1653 = vpop.f32.mrf.mxu0
    %v1654 = vadd.f32 0.0, %v1653
    %v1655 = vpop.f32.mrf.mxu0
    %v1656 = vpop.f32.mrf.mxu0
    %v1657 = vpop.f32.mrf.mxu0
    %1658 = vdwg.mxu0
    %v1659 = vadd.f32 %v1611, %v1654
    %v1660 = vld [vmem:[%s219 + $0x8] sm:$0xff]
    %v1661 = vpack.c.bf16 %v1597, %v1597
    %1663 = vrot.lane.b32.xlu0 %v1661, 64
    %v1664 = vpop.permute.xlu0 %1663
    %v1666 = vsel %vm107, %v1664, 0
    %1668 = vmatprep.subr.bf16.mxu0 0
    %1669 = vmatpush1.bf16.msra.mxu0 0
    %1670 = vmatprep.subr.bf16.mxu0 0
    %1671 = vmatpush1.bf16.msra.mxu0 0
    %1672 = vmatprep.subr.bf16.mxu0 0
    %1673 = vmatpush1.bf16.msra.mxu0 0
    %1674 = vmatprep.subr.bf16.mxu0 0
    %1675 = vmatpush1.bf16.msra.mxu0 0
    %1676 = vmatprep.subr.bf16.mxu0 0
    %1677 = vmatpush1.bf16.msra.mxu0 0
    %1678 = vmatprep.subr.bf16.mxu0 0
    %1679 = vmatpush1.bf16.msra.mxu0 0
    %1680 = vmatprep.subr.bf16.mxu0 0
    %1681 = vmatpush1.bf16.msra.mxu0 %v290
    %1682 = vmatprep.subr.bf16.mxu0 0
    %1683 = vmatpush1.bf16.msra.mxu0 %v289
    %1684 = vmatprep.subr.bf16.mxu0 0
    %1685 = vmatpush2.bf16.msra.mxu0 0
    %1686 = vmatprep.subr.bf16.mxu0 0
    %1687 = vmatpush2.bf16.msra.mxu0 0
    %1688 = vmatprep.subr.bf16.mxu0 0
    %1689 = vmatpush2.bf16.msra.mxu0 0
    %1690 = vmatprep.subr.bf16.mxu0 0
    %1691 = vmatpush2.bf16.msra.mxu0 0
    %1692 = vmatprep.subr.bf16.mxu0 0
    %1693 = vmatpush2.bf16.msra.mxu0 0
    %1694 = vmatprep.subr.bf16.mxu0 0
    %1695 = vmatpush2.bf16.msra.mxu0 0
    %1696 = vmatprep.subr.bf16.mxu0 0
    %1697 = vmatpush2.bf16.msra.mxu0 0
    %1698 = vmatprep.subr.bf16.mxu0 0
    %1699 = vmatpush2.bf16.msra.mxu0 0
    %1700 = vmatprep.mubr.bf16.mxu0 0
    %1701 = vmatmul.mubr.bf16.gmra.mxu0 %v1666
    %v1702 = vpop.f32.mrf.mxu0
    %v1703 = vadd.f32 0.0, %v1702
    %v1704 = vpop.f32.mrf.mxu0
    %v1705 = vpop.f32.mrf.mxu0
    %v1706 = vpop.f32.mrf.mxu0
    %1707 = vdwg.mxu0
    %v1708 = vadd.f32 %v1660, %v1703
    %v1709 = vld [vmem:[%s375] sm:$0xff]
    %v1710 = vxor.u32 %v1659, 2147483648
    %v1711 = vmul.f32 %v1710, 1.442695
    %v1712 = vpow.pop %v1711
    %v1713 = vadd.f32 %v1712, 1.0
    %v1714 = vrcp.pop %v1713
    %v1715 = vmul.f32 1.0, %v1714
    %v1716 = vtanh.pop %v1659
    %v1717 = vmul.f32 %v1715, %v1558
    %1719 = vrot.lane.b32.xlu0 %v1716, 32
    %v1720 = vpop.permute.xlu0 %1719
    %v1722 = vmul.f32 %v1715, %v1720
    %1724 = vrot.lane.b32.xlu0 %v1722, 32
    %v1725 = vpop.permute.xlu0 %1724
    %v1727 = vadd.f32 %v1717, %v1725
    %v1728 = vtanh.pop %v1727
    %1730 = vrot.lane.b32.xlu0 %v1728, 32
    %v1731 = vpop.permute.xlu0 %1730
    %v1733 = vmul.f32 %v1715, %v1731
    %1735 = vset.pattern.permute.xlu0 0
    %1736 = vperm.xlu0 %1735, %v1709
    %v1737 = vpop.permute.xlu0 %1736
    %v1739 = vmul.f32 %v1737, %v1733
    %v1740 = vsub.f32 1.0, %v1709
    %1742 = vset.pattern.permute.xlu0 0
    %1743 = vperm.xlu0 %1742, %v1740
    %v1744 = vpop.permute.xlu0 %1743
    %v1746 = vmul.f32 %v1744, %v1555
    %v1747 = vadd.f32 %v1739, %v1746
    %v1748 = vmul.f32 %v1737, %v1727
    %v1749 = vmul.f32 %v1744, %v1558
    %v1750 = vadd.f32 %v1748, %v1749
    %v1751 = vld [vmem:[%s1] sm:$0xff]
    %v1752 = vxor.u32 %v1708, 2147483648
    %v1753 = vmul.f32 %v1752, 1.442695
    %v1754 = vpow.pop %v1753
    %v1755 = vadd.f32 %v1754, 1.0
    %v1756 = vrcp.pop %v1755
    %v1757 = vmul.f32 1.0, %v1756
    %v1758 = vtanh.pop %v1708
    %v1759 = vmul.f32 %v1757, %v1600
    %1761 = vrot.lane.b32.xlu0 %v1758, 32
    %v1762 = vpop.permute.xlu0 %1761
    %v1764 = vmul.f32 %v1757, %v1762
    %1766 = vrot.lane.b32.xlu0 %v1764, 32
    %v1767 = vpop.permute.xlu0 %1766
    %v1769 = vadd.f32 %v1759, %v1767
    %v1770 = vtanh.pop %v1769
    %1772 = vrot.lane.b32.xlu0 %v1770, 32
    %v1773 = vpop.permute.xlu0 %1772
    %v1775 = vmul.f32 %v1757, %v1773
    %1777 = vset.pattern.permute.xlu0 0
    %1778 = vperm.xlu0 %1777, %v1751
    %v1779 = vpop.permute.xlu0 %1778
    %v1781 = vmul.f32 %v1779, %v1775
    %v1782 = vsub.f32 1.0, %v1751
    %1784 = vset.pattern.permute.xlu0 0
    %1785 = vperm.xlu0 %1784, %v1782
    %v1786 = vpop.permute.xlu0 %1785
    %v1788 = vmul.f32 %v1786, %v1597
    %v1789 = vadd.f32 %v1781, %v1788
    %v1790 = vmul.f32 %v1779, %v1769
    %v1791 = vmul.f32 %v1786, %v1600
    %v1792 = vadd.f32 %v1790, %v1791
    %1794 = vrot.lane.b32.xlu0 %v1747, 64
    %v1795 = vpop.permute.xlu0 %1794
    %1797 = vst.msk [vmem:[%s426] sm:$0xff] %vm107, %v1795
    %1799 = vrot.lane.b32.xlu0 %v1789, 96
    %v1800 = vpop.permute.xlu0 %1799
    %1802 = vst.msk [vmem:[#allocation3] sm:$0xff] %vm427, %v1800
    %v1803 = vld [vmem:[#allocation3] sm:$0xff]
    %v1804 = vld [vmem:[#allocation3 + $0x8] sm:$0xff]
    %v1805 = vld [vmem:[#allocation3 + $0x10] sm:$0xff]
    %v1806 = vld [vmem:[#allocation3 + $0x18] sm:$0xff]
    %v1807 = vld [vmem:[#allocation3 + $0x20] sm:$0xff]
    %v1808 = vld [vmem:[#allocation3 + $0x28] sm:$0xff]
    %v1809 = vld [vmem:[#allocation3 + $0x30] sm:$0xff]
    %v1810 = vld [vmem:[#allocation3 + $0x38] sm:$0xff]
    %v1811 = vpack.c.bf16 %v1804, %v1803
    %v1812 = vpack.c.bf16 %v1806, %v1805
    %v1813 = vpack.c.bf16 %v1808, %v1807
    %v1814 = vpack.c.bf16 %v1810, %v1809
    %v1815 = vld [vmem:[%s6] sm:$0xff]
    %v1816 = vld [vmem:[%s6 + $0x8] sm:$0xff]
    %v1817 = vld [vmem:[%s6 + $0x10] sm:$0xff]
    %v1818 = vld [vmem:[%s6 + $0x18] sm:$0xff]
    %v1819 = vld [vmem:[%s6 + $0x20] sm:$0xff]
    %v1820 = vld [vmem:[%s6 + $0x28] sm:$0xff]
    %v1821 = vld [vmem:[%s6 + $0x30] sm:$0xff]
    %v1822 = vld [vmem:[%s6 + $0x38] sm:$0xff]
    %v1823 = vld [vmem:[%s9] sm:$0x3]
    %v1825 = vlaneseq
    %v1826 = vshrl.u32 %v1825, 7
    %v1827 = vsub.s32 0, %v1826
    %v1828 = vrot.slane %v1823, %v1827
    %v1829 = vlaneseq
    %v1830 = vshrl.u32 %v1829, 7
    %v1831 = vsub.s32 1, %v1830
    %v1832 = vrot.slane %v1823, %v1831
    %v1843 = vunpack.c.l.b16 %v1815
    %v1844 = vunpack.c.h.b16 %v1815
    %v1845 = vunpack.c.l.b16 %v1816
    %v1846 = vunpack.c.h.b16 %v1816
    %v1847 = vunpack.c.l.b16 %v1817
    %v1848 = vunpack.c.h.b16 %v1817
    %v1849 = vunpack.c.l.b16 %v1818
    %v1850 = vunpack.c.h.b16 %v1818
    %v1851 = vunpack.c.l.b16 %v1819
    %v1852 = vunpack.c.h.b16 %v1819
    %v1853 = vunpack.c.l.b16 %v1820
    %v1854 = vunpack.c.h.b16 %v1820
    %v1855 = vunpack.c.l.b16 %v1821
    %v1856 = vunpack.c.h.b16 %v1821
    %v1857 = vunpack.c.l.b16 %v1822
    %v1858 = vunpack.c.h.b16 %v1822
    %v1859 = vpack.c.b16 %v1845, %v1843
    %v1860 = vpack.c.b16 %v1846, %v1844
    %v1861 = vpack.c.b16 %v1849, %v1847
    %v1862 = vpack.c.b16 %v1850, %v1848
    %v1863 = vpack.c.b16 %v1853, %v1851
    %v1864 = vpack.c.b16 %v1854, %v1852
    %v1865 = vpack.c.b16 %v1857, %v1855
    %v1866 = vpack.c.b16 %v1858, %v1856
    %vm1875 = vcmask 523264
    %v1877 = vsel %vm1875, %v1811, 0
    %v1880 = vsel %vm1875, %v1812, 0
    %v1883 = vsel %vm1875, %v1813, 0
    %v1886 = vsel %vm1875, %v1814, 0
    %1888 = vmatprep.subr.bf16.mxu0 0
    %1889 = vmatpush1.bf16.msra.mxu0 0
    %1890 = vmatprep.subr.bf16.mxu0 0
    %1891 = vmatpush1.bf16.msra.mxu0 0
    %1892 = vmatprep.subr.bf16.mxu0 0
    %1893 = vmatpush1.bf16.msra.mxu0 0
    %1894 = vmatprep.subr.bf16.mxu0 0
    %1895 = vmatpush1.bf16.msra.mxu0 0
    %1896 = vmatprep.subr.bf16.mxu0 %v1866
    %1897 = vmatpush1.bf16.msra.mxu0 %v1865
    %1898 = vmatprep.subr.bf16.mxu0 %v1864
    %1899 = vmatpush1.bf16.msra.mxu0 %v1863
    %1900 = vmatprep.subr.bf16.mxu0 %v1862
    %1901 = vmatpush1.bf16.msra.mxu0 %v1861
    %1902 = vmatprep.subr.bf16.mxu0 %v1860
    %1903 = vmatpush1.bf16.msra.mxu0 %v1859
    %1904 = vmatprep.subr.bf16.mxu0 0
    %1905 = vmatpush2.bf16.msra.mxu0 0
    %1906 = vmatprep.subr.bf16.mxu0 0
    %1907 = vmatpush2.bf16.msra.mxu0 0
    %1908 = vmatprep.subr.bf16.mxu0 0
    %1909 = vmatpush2.bf16.msra.mxu0 0
    %1910 = vmatprep.subr.bf16.mxu0 0
    %1911 = vmatpush2.bf16.msra.mxu0 0
    %1912 = vmatprep.subr.bf16.mxu0 0
    %1913 = vmatpush2.bf16.msra.mxu0 0
    %1914 = vmatprep.subr.bf16.mxu0 0
    %1915 = vmatpush2.bf16.msra.mxu0 0
    %1916 = vmatprep.subr.bf16.mxu0 0
    %1917 = vmatpush2.bf16.msra.mxu0 0
    %1918 = vmatprep.subr.bf16.mxu0 0
    %1919 = vmatpush2.bf16.msra.mxu0 0
    %1920 = vmatprep.mubr.bf16.mxu0 0
    %1921 = vmatmul.mubr.bf16.gmra.mxu0 %v1877
    %v1922 = vpop.f32.mrf.mxu0
    %v1923 = vadd.f32 %v1828, %v1922
    %v1924 = vpop.f32.mrf.mxu0
    %v1925 = vadd.f32 %v1832, %v1924
    %v1926 = vpop.f32.mrf.mxu0
    %v1927 = vadd.f32 %v1828, %v1926
    %v1928 = vpop.f32.mrf.mxu0
    %v1929 = vadd.f32 %v1832, %v1928
    %1930 = vmatprep.mubr.bf16.mxu0 0
    %1931 = vmatmul.mubr.bf16.gmra.mxu0 %v1880
    %v1932 = vpop.f32.mrf.mxu0
    %v1933 = vadd.f32 %v1828, %v1932
    %v1934 = vpop.f32.mrf.mxu0
    %v1935 = vadd.f32 %v1832, %v1934
    %v1936 = vpop.f32.mrf.mxu0
    %v1937 = vadd.f32 %v1828, %v1936
    %v1938 = vpop.f32.mrf.mxu0
    %v1939 = vadd.f32 %v1832, %v1938
    %1940 = vmatprep.mubr.bf16.mxu0 0
    %1941 = vmatmul.mubr.bf16.gmra.mxu0 %v1883
    %v1942 = vpop.f32.mrf.mxu0
    %v1943 = vadd.f32 %v1828, %v1942
    %v1944 = vpop.f32.mrf.mxu0
    %v1945 = vadd.f32 %v1832, %v1944
    %v1946 = vpop.f32.mrf.mxu0
    %v1947 = vadd.f32 %v1828, %v1946
    %v1948 = vpop.f32.mrf.mxu0
    %v1949 = vadd.f32 %v1832, %v1948
    %1950 = vmatprep.mubr.bf16.mxu0 0
    %1951 = vmatmul.mubr.bf16.gmra.mxu0 %v1886
    %v1952 = vpop.f32.mrf.mxu0
    %v1953 = vadd.f32 %v1828, %v1952
    %v1954 = vpop.f32.mrf.mxu0
    %v1955 = vadd.f32 %v1832, %v1954
    %v1956 = vpop.f32.mrf.mxu0
    %v1957 = vadd.f32 %v1828, %v1956
    %v1958 = vpop.f32.mrf.mxu0
    %v1959 = vadd.f32 %v1832, %v1958
    %1960 = vdwg.mxu0
    %1961 = vst [vmem:[#allocation2] sm:$0xff] %v1923
    %1962 = vst [vmem:[#allocation2 + $0x8] sm:$0xff] %v1925
    %1963 = vst [vmem:[#allocation2 + $0x10] sm:$0xff] %v1927
    %1964 = vst [vmem:[#allocation2 + $0x18] sm:$0xff] %v1929
    %1965 = vst [vmem:[#allocation2 + $0x20] sm:$0xff] %v1933
    %1966 = vst [vmem:[#allocation2 + $0x28] sm:$0xff] %v1935
    %1967 = vst [vmem:[#allocation2 + $0x30] sm:$0xff] %v1937
    %1968 = vst [vmem:[#allocation2 + $0x38] sm:$0xff] %v1939
    %1969 = vst [vmem:[#allocation2 + $0x40] sm:$0xff] %v1943
    %1970 = vst [vmem:[#allocation2 + $0x48] sm:$0xff] %v1945
    %1971 = vst [vmem:[#allocation2 + $0x50] sm:$0xff] %v1947
    %1972 = vst [vmem:[#allocation2 + $0x58] sm:$0xff] %v1949
    %1973 = vst [vmem:[#allocation2 + $0x60] sm:$0xff] %v1953
    %1974 = vst [vmem:[#allocation2 + $0x68] sm:$0xff] %v1955
    %1975 = vst [vmem:[#allocation2 + $0x70] sm:$0xff] %v1957
    %1976 = vst [vmem:[#allocation2 + $0x78] sm:$0xff] %v1959
    %v1977 = vld [vmem:[%s7] sm:$0xf]
    %v1978 = vld [vmem:[%s7 + $0x4] sm:$0xf]
    %v1979 = vld [vmem:[%s7 + $0x8] sm:$0xf]
    %v1980 = vld [vmem:[%s7 + $0xc] sm:$0xf]
    %v1981 = vld [vmem:[%s8] sm:$0xf]
    %v1982 = vld [vmem:[%s8 + $0x4] sm:$0xf]
    %v1983 = vld [vmem:[%s8 + $0x8] sm:$0xf]
    %v1984 = vld [vmem:[%s8 + $0xc] sm:$0xf]
    %v1985 = vld [vmem:[%s219] sm:$0xff]
    %v1990 = vunpack.c.l.b16 %v1977
    %v1991 = vunpack.c.l.b16 %v1978
    %v1992 = vunpack.c.l.b16 %v1979
    %v1993 = vunpack.c.l.b16 %v1980
    %v1994 = vpack.c.b16 %v1991, %v1990
    %v1995 = vpack.c.b16 %v1993, %v1992
    %1998 = vmatprep.subr.bf16.mxu0 0
    %1999 = vmatpush1.bf16.msra.mxu0 0
    %2000 = vmatprep.subr.bf16.mxu0 0
    %2001 = vmatpush1.bf16.msra.mxu0 0
    %2002 = vmatprep.subr.bf16.mxu0 0
    %2003 = vmatpush1.bf16.msra.mxu0 0
    %2004 = vmatprep.subr.bf16.mxu0 0
    %2005 = vmatpush1.bf16.msra.mxu0 0
    %2006 = vmatprep.subr.bf16.mxu0 0
    %2007 = vmatpush1.bf16.msra.mxu0 0
    %2008 = vmatprep.subr.bf16.mxu0 0
    %2009 = vmatpush1.bf16.msra.mxu0 0
    %2010 = vmatprep.subr.bf16.mxu0 0
    %2011 = vmatpush1.bf16.msra.mxu0 %v1995
    %2012 = vmatprep.subr.bf16.mxu0 0
    %2013 = vmatpush1.bf16.msra.mxu0 %v1994
    %2014 = vmatprep.subr.bf16.mxu0 0
    %2015 = vmatpush2.bf16.msra.mxu0 0
    %2016 = vmatprep.subr.bf16.mxu0 0
    %2017 = vmatpush2.bf16.msra.mxu0 0
    %2018 = vmatprep.subr.bf16.mxu0 0
    %2019 = vmatpush2.bf16.msra.mxu0 0
    %2020 = vmatprep.subr.bf16.mxu0 0
    %2021 = vmatpush2.bf16.msra.mxu0 0
    %2022 = vmatprep.subr.bf16.mxu0 0
    %2023 = vmatpush2.bf16.msra.mxu0 0
    %2024 = vmatprep.subr.bf16.mxu0 0
    %2025 = vmatpush2.bf16.msra.mxu0 0
    %2026 = vmatprep.subr.bf16.mxu0 0
    %2027 = vmatpush2.bf16.msra.mxu0 0
    %2028 = vmatprep.subr.bf16.mxu0 0
    %2029 = vmatpush2.bf16.msra.mxu0 0
    %2030 = vmatprep.mubr.bf16.mxu0 0
    %2031 = vmatmul.mubr.bf16.gmra.mxu0 %v234
    %v2032 = vpop.f32.mrf.mxu0
    %v2033 = vadd.f32 0.0, %v2032
    %v2034 = vpop.f32.mrf.mxu0
    %v2035 = vpop.f32.mrf.mxu0
    %v2036 = vpop.f32.mrf.mxu0
    %2037 = vdwg.mxu0
    %v2038 = vadd.f32 %v1985, %v2033
    %v2039 = vld [vmem:[%s279 + $0x8] sm:$0xff]
    %v2044 = vunpack.c.l.b16 %v1981
    %v2045 = vunpack.c.l.b16 %v1982
    %v2046 = vunpack.c.l.b16 %v1983
    %v2047 = vunpack.c.l.b16 %v1984
    %v2048 = vpack.c.b16 %v2045, %v2044
    %v2049 = vpack.c.b16 %v2047, %v2046
    %2052 = vmatprep.subr.bf16.mxu0 0
    %2053 = vmatpush1.bf16.msra.mxu0 0
    %2054 = vmatprep.subr.bf16.mxu0 0
    %2055 = vmatpush1.bf16.msra.mxu0 0
    %2056 = vmatprep.subr.bf16.mxu0 0
    %2057 = vmatpush1.bf16.msra.mxu0 0
    %2058 = vmatprep.subr.bf16.mxu0 0
    %2059 = vmatpush1.bf16.msra.mxu0 0
    %2060 = vmatprep.subr.bf16.mxu0 0
    %2061 = vmatpush1.bf16.msra.mxu0 0
    %2062 = vmatprep.subr.bf16.mxu0 0
    %2063 = vmatpush1.bf16.msra.mxu0 0
    %2064 = vmatprep.subr.bf16.mxu0 0
    %2065 = vmatpush1.bf16.msra.mxu0 %v2049
    %2066 = vmatprep.subr.bf16.mxu0 0
    %2067 = vmatpush1.bf16.msra.mxu0 %v2048
    %2068 = vmatprep.subr.bf16.mxu0 0
    %2069 = vmatpush2.bf16.msra.mxu0 0
    %2070 = vmatprep.subr.bf16.mxu0 0
    %2071 = vmatpush2.bf16.msra.mxu0 0
    %2072 = vmatprep.subr.bf16.mxu0 0
    %2073 = vmatpush2.bf16.msra.mxu0 0
    %2074 = vmatprep.subr.bf16.mxu0 0
    %2075 = vmatpush2.bf16.msra.mxu0 0
    %2076 = vmatprep.subr.bf16.mxu0 0
    %2077 = vmatpush2.bf16.msra.mxu0 0
    %2078 = vmatprep.subr.bf16.mxu0 0
    %2079 = vmatpush2.bf16.msra.mxu0 0
    %2080 = vmatprep.subr.bf16.mxu0 0
    %2081 = vmatpush2.bf16.msra.mxu0 0
    %2082 = vmatprep.subr.bf16.mxu0 0
    %2083 = vmatpush2.bf16.msra.mxu0 0
    %2084 = vmatprep.mubr.bf16.mxu0 0
    %2085 = vmatmul.mubr.bf16.gmra.mxu0 %v234
    %v2086 = vpop.f32.mrf.mxu0
    %v2087 = vadd.f32 0.0, %v2086
    %v2088 = vpop.f32.mrf.mxu0
    %v2089 = vpop.f32.mrf.mxu0
    %v2090 = vpop.f32.mrf.mxu0
    %2091 = vdwg.mxu0
    %v2092 = vadd.f32 %v2039, %v2087
    %v2093 = vld [vmem:[%s1] sm:$0xff]
    %v2094 = vxor.u32 %v2038, 2147483648
    %v2095 = vmul.f32 %v2094, 1.442695
    %v2096 = vpow.pop %v2095
    %v2097 = vadd.f32 %v2096, 1.0
    %v2098 = vrcp.pop %v2097
    %v2099 = vmul.f32 1.0, %v2098
    %v2100 = vtanh.pop %v2038
    %v2101 = vmul.f32 %v2099, 0.0
    %2103 = vrot.lane.b32.xlu0 %v2100, 32
    %v2104 = vpop.permute.xlu0 %2103
    %v2106 = vmul.f32 %v2099, %v2104
    %2108 = vrot.lane.b32.xlu0 %v2106, 32
    %v2109 = vpop.permute.xlu0 %2108
    %v2111 = vadd.f32 %v2101, %v2109
    %v2112 = vtanh.pop %v2111
    %2114 = vrot.lane.b32.xlu0 %v2112, 32
    %v2115 = vpop.permute.xlu0 %2114
    %v2117 = vmul.f32 %v2099, %v2115
    %2119 = vset.pattern.permute.xlu0 0
    %2120 = vperm.xlu0 %2119, %v2093
    %v2121 = vpop.permute.xlu0 %2120
    %v2123 = vmul.f32 %v2121, %v2117
    %v2124 = vsub.f32 1.0, %v2093
    %2126 = vset.pattern.permute.xlu0 0
    %2127 = vperm.xlu0 %2126, %v2124
    %v2128 = vpop.permute.xlu0 %2127
    %v2130 = vmul.f32 %v2128, 0.0
    %v2131 = vadd.f32 %v2123, %v2130
    %v2132 = vmul.f32 %v2121, %v2111
    %v2133 = vadd.f32 %v2132, %v2130
    %v2134 = vld [vmem:[%s375] sm:$0xff]
    %v2135 = vxor.u32 %v2092, 2147483648
    %v2136 = vmul.f32 %v2135, 1.442695
    %v2137 = vpow.pop %v2136
    %v2138 = vadd.f32 %v2137, 1.0
    %v2139 = vrcp.pop %v2138
    %v2140 = vmul.f32 1.0, %v2139
    %v2141 = vtanh.pop %v2092
    %v2142 = vmul.f32 %v2140, 0.0
    %2144 = vrot.lane.b32.xlu0 %v2141, 32
    %v2145 = vpop.permute.xlu0 %2144
    %v2147 = vmul.f32 %v2140, %v2145
    %2149 = vrot.lane.b32.xlu0 %v2147, 32
    %v2150 = vpop.permute.xlu0 %2149
    %v2152 = vadd.f32 %v2142, %v2150
    %v2153 = vtanh.pop %v2152
    %2155 = vrot.lane.b32.xlu0 %v2153, 32
    %v2156 = vpop.permute.xlu0 %2155
    %v2158 = vmul.f32 %v2140, %v2156
    %2160 = vset.pattern.permute.xlu0 0
    %2161 = vperm.xlu0 %2160, %v2134
    %v2162 = vpop.permute.xlu0 %2161
    %v2164 = vmul.f32 %v2162, %v2158
    %v2165 = vsub.f32 1.0, %v2134
    %2167 = vset.pattern.permute.xlu0 0
    %2168 = vperm.xlu0 %2167, %v2165
    %v2169 = vpop.permute.xlu0 %2168
    %v2171 = vmul.f32 %v2169, 0.0
    %v2172 = vadd.f32 %v2164, %v2171
    %v2173 = vmul.f32 %v2162, %v2152
    %v2174 = vadd.f32 %v2173, %v2171
    %v2175 = vld [vmem:[%s431] sm:$0xff]
    %v2176 = vpack.c.bf16 %v2131, %v2131
    %2178 = vrot.lane.b32.xlu0 %v2176, 64
    %v2179 = vpop.permute.xlu0 %2178
    %v2181 = vsel %vm107, %v2179, 0
    %2183 = vmatprep.subr.bf16.mxu0 0
    %2184 = vmatpush1.bf16.msra.mxu0 0
    %2185 = vmatprep.subr.bf16.mxu0 0
    %2186 = vmatpush1.bf16.msra.mxu0 0
    %2187 = vmatprep.subr.bf16.mxu0 0
    %2188 = vmatpush1.bf16.msra.mxu0 0
    %2189 = vmatprep.subr.bf16.mxu0 0
    %2190 = vmatpush1.bf16.msra.mxu0 0
    %2191 = vmatprep.subr.bf16.mxu0 0
    %2192 = vmatpush1.bf16.msra.mxu0 0
    %2193 = vmatprep.subr.bf16.mxu0 0
    %2194 = vmatpush1.bf16.msra.mxu0 0
    %2195 = vmatprep.subr.bf16.mxu0 0
    %2196 = vmatpush1.bf16.msra.mxu0 %v1995
    %2197 = vmatprep.subr.bf16.mxu0 0
    %2198 = vmatpush1.bf16.msra.mxu0 %v1994
    %2199 = vmatprep.subr.bf16.mxu0 0
    %2200 = vmatpush2.bf16.msra.mxu0 0
    %2201 = vmatprep.subr.bf16.mxu0 0
    %2202 = vmatpush2.bf16.msra.mxu0 0
    %2203 = vmatprep.subr.bf16.mxu0 0
    %2204 = vmatpush2.bf16.msra.mxu0 0
    %2205 = vmatprep.subr.bf16.mxu0 0
    %2206 = vmatpush2.bf16.msra.mxu0 0
    %2207 = vmatprep.subr.bf16.mxu0 0
    %2208 = vmatpush2.bf16.msra.mxu0 0
    %2209 = vmatprep.subr.bf16.mxu0 0
    %2210 = vmatpush2.bf16.msra.mxu0 0
    %2211 = vmatprep.subr.bf16.mxu0 0
    %2212 = vmatpush2.bf16.msra.mxu0 0
    %2213 = vmatprep.subr.bf16.mxu0 0
    %2214 = vmatpush2.bf16.msra.mxu0 0
    %2215 = vmatprep.mubr.bf16.mxu0 0
    %2216 = vmatmul.mubr.bf16.gmra.mxu0 %v2181
    %v2217 = vpop.f32.mrf.mxu0
    %v2218 = vadd.f32 0.0, %v2217
    %v2219 = vpop.f32.mrf.mxu0
    %v2220 = vpop.f32.mrf.mxu0
    %v2221 = vpop.f32.mrf.mxu0
    %2222 = vdwg.mxu0
    %v2223 = vadd.f32 %v2175, %v2218
    %v2224 = vld [vmem:[%s483 + $0x8] sm:$0xff]
    %v2225 = vpack.c.bf16 %v2172, %v2172
    %2227 = vrot.lane.b32.xlu0 %v2225, 64
    %v2228 = vpop.permute.xlu0 %2227
    %v2230 = vsel %vm107, %v2228, 0
    %2232 = vmatprep.subr.bf16.mxu0 0
    %2233 = vmatpush1.bf16.msra.mxu0 0
    %2234 = vmatprep.subr.bf16.mxu0 0
    %2235 = vmatpush1.bf16.msra.mxu0 0
    %2236 = vmatprep.subr.bf16.mxu0 0
    %2237 = vmatpush1.bf16.msra.mxu0 0
    %2238 = vmatprep.subr.bf16.mxu0 0
    %2239 = vmatpush1.bf16.msra.mxu0 0
    %2240 = vmatprep.subr.bf16.mxu0 0
    %2241 = vmatpush1.bf16.msra.mxu0 0
    %2242 = vmatprep.subr.bf16.mxu0 0
    %2243 = vmatpush1.bf16.msra.mxu0 0
    %2244 = vmatprep.subr.bf16.mxu0 0
    %2245 = vmatpush1.bf16.msra.mxu0 %v2049
    %2246 = vmatprep.subr.bf16.mxu0 0
    %2247 = vmatpush1.bf16.msra.mxu0 %v2048
    %2248 = vmatprep.subr.bf16.mxu0 0
    %2249 = vmatpush2.bf16.msra.mxu0 0
    %2250 = vmatprep.subr.bf16.mxu0 0
    %2251 = vmatpush2.bf16.msra.mxu0 0
    %2252 = vmatprep.subr.bf16.mxu0 0
    %2253 = vmatpush2.bf16.msra.mxu0 0
    %2254 = vmatprep.subr.bf16.mxu0 0
    %2255 = vmatpush2.bf16.msra.mxu0 0
    %2256 = vmatprep.subr.bf16.mxu0 0
    %2257 = vmatpush2.bf16.msra.mxu0 0
    %2258 = vmatprep.subr.bf16.mxu0 0
    %2259 = vmatpush2.bf16.msra.mxu0 0
    %2260 = vmatprep.subr.bf16.mxu0 0
    %2261 = vmatpush2.bf16.msra.mxu0 0
    %2262 = vmatprep.subr.bf16.mxu0 0
    %2263 = vmatpush2.bf16.msra.mxu0 0
    %2264 = vmatprep.mubr.bf16.mxu0 0
    %2265 = vmatmul.mubr.bf16.gmra.mxu0 %v2230
    %v2266 = vpop.f32.mrf.mxu0
    %v2267 = vadd.f32 0.0, %v2266
    %v2268 = vpop.f32.mrf.mxu0
    %v2269 = vpop.f32.mrf.mxu0
    %v2270 = vpop.f32.mrf.mxu0
    %2271 = vdwg.mxu0
    %v2272 = vadd.f32 %v2224, %v2267
    %v2273 = vld [vmem:[%s533] sm:$0xff]
    %v2274 = vxor.u32 %v2223, 2147483648
    %v2275 = vmul.f32 %v2274, 1.442695
    %v2276 = vpow.pop %v2275
    %v2277 = vadd.f32 %v2276, 1.0
    %v2278 = vrcp.pop %v2277
    %v2279 = vmul.f32 1.0, %v2278
    %v2280 = vtanh.pop %v2223
    %v2281 = vmul.f32 %v2279, %v2133
    %2283 = vrot.lane.b32.xlu0 %v2280, 32
    %v2284 = vpop.permute.xlu0 %2283
    %v2286 = vmul.f32 %v2279, %v2284
    %2288 = vrot.lane.b32.xlu0 %v2286, 32
    %v2289 = vpop.permute.xlu0 %2288
    %v2291 = vadd.f32 %v2281, %v2289
    %v2292 = vtanh.pop %v2291
    %2294 = vrot.lane.b32.xlu0 %v2292, 32
    %v2295 = vpop.permute.xlu0 %2294
    %v2297 = vmul.f32 %v2279, %v2295
    %2299 = vset.pattern.permute.xlu0 0
    %2300 = vperm.xlu0 %2299, %v2273
    %v2301 = vpop.permute.xlu0 %2300
    %v2303 = vmul.f32 %v2301, %v2297
    %v2304 = vsub.f32 1.0, %v2273
    %2306 = vset.pattern.permute.xlu0 0
    %2307 = vperm.xlu0 %2306, %v2304
    %v2308 = vpop.permute.xlu0 %2307
    %v2310 = vmul.f32 %v2308, %v2131
    %v2311 = vadd.f32 %v2303, %v2310
    %v2312 = vmul.f32 %v2301, %v2291
    %v2313 = vmul.f32 %v2308, %v2133
    %v2314 = vadd.f32 %v2312, %v2313
    %v2315 = vld [vmem:[%s576] sm:$0xff]
    %v2316 = vxor.u32 %v2272, 2147483648
    %v2317 = vmul.f32 %v2316, 1.442695
    %v2318 = vpow.pop %v2317
    %v2319 = vadd.f32 %v2318, 1.0
    %v2320 = vrcp.pop %v2319
    %v2321 = vmul.f32 1.0, %v2320
    %v2322 = vtanh.pop %v2272
    %v2323 = vmul.f32 %v2321, %v2174
    %2325 = vrot.lane.b32.xlu0 %v2322, 32
    %v2326 = vpop.permute.xlu0 %2325
    %v2328 = vmul.f32 %v2321, %v2326
    %2330 = vrot.lane.b32.xlu0 %v2328, 32
    %v2331 = vpop.permute.xlu0 %2330
    %v2333 = vadd.f32 %v2323, %v2331
    %v2334 = vtanh.pop %v2333
    %2336 = vrot.lane.b32.xlu0 %v2334, 32
    %v2337 = vpop.permute.xlu0 %2336
    %v2339 = vmul.f32 %v2321, %v2337
    %2341 = vset.pattern.permute.xlu0 0
    %2342 = vperm.xlu0 %2341, %v2315
    %v2343 = vpop.permute.xlu0 %2342
    %v2345 = vmul.f32 %v2343, %v2339
    %v2346 = vsub.f32 1.0, %v2315
    %2348 = vset.pattern.permute.xlu0 0
    %2349 = vperm.xlu0 %2348, %v2346
    %v2350 = vpop.permute.xlu0 %2349
    %v2352 = vmul.f32 %v2350, %v2172
    %v2353 = vadd.f32 %v2345, %v2352
    %v2354 = vmul.f32 %v2343, %v2333
    %v2355 = vmul.f32 %v2350, %v2174
    %v2356 = vadd.f32 %v2354, %v2355
    %v2357 = vld [vmem:[%s633] sm:$0xff]
    %v2358 = vpack.c.bf16 %v2311, %v2311
    %2360 = vrot.lane.b32.xlu0 %v2358, 64
    %v2361 = vpop.permute.xlu0 %2360
    %v2363 = vsel %vm107, %v2361, 0
    %2365 = vmatprep.subr.bf16.mxu0 0
    %2366 = vmatpush1.bf16.msra.mxu0 0
    %2367 = vmatprep.subr.bf16.mxu0 0
    %2368 = vmatpush1.bf16.msra.mxu0 0
    %2369 = vmatprep.subr.bf16.mxu0 0
    %2370 = vmatpush1.bf16.msra.mxu0 0
    %2371 = vmatprep.subr.bf16.mxu0 0
    %2372 = vmatpush1.bf16.msra.mxu0 0
    %2373 = vmatprep.subr.bf16.mxu0 0
    %2374 = vmatpush1.bf16.msra.mxu0 0
    %2375 = vmatprep.subr.bf16.mxu0 0
    %2376 = vmatpush1.bf16.msra.mxu0 0
    %2377 = vmatprep.subr.bf16.mxu0 0
    %2378 = vmatpush1.bf16.msra.mxu0 %v1995
    %2379 = vmatprep.subr.bf16.mxu0 0
    %2380 = vmatpush1.bf16.msra.mxu0 %v1994
    %2381 = vmatprep.subr.bf16.mxu0 0
    %2382 = vmatpush2.bf16.msra.mxu0 0
    %2383 = vmatprep.subr.bf16.mxu0 0
    %2384 = vmatpush2.bf16.msra.mxu0 0
    %2385 = vmatprep.subr.bf16.mxu0 0
    %2386 = vmatpush2.bf16.msra.mxu0 0
    %2387 = vmatprep.subr.bf16.mxu0 0
    %2388 = vmatpush2.bf16.msra.mxu0 0
    %2389 = vmatprep.subr.bf16.mxu0 0
    %2390 = vmatpush2.bf16.msra.mxu0 0
    %2391 = vmatprep.subr.bf16.mxu0 0
    %2392 = vmatpush2.bf16.msra.mxu0 0
    %2393 = vmatprep.subr.bf16.mxu0 0
    %2394 = vmatpush2.bf16.msra.mxu0 0
    %2395 = vmatprep.subr.bf16.mxu0 0
    %2396 = vmatpush2.bf16.msra.mxu0 0
    %2397 = vmatprep.mubr.bf16.mxu0 0
    %2398 = vmatmul.mubr.bf16.gmra.mxu0 %v2363
    %v2399 = vpop.f32.mrf.mxu0
    %v2400 = vadd.f32 0.0, %v2399
    %v2401 = vpop.f32.mrf.mxu0
    %v2402 = vpop.f32.mrf.mxu0
    %v2403 = vpop.f32.mrf.mxu0
    %2404 = vdwg.mxu0
    %v2405 = vadd.f32 %v2357, %v2400
    %v2406 = vld [vmem:[%s685 + $0x8] sm:$0xff]
    %v2407 = vpack.c.bf16 %v2353, %v2353
    %2409 = vrot.lane.b32.xlu0 %v2407, 64
    %v2410 = vpop.permute.xlu0 %2409
    %v2412 = vsel %vm107, %v2410, 0
    %2414 = vmatprep.subr.bf16.mxu0 0
    %2415 = vmatpush1.bf16.msra.mxu0 0
    %2416 = vmatprep.subr.bf16.mxu0 0
    %2417 = vmatpush1.bf16.msra.mxu0 0
    %2418 = vmatprep.subr.bf16.mxu0 0
    %2419 = vmatpush1.bf16.msra.mxu0 0
    %2420 = vmatprep.subr.bf16.mxu0 0
    %2421 = vmatpush1.bf16.msra.mxu0 0
    %2422 = vmatprep.subr.bf16.mxu0 0
    %2423 = vmatpush1.bf16.msra.mxu0 0
    %2424 = vmatprep.subr.bf16.mxu0 0
    %2425 = vmatpush1.bf16.msra.mxu0 0
    %2426 = vmatprep.subr.bf16.mxu0 0
    %2427 = vmatpush1.bf16.msra.mxu0 %v2049
    %2428 = vmatprep.subr.bf16.mxu0 0
    %2429 = vmatpush1.bf16.msra.mxu0 %v2048
    %2430 = vmatprep.subr.bf16.mxu0 0
    %2431 = vmatpush2.bf16.msra.mxu0 0
    %2432 = vmatprep.subr.bf16.mxu0 0
    %2433 = vmatpush2.bf16.msra.mxu0 0
    %2434 = vmatprep.subr.bf16.mxu0 0
    %2435 = vmatpush2.bf16.msra.mxu0 0
    %2436 = vmatprep.subr.bf16.mxu0 0
    %2437 = vmatpush2.bf16.msra.mxu0 0
    %2438 = vmatprep.subr.bf16.mxu0 0
    %2439 = vmatpush2.bf16.msra.mxu0 0
    %2440 = vmatprep.subr.bf16.mxu0 0
    %2441 = vmatpush2.bf16.msra.mxu0 0
    %2442 = vmatprep.subr.bf16.mxu0 0
    %2443 = vmatpush2.bf16.msra.mxu0 0
    %2444 = vmatprep.subr.bf16.mxu0 0
    %2445 = vmatpush2.bf16.msra.mxu0 0
    %2446 = vmatprep.mubr.bf16.mxu0 0
    %2447 = vmatmul.mubr.bf16.gmra.mxu0 %v2412
    %v2448 = vpop.f32.mrf.mxu0
    %v2449 = vadd.f32 0.0, %v2448
    %v2450 = vpop.f32.mrf.mxu0
    %v2451 = vpop.f32.mrf.mxu0
    %v2452 = vpop.f32.mrf.mxu0
    %2453 = vdwg.mxu0
    %v2454 = vadd.f32 %v2406, %v2449
    %v2455 = vld [vmem:[%s735] sm:$0xff]
    %v2456 = vxor.u32 %v2405, 2147483648
    %v2457 = vmul.f32 %v2456, 1.442695
    %v2458 = vpow.pop %v2457
    %v2459 = vadd.f32 %v2458, 1.0
    %v2460 = vrcp.pop %v2459
    %v2461 = vmul.f32 1.0, %v2460
    %v2462 = vtanh.pop %v2405
    %v2463 = vmul.f32 %v2461, %v2314
    %2465 = vrot.lane.b32.xlu0 %v2462, 32
    %v2466 = vpop.permute.xlu0 %2465
    %v2468 = vmul.f32 %v2461, %v2466
    %2470 = vrot.lane.b32.xlu0 %v2468, 32
    %v2471 = vpop.permute.xlu0 %2470
    %v2473 = vadd.f32 %v2463, %v2471
    %v2474 = vtanh.pop %v2473
    %2476 = vrot.lane.b32.xlu0 %v2474, 32
    %v2477 = vpop.permute.xlu0 %2476
    %v2479 = vmul.f32 %v2461, %v2477
    %2481 = vset.pattern.permute.xlu0 0
    %2482 = vperm.xlu0 %2481, %v2455
    %v2483 = vpop.permute.xlu0 %2482
    %v2485 = vmul.f32 %v2483, %v2479
    %v2486 = vsub.f32 1.0, %v2455
    %2488 = vset.pattern.permute.xlu0 0
    %2489 = vperm.xlu0 %2488, %v2486
    %v2490 = vpop.permute.xlu0 %2489
    %v2492 = vmul.f32 %v2490, %v2311
    %v2493 = vadd.f32 %v2485, %v2492
    %v2494 = vmul.f32 %v2483, %v2473
    %v2495 = vmul.f32 %v2490, %v2314
    %v2496 = vadd.f32 %v2494, %v2495
    %v2497 = vld [vmem:[%s778] sm:$0xff]
    %v2498 = vxor.u32 %v2454, 2147483648
    %v2499 = vmul.f32 %v2498, 1.442695
    %v2500 = vpow.pop %v2499
    %v2501 = vadd.f32 %v2500, 1.0
    %v2502 = vrcp.pop %v2501
    %v2503 = vmul.f32 1.0, %v2502
    %v2504 = vtanh.pop %v2454
    %v2505 = vmul.f32 %v2503, %v2356
    %2507 = vrot.lane.b32.xlu0 %v2504, 32
    %v2508 = vpop.permute.xlu0 %2507
    %v2510 = vmul.f32 %v2503, %v2508
    %2512 = vrot.lane.b32.xlu0 %v2510, 32
    %v2513 = vpop.permute.xlu0 %2512
    %v2515 = vadd.f32 %v2505, %v2513
    %v2516 = vtanh.pop %v2515
    %2518 = vrot.lane.b32.xlu0 %v2516, 32
    %v2519 = vpop.permute.xlu0 %2518
    %v2521 = vmul.f32 %v2503, %v2519
    %2523 = vset.pattern.permute.xlu0 0
    %2524 = vperm.xlu0 %2523, %v2497
    %v2525 = vpop.permute.xlu0 %2524
    %v2527 = vmul.f32 %v2525, %v2521
    %v2528 = vsub.f32 1.0, %v2497
    %2530 = vset.pattern.permute.xlu0 0
    %2531 = vperm.xlu0 %2530, %v2528
    %v2532 = vpop.permute.xlu0 %2531
    %v2534 = vmul.f32 %v2532, %v2353
    %v2535 = vadd.f32 %v2527, %v2534
    %v2536 = vmul.f32 %v2525, %v2515
    %v2537 = vmul.f32 %v2532, %v2356
    %v2538 = vadd.f32 %v2536, %v2537
    %v2539 = vld [vmem:[%s835] sm:$0xff]
    %v2540 = vpack.c.bf16 %v2493, %v2493
    %2542 = vrot.lane.b32.xlu0 %v2540, 64
    %v2543 = vpop.permute.xlu0 %2542
    %v2545 = vsel %vm107, %v2543, 0
    %2547 = vmatprep.subr.bf16.mxu0 0
    %2548 = vmatpush1.bf16.msra.mxu0 0
    %2549 = vmatprep.subr.bf16.mxu0 0
    %2550 = vmatpush1.bf16.msra.mxu0 0
    %2551 = vmatprep.subr.bf16.mxu0 0
    %2552 = vmatpush1.bf16.msra.mxu0 0
    %2553 = vmatprep.subr.bf16.mxu0 0
    %2554 = vmatpush1.bf16.msra.mxu0 0
    %2555 = vmatprep.subr.bf16.mxu0 0
    %2556 = vmatpush1.bf16.msra.mxu0 0
    %2557 = vmatprep.subr.bf16.mxu0 0
    %2558 = vmatpush1.bf16.msra.mxu0 0
    %2559 = vmatprep.subr.bf16.mxu0 0
    %2560 = vmatpush1.bf16.msra.mxu0 %v1995
    %2561 = vmatprep.subr.bf16.mxu0 0
    %2562 = vmatpush1.bf16.msra.mxu0 %v1994
    %2563 = vmatprep.subr.bf16.mxu0 0
    %2564 = vmatpush2.bf16.msra.mxu0 0
    %2565 = vmatprep.subr.bf16.mxu0 0
    %2566 = vmatpush2.bf16.msra.mxu0 0
    %2567 = vmatprep.subr.bf16.mxu0 0
    %2568 = vmatpush2.bf16.msra.mxu0 0
    %2569 = vmatprep.subr.bf16.mxu0 0
    %2570 = vmatpush2.bf16.msra.mxu0 0
    %2571 = vmatprep.subr.bf16.mxu0 0
    %2572 = vmatpush2.bf16.msra.mxu0 0
    %2573 = vmatprep.subr.bf16.mxu0 0
    %2574 = vmatpush2.bf16.msra.mxu0 0
    %2575 = vmatprep.subr.bf16.mxu0 0
    %2576 = vmatpush2.bf16.msra.mxu0 0
    %2577 = vmatprep.subr.bf16.mxu0 0
    %2578 = vmatpush2.bf16.msra.mxu0 0
    %2579 = vmatprep.mubr.bf16.mxu0 0
    %2580 = vmatmul.mubr.bf16.gmra.mxu0 %v2545
    %v2581 = vpop.f32.mrf.mxu0
    %v2582 = vadd.f32 0.0, %v2581
    %v2583 = vpop.f32.mrf.mxu0
    %v2584 = vpop.f32.mrf.mxu0
    %v2585 = vpop.f32.mrf.mxu0
    %2586 = vdwg.mxu0
    %v2587 = vadd.f32 %v2539, %v2582
    %v2588 = vld [vmem:[%s887 + $0x8] sm:$0xff]
    %v2589 = vpack.c.bf16 %v2535, %v2535
    %2591 = vrot.lane.b32.xlu0 %v2589, 64
    %v2592 = vpop.permute.xlu0 %2591
    %v2594 = vsel %vm107, %v2592, 0
    %2596 = vmatprep.subr.bf16.mxu0 0
    %2597 = vmatpush1.bf16.msra.mxu0 0
    %2598 = vmatprep.subr.bf16.mxu0 0
    %2599 = vmatpush1.bf16.msra.mxu0 0
    %2600 = vmatprep.subr.bf16.mxu0 0
    %2601 = vmatpush1.bf16.msra.mxu0 0
    %2602 = vmatprep.subr.bf16.mxu0 0
    %2603 = vmatpush1.bf16.msra.mxu0 0
    %2604 = vmatprep.subr.bf16.mxu0 0
    %2605 = vmatpush1.bf16.msra.mxu0 0
    %2606 = vmatprep.subr.bf16.mxu0 0
    %2607 = vmatpush1.bf16.msra.mxu0 0
    %2608 = vmatprep.subr.bf16.mxu0 0
    %2609 = vmatpush1.bf16.msra.mxu0 %v2049
    %2610 = vmatprep.subr.bf16.mxu0 0
    %2611 = vmatpush1.bf16.msra.mxu0 %v2048
    %2612 = vmatprep.subr.bf16.mxu0 0
    %2613 = vmatpush2.bf16.msra.mxu0 0
    %2614 = vmatprep.subr.bf16.mxu0 0
    %2615 = vmatpush2.bf16.msra.mxu0 0
    %2616 = vmatprep.subr.bf16.mxu0 0
    %2617 = vmatpush2.bf16.msra.mxu0 0
    %2618 = vmatprep.subr.bf16.mxu0 0
    %2619 = vmatpush2.bf16.msra.mxu0 0
    %2620 = vmatprep.subr.bf16.mxu0 0
    %2621 = vmatpush2.bf16.msra.mxu0 0
    %2622 = vmatprep.subr.bf16.mxu0 0
    %2623 = vmatpush2.bf16.msra.mxu0 0
    %2624 = vmatprep.subr.bf16.mxu0 0
    %2625 = vmatpush2.bf16.msra.mxu0 0
    %2626 = vmatprep.subr.bf16.mxu0 0
    %2627 = vmatpush2.bf16.msra.mxu0 0
    %2628 = vmatprep.mubr.bf16.mxu0 0
    %2629 = vmatmul.mubr.bf16.gmra.mxu0 %v2594
    %v2630 = vpop.f32.mrf.mxu0
    %v2631 = vadd.f32 0.0, %v2630
    %v2632 = vpop.f32.mrf.mxu0
    %v2633 = vpop.f32.mrf.mxu0
    %v2634 = vpop.f32.mrf.mxu0
    %2635 = vdwg.mxu0
    %v2636 = vadd.f32 %v2588, %v2631
    %v2637 = vld [vmem:[%s937] sm:$0xff]
    %v2638 = vxor.u32 %v2587, 2147483648
    %v2639 = vmul.f32 %v2638, 1.442695
    %v2640 = vpow.pop %v2639
    %v2641 = vadd.f32 %v2640, 1.0
    %v2642 = vrcp.pop %v2641
    %v2643 = vmul.f32 1.0, %v2642
    %v2644 = vtanh.pop %v2587
    %v2645 = vmul.f32 %v2643, %v2496
    %2647 = vrot.lane.b32.xlu0 %v2644, 32
    %v2648 = vpop.permute.xlu0 %2647
    %v2650 = vmul.f32 %v2643, %v2648
    %2652 = vrot.lane.b32.xlu0 %v2650, 32
    %v2653 = vpop.permute.xlu0 %2652
    %v2655 = vadd.f32 %v2645, %v2653
    %v2656 = vtanh.pop %v2655
    %2658 = vrot.lane.b32.xlu0 %v2656, 32
    %v2659 = vpop.permute.xlu0 %2658
    %v2661 = vmul.f32 %v2643, %v2659
    %2663 = vset.pattern.permute.xlu0 0
    %2664 = vperm.xlu0 %2663, %v2637
    %v2665 = vpop.permute.xlu0 %2664
    %v2667 = vmul.f32 %v2665, %v2661
    %v2668 = vsub.f32 1.0, %v2637
    %2670 = vset.pattern.permute.xlu0 0
    %2671 = vperm.xlu0 %2670, %v2668
    %v2672 = vpop.permute.xlu0 %2671
    %v2674 = vmul.f32 %v2672, %v2493
    %v2675 = vadd.f32 %v2667, %v2674
    %v2676 = vmul.f32 %v2665, %v2655
    %v2677 = vmul.f32 %v2672, %v2496
    %v2678 = vadd.f32 %v2676, %v2677
    %v2679 = vld [vmem:[%s980] sm:$0xff]
    %v2680 = vxor.u32 %v2636, 2147483648
    %v2681 = vmul.f32 %v2680, 1.442695
    %v2682 = vpow.pop %v2681
    %v2683 = vadd.f32 %v2682, 1.0
    %v2684 = vrcp.pop %v2683
    %v2685 = vmul.f32 1.0, %v2684
    %v2686 = vtanh.pop %v2636
    %v2687 = vmul.f32 %v2685, %v2538
    %2689 = vrot.lane.b32.xlu0 %v2686, 32
    %v2690 = vpop.permute.xlu0 %2689
    %v2692 = vmul.f32 %v2685, %v2690
    %2694 = vrot.lane.b32.xlu0 %v2692, 32
    %v2695 = vpop.permute.xlu0 %2694
    %v2697 = vadd.f32 %v2687, %v2695
    %v2698 = vtanh.pop %v2697
    %2700 = vrot.lane.b32.xlu0 %v2698, 32
    %v2701 = vpop.permute.xlu0 %2700
    %v2703 = vmul.f32 %v2685, %v2701
    %2705 = vset.pattern.permute.xlu0 0
    %2706 = vperm.xlu0 %2705, %v2679
    %v2707 = vpop.permute.xlu0 %2706
    %v2709 = vmul.f32 %v2707, %v2703
    %v2710 = vsub.f32 1.0, %v2679
    %2712 = vset.pattern.permute.xlu0 0
    %2713 = vperm.xlu0 %2712, %v2710
    %v2714 = vpop.permute.xlu0 %2713
    %v2716 = vmul.f32 %v2714, %v2535
    %v2717 = vadd.f32 %v2709, %v2716
    %v2718 = vmul.f32 %v2707, %v2697
    %v2719 = vmul.f32 %v2714, %v2538
    %v2720 = vadd.f32 %v2718, %v2719
    %v2721 = vld [vmem:[%s887] sm:$0xff]
    %v2722 = vpack.c.bf16 %v2675, %v2675
    %2724 = vrot.lane.b32.xlu0 %v2722, 64
    %v2725 = vpop.permute.xlu0 %2724
    %v2727 = vsel %vm107, %v2725, 0
    %2729 = vmatprep.subr.bf16.mxu0 0
    %2730 = vmatpush1.bf16.msra.mxu0 0
    %2731 = vmatprep.subr.bf16.mxu0 0
    %2732 = vmatpush1.bf16.msra.mxu0 0
    %2733 = vmatprep.subr.bf16.mxu0 0
    %2734 = vmatpush1.bf16.msra.mxu0 0
    %2735 = vmatprep.subr.bf16.mxu0 0
    %2736 = vmatpush1.bf16.msra.mxu0 0
    %2737 = vmatprep.subr.bf16.mxu0 0
    %2738 = vmatpush1.bf16.msra.mxu0 0
    %2739 = vmatprep.subr.bf16.mxu0 0
    %2740 = vmatpush1.bf16.msra.mxu0 0
    %2741 = vmatprep.subr.bf16.mxu0 0
    %2742 = vmatpush1.bf16.msra.mxu0 %v1995
    %2743 = vmatprep.subr.bf16.mxu0 0
    %2744 = vmatpush1.bf16.msra.mxu0 %v1994
    %2745 = vmatprep.subr.bf16.mxu0 0
    %2746 = vmatpush2.bf16.msra.mxu0 0
    %2747 = vmatprep.subr.bf16.mxu0 0
    %2748 = vmatpush2.bf16.msra.mxu0 0
    %2749 = vmatprep.subr.bf16.mxu0 0
    %2750 = vmatpush2.bf16.msra.mxu0 0
    %2751 = vmatprep.subr.bf16.mxu0 0
    %2752 = vmatpush2.bf16.msra.mxu0 0
    %2753 = vmatprep.subr.bf16.mxu0 0
    %2754 = vmatpush2.bf16.msra.mxu0 0
    %2755 = vmatprep.subr.bf16.mxu0 0
    %2756 = vmatpush2.bf16.msra.mxu0 0
    %2757 = vmatprep.subr.bf16.mxu0 0
    %2758 = vmatpush2.bf16.msra.mxu0 0
    %2759 = vmatprep.subr.bf16.mxu0 0
    %2760 = vmatpush2.bf16.msra.mxu0 0
    %2761 = vmatprep.mubr.bf16.mxu0 0
    %2762 = vmatmul.mubr.bf16.gmra.mxu0 %v2727
    %v2763 = vpop.f32.mrf.mxu0
    %v2764 = vadd.f32 0.0, %v2763
    %v2765 = vpop.f32.mrf.mxu0
    %v2766 = vpop.f32.mrf.mxu0
    %v2767 = vpop.f32.mrf.mxu0
    %2768 = vdwg.mxu0
    %v2769 = vadd.f32 %v2721, %v2764
    %v2770 = vld [vmem:[%s835 + $0x8] sm:$0xff]
    %v2771 = vpack.c.bf16 %v2717, %v2717
    %2773 = vrot.lane.b32.xlu0 %v2771, 64
    %v2774 = vpop.permute.xlu0 %2773
    %v2776 = vsel %vm107, %v2774, 0
    %2778 = vmatprep.subr.bf16.mxu0 0
    %2779 = vmatpush1.bf16.msra.mxu0 0
    %2780 = vmatprep.subr.bf16.mxu0 0
    %2781 = vmatpush1.bf16.msra.mxu0 0
    %2782 = vmatprep.subr.bf16.mxu0 0
    %2783 = vmatpush1.bf16.msra.mxu0 0
    %2784 = vmatprep.subr.bf16.mxu0 0
    %2785 = vmatpush1.bf16.msra.mxu0 0
    %2786 = vmatprep.subr.bf16.mxu0 0
    %2787 = vmatpush1.bf16.msra.mxu0 0
    %2788 = vmatprep.subr.bf16.mxu0 0
    %2789 = vmatpush1.bf16.msra.mxu0 0
    %2790 = vmatprep.subr.bf16.mxu0 0
    %2791 = vmatpush1.bf16.msra.mxu0 %v2049
    %2792 = vmatprep.subr.bf16.mxu0 0
    %2793 = vmatpush1.bf16.msra.mxu0 %v2048
    %2794 = vmatprep.subr.bf16.mxu0 0
    %2795 = vmatpush2.bf16.msra.mxu0 0
    %2796 = vmatprep.subr.bf16.mxu0 0
    %2797 = vmatpush2.bf16.msra.mxu0 0
    %2798 = vmatprep.subr.bf16.mxu0 0
    %2799 = vmatpush2.bf16.msra.mxu0 0
    %2800 = vmatprep.subr.bf16.mxu0 0
    %2801 = vmatpush2.bf16.msra.mxu0 0
    %2802 = vmatprep.subr.bf16.mxu0 0
    %2803 = vmatpush2.bf16.msra.mxu0 0
    %2804 = vmatprep.subr.bf16.mxu0 0
    %2805 = vmatpush2.bf16.msra.mxu0 0
    %2806 = vmatprep.subr.bf16.mxu0 0
    %2807 = vmatpush2.bf16.msra.mxu0 0
    %2808 = vmatprep.subr.bf16.mxu0 0
    %2809 = vmatpush2.bf16.msra.mxu0 0
    %2810 = vmatprep.mubr.bf16.mxu0 0
    %2811 = vmatmul.mubr.bf16.gmra.mxu0 %v2776
    %v2812 = vpop.f32.mrf.mxu0
    %v2813 = vadd.f32 0.0, %v2812
    %v2814 = vpop.f32.mrf.mxu0
    %v2815 = vpop.f32.mrf.mxu0
    %v2816 = vpop.f32.mrf.mxu0
    %2817 = vdwg.mxu0
    %v2818 = vadd.f32 %v2770, %v2813
    %v2819 = vxor.u32 %v2769, 2147483648
    %v2820 = vmul.f32 %v2819, 1.442695
    %v2821 = vpow.pop %v2820
    %v2822 = vadd.f32 %v2821, 1.0
    %v2823 = vrcp.pop %v2822
    %v2824 = vmul.f32 1.0, %v2823
    %v2825 = vtanh.pop %v2769
    %v2826 = vmul.f32 %v2824, %v2678
    %2828 = vrot.lane.b32.xlu0 %v2825, 32
    %v2829 = vpop.permute.xlu0 %2828
    %v2831 = vmul.f32 %v2824, %v2829
    %2833 = vrot.lane.b32.xlu0 %v2831, 32
    %v2834 = vpop.permute.xlu0 %2833
    %v2836 = vadd.f32 %v2826, %v2834
    %v2837 = vtanh.pop %v2836
    %2839 = vrot.lane.b32.xlu0 %v2837, 32
    %v2840 = vpop.permute.xlu0 %2839
    %v2842 = vmul.f32 %v2824, %v2840
    %v2843 = vmul.f32 %v2707, %v2842
    %v2844 = vmul.f32 %v2714, %v2675
    %v2845 = vadd.f32 %v2843, %v2844
    %v2846 = vmul.f32 %v2707, %v2836
    %v2847 = vmul.f32 %v2714, %v2678
    %v2848 = vadd.f32 %v2846, %v2847
    %v2849 = vxor.u32 %v2818, 2147483648
    %v2850 = vmul.f32 %v2849, 1.442695
    %v2851 = vpow.pop %v2850
    %v2852 = vadd.f32 %v2851, 1.0
    %v2853 = vrcp.pop %v2852
    %v2854 = vmul.f32 1.0, %v2853
    %v2855 = vtanh.pop %v2818
    %v2856 = vmul.f32 %v2854, %v2720
    %2858 = vrot.lane.b32.xlu0 %v2855, 32
    %v2859 = vpop.permute.xlu0 %2858
    %v2861 = vmul.f32 %v2854, %v2859
    %2863 = vrot.lane.b32.xlu0 %v2861, 32
    %v2864 = vpop.permute.xlu0 %2863
    %v2866 = vadd.f32 %v2856, %v2864
    %v2867 = vtanh.pop %v2866
    %2869 = vrot.lane.b32.xlu0 %v2867, 32
    %v2870 = vpop.permute.xlu0 %2869
    %v2872 = vmul.f32 %v2854, %v2870
    %v2873 = vmul.f32 %v2665, %v2872
    %v2874 = vmul.f32 %v2672, %v2717
    %v2875 = vadd.f32 %v2873, %v2874
    %v2876 = vmul.f32 %v2665, %v2866
    %v2877 = vmul.f32 %v2672, %v2720
    %v2878 = vadd.f32 %v2876, %v2877
    %v2879 = vld [vmem:[%s685] sm:$0xff]
    %v2880 = vpack.c.bf16 %v2845, %v2845
    %2882 = vrot.lane.b32.xlu0 %v2880, 64
    %v2883 = vpop.permute.xlu0 %2882
    %v2885 = vsel %vm107, %v2883, 0
    %2887 = vmatprep.subr.bf16.mxu0 0
    %2888 = vmatpush1.bf16.msra.mxu0 0
    %2889 = vmatprep.subr.bf16.mxu0 0
    %2890 = vmatpush1.bf16.msra.mxu0 0
    %2891 = vmatprep.subr.bf16.mxu0 0
    %2892 = vmatpush1.bf16.msra.mxu0 0
    %2893 = vmatprep.subr.bf16.mxu0 0
    %2894 = vmatpush1.bf16.msra.mxu0 0
    %2895 = vmatprep.subr.bf16.mxu0 0
    %2896 = vmatpush1.bf16.msra.mxu0 0
    %2897 = vmatprep.subr.bf16.mxu0 0
    %2898 = vmatpush1.bf16.msra.mxu0 0
    %2899 = vmatprep.subr.bf16.mxu0 0
    %2900 = vmatpush1.bf16.msra.mxu0 %v1995
    %2901 = vmatprep.subr.bf16.mxu0 0
    %2902 = vmatpush1.bf16.msra.mxu0 %v1994
    %2903 = vmatprep.subr.bf16.mxu0 0
    %2904 = vmatpush2.bf16.msra.mxu0 0
    %2905 = vmatprep.subr.bf16.mxu0 0
    %2906 = vmatpush2.bf16.msra.mxu0 0
    %2907 = vmatprep.subr.bf16.mxu0 0
    %2908 = vmatpush2.bf16.msra.mxu0 0
    %2909 = vmatprep.subr.bf16.mxu0 0
    %2910 = vmatpush2.bf16.msra.mxu0 0
    %2911 = vmatprep.subr.bf16.mxu0 0
    %2912 = vmatpush2.bf16.msra.mxu0 0
    %2913 = vmatprep.subr.bf16.mxu0 0
    %2914 = vmatpush2.bf16.msra.mxu0 0
    %2915 = vmatprep.subr.bf16.mxu0 0
    %2916 = vmatpush2.bf16.msra.mxu0 0
    %2917 = vmatprep.subr.bf16.mxu0 0
    %2918 = vmatpush2.bf16.msra.mxu0 0
    %2919 = vmatprep.mubr.bf16.mxu0 0
    %2920 = vmatmul.mubr.bf16.gmra.mxu0 %v2885
    %v2921 = vpop.f32.mrf.mxu0
    %v2922 = vadd.f32 0.0, %v2921
    %v2923 = vpop.f32.mrf.mxu0
    %v2924 = vpop.f32.mrf.mxu0
    %v2925 = vpop.f32.mrf.mxu0
    %2926 = vdwg.mxu0
    %v2927 = vadd.f32 %v2879, %v2922
    %v2928 = vld [vmem:[%s633 + $0x8] sm:$0xff]
    %v2929 = vpack.c.bf16 %v2875, %v2875
    %2931 = vrot.lane.b32.xlu0 %v2929, 64
    %v2932 = vpop.permute.xlu0 %2931
    %v2934 = vsel %vm107, %v2932, 0
    %2936 = vmatprep.subr.bf16.mxu0 0
    %2937 = vmatpush1.bf16.msra.mxu0 0
    %2938 = vmatprep.subr.bf16.mxu0 0
    %2939 = vmatpush1.bf16.msra.mxu0 0
    %2940 = vmatprep.subr.bf16.mxu0 0
    %2941 = vmatpush1.bf16.msra.mxu0 0
    %2942 = vmatprep.subr.bf16.mxu0 0
    %2943 = vmatpush1.bf16.msra.mxu0 0
    %2944 = vmatprep.subr.bf16.mxu0 0
    %2945 = vmatpush1.bf16.msra.mxu0 0
    %2946 = vmatprep.subr.bf16.mxu0 0
    %2947 = vmatpush1.bf16.msra.mxu0 0
    %2948 = vmatprep.subr.bf16.mxu0 0
    %2949 = vmatpush1.bf16.msra.mxu0 %v2049
    %2950 = vmatprep.subr.bf16.mxu0 0
    %2951 = vmatpush1.bf16.msra.mxu0 %v2048
    %2952 = vmatprep.subr.bf16.mxu0 0
    %2953 = vmatpush2.bf16.msra.mxu0 0
    %2954 = vmatprep.subr.bf16.mxu0 0
    %2955 = vmatpush2.bf16.msra.mxu0 0
    %2956 = vmatprep.subr.bf16.mxu0 0
    %2957 = vmatpush2.bf16.msra.mxu0 0
    %2958 = vmatprep.subr.bf16.mxu0 0
    %2959 = vmatpush2.bf16.msra.mxu0 0
    %2960 = vmatprep.subr.bf16.mxu0 0
    %2961 = vmatpush2.bf16.msra.mxu0 0
    %2962 = vmatprep.subr.bf16.mxu0 0
    %2963 = vmatpush2.bf16.msra.mxu0 0
    %2964 = vmatprep.subr.bf16.mxu0 0
    %2965 = vmatpush2.bf16.msra.mxu0 0
    %2966 = vmatprep.subr.bf16.mxu0 0
    %2967 = vmatpush2.bf16.msra.mxu0 0
    %2968 = vmatprep.mubr.bf16.mxu0 0
    %2969 = vmatmul.mubr.bf16.gmra.mxu0 %v2934
    %v2970 = vpop.f32.mrf.mxu0
    %v2971 = vadd.f32 0.0, %v2970
    %v2972 = vpop.f32.mrf.mxu0
    %v2973 = vpop.f32.mrf.mxu0
    %v2974 = vpop.f32.mrf.mxu0
    %2975 = vdwg.mxu0
    %v2976 = vadd.f32 %v2928, %v2971
    %v2977 = vxor.u32 %v2927, 2147483648
    %v2978 = vmul.f32 %v2977, 1.442695
    %v2979 = vpow.pop %v2978
    %v2980 = vadd.f32 %v2979, 1.0
    %v2981 = vrcp.pop %v2980
    %v2982 = vmul.f32 1.0, %v2981
    %v2983 = vtanh.pop %v2927
    %v2984 = vmul.f32 %v2982, %v2848
    %2986 = vrot.lane.b32.xlu0 %v2983, 32
    %v2987 = vpop.permute.xlu0 %2986
    %v2989 = vmul.f32 %v2982, %v2987
    %2991 = vrot.lane.b32.xlu0 %v2989, 32
    %v2992 = vpop.permute.xlu0 %2991
    %v2994 = vadd.f32 %v2984, %v2992
    %v2995 = vtanh.pop %v2994
    %2997 = vrot.lane.b32.xlu0 %v2995, 32
    %v2998 = vpop.permute.xlu0 %2997
    %v3000 = vmul.f32 %v2982, %v2998
    %v3001 = vmul.f32 %v2525, %v3000
    %v3002 = vmul.f32 %v2532, %v2845
    %v3003 = vadd.f32 %v3001, %v3002
    %v3004 = vmul.f32 %v2525, %v2994
    %v3005 = vmul.f32 %v2532, %v2848
    %v3006 = vadd.f32 %v3004, %v3005
    %v3007 = vxor.u32 %v2976, 2147483648
    %v3008 = vmul.f32 %v3007, 1.442695
    %v3009 = vpow.pop %v3008
    %v3010 = vadd.f32 %v3009, 1.0
    %v3011 = vrcp.pop %v3010
    %v3012 = vmul.f32 1.0, %v3011
    %v3013 = vtanh.pop %v2976
    %v3014 = vmul.f32 %v3012, %v2878
    %3016 = vrot.lane.b32.xlu0 %v3013, 32
    %v3017 = vpop.permute.xlu0 %3016
    %v3019 = vmul.f32 %v3012, %v3017
    %3021 = vrot.lane.b32.xlu0 %v3019, 32
    %v3022 = vpop.permute.xlu0 %3021
    %v3024 = vadd.f32 %v3014, %v3022
    %v3025 = vtanh.pop %v3024
    %3027 = vrot.lane.b32.xlu0 %v3025, 32
    %v3028 = vpop.permute.xlu0 %3027
    %v3030 = vmul.f32 %v3012, %v3028
    %v3031 = vmul.f32 %v2483, %v3030
    %v3032 = vmul.f32 %v2490, %v2875
    %v3033 = vadd.f32 %v3031, %v3032
    %v3034 = vmul.f32 %v2483, %v3024
    %v3035 = vmul.f32 %v2490, %v2878
    %v3036 = vadd.f32 %v3034, %v3035
    %v3037 = vld [vmem:[%s483] sm:$0xff]
    %v3038 = vpack.c.bf16 %v3003, %v3003
    %3040 = vrot.lane.b32.xlu0 %v3038, 64
    %v3041 = vpop.permute.xlu0 %3040
    %v3043 = vsel %vm107, %v3041, 0
    %3045 = vmatprep.subr.bf16.mxu0 0
    %3046 = vmatpush1.bf16.msra.mxu0 0
    %3047 = vmatprep.subr.bf16.mxu0 0
    %3048 = vmatpush1.bf16.msra.mxu0 0
    %3049 = vmatprep.subr.bf16.mxu0 0
    %3050 = vmatpush1.bf16.msra.mxu0 0
    %3051 = vmatprep.subr.bf16.mxu0 0
    %3052 = vmatpush1.bf16.msra.mxu0 0
    %3053 = vmatprep.subr.bf16.mxu0 0
    %3054 = vmatpush1.bf16.msra.mxu0 0
    %3055 = vmatprep.subr.bf16.mxu0 0
    %3056 = vmatpush1.bf16.msra.mxu0 0
    %3057 = vmatprep.subr.bf16.mxu0 0
    %3058 = vmatpush1.bf16.msra.mxu0 %v1995
    %3059 = vmatprep.subr.bf16.mxu0 0
    %3060 = vmatpush1.bf16.msra.mxu0 %v1994
    %3061 = vmatprep.subr.bf16.mxu0 0
    %3062 = vmatpush2.bf16.msra.mxu0 0
    %3063 = vmatprep.subr.bf16.mxu0 0
    %3064 = vmatpush2.bf16.msra.mxu0 0
    %3065 = vmatprep.subr.bf16.mxu0 0
    %3066 = vmatpush2.bf16.msra.mxu0 0
    %3067 = vmatprep.subr.bf16.mxu0 0
    %3068 = vmatpush2.bf16.msra.mxu0 0
    %3069 = vmatprep.subr.bf16.mxu0 0
    %3070 = vmatpush2.bf16.msra.mxu0 0
    %3071 = vmatprep.subr.bf16.mxu0 0
    %3072 = vmatpush2.bf16.msra.mxu0 0
    %3073 = vmatprep.subr.bf16.mxu0 0
    %3074 = vmatpush2.bf16.msra.mxu0 0
    %3075 = vmatprep.subr.bf16.mxu0 0
    %3076 = vmatpush2.bf16.msra.mxu0 0
    %3077 = vmatprep.mubr.bf16.mxu0 0
    %3078 = vmatmul.mubr.bf16.gmra.mxu0 %v3043
    %v3079 = vpop.f32.mrf.mxu0
    %v3080 = vadd.f32 0.0, %v3079
    %v3081 = vpop.f32.mrf.mxu0
    %v3082 = vpop.f32.mrf.mxu0
    %v3083 = vpop.f32.mrf.mxu0
    %3084 = vdwg.mxu0
    %v3085 = vadd.f32 %v3037, %v3080
    %v3086 = vld [vmem:[%s431 + $0x8] sm:$0xff]
    %v3087 = vpack.c.bf16 %v3033, %v3033
    %3089 = vrot.lane.b32.xlu0 %v3087, 64
    %v3090 = vpop.permute.xlu0 %3089
    %v3092 = vsel %vm107, %v3090, 0
    %3094 = vmatprep.subr.bf16.mxu0 0
    %3095 = vmatpush1.bf16.msra.mxu0 0
    %3096 = vmatprep.subr.bf16.mxu0 0
    %3097 = vmatpush1.bf16.msra.mxu0 0
    %3098 = vmatprep.subr.bf16.mxu0 0
    %3099 = vmatpush1.bf16.msra.mxu0 0
    %3100 = vmatprep.subr.bf16.mxu0 0
    %3101 = vmatpush1.bf16.msra.mxu0 0
    %3102 = vmatprep.subr.bf16.mxu0 0
    %3103 = vmatpush1.bf16.msra.mxu0 0
    %3104 = vmatprep.subr.bf16.mxu0 0
    %3105 = vmatpush1.bf16.msra.mxu0 0
    %3106 = vmatprep.subr.bf16.mxu0 0
    %3107 = vmatpush1.bf16.msra.mxu0 %v2049
    %3108 = vmatprep.subr.bf16.mxu0 0
    %3109 = vmatpush1.bf16.msra.mxu0 %v2048
    %3110 = vmatprep.subr.bf16.mxu0 0
    %3111 = vmatpush2.bf16.msra.mxu0 0
    %3112 = vmatprep.subr.bf16.mxu0 0
    %3113 = vmatpush2.bf16.msra.mxu0 0
    %3114 = vmatprep.subr.bf16.mxu0 0
    %3115 = vmatpush2.bf16.msra.mxu0 0
    %3116 = vmatprep.subr.bf16.mxu0 0
    %3117 = vmatpush2.bf16.msra.mxu0 0
    %3118 = vmatprep.subr.bf16.mxu0 0
    %3119 = vmatpush2.bf16.msra.mxu0 0
    %3120 = vmatprep.subr.bf16.mxu0 0
    %3121 = vmatpush2.bf16.msra.mxu0 0
    %3122 = vmatprep.subr.bf16.mxu0 0
    %3123 = vmatpush2.bf16.msra.mxu0 0
    %3124 = vmatprep.subr.bf16.mxu0 0
    %3125 = vmatpush2.bf16.msra.mxu0 0
    %3126 = vmatprep.mubr.bf16.mxu0 0
    %3127 = vmatmul.mubr.bf16.gmra.mxu0 %v3092
    %v3128 = vpop.f32.mrf.mxu0
    %v3129 = vadd.f32 0.0, %v3128
    %v3130 = vpop.f32.mrf.mxu0
    %v3131 = vpop.f32.mrf.mxu0
    %v3132 = vpop.f32.mrf.mxu0
    %3133 = vdwg.mxu0
    %v3134 = vadd.f32 %v3086, %v3129
    %v3135 = vxor.u32 %v3085, 2147483648
    %v3136 = vmul.f32 %v3135, 1.442695
    %v3137 = vpow.pop %v3136
    %v3138 = vadd.f32 %v3137, 1.0
    %v3139 = vrcp.pop %v3138
    %v3140 = vmul.f32 1.0, %v3139
    %v3141 = vtanh.pop %v3085
    %v3142 = vmul.f32 %v3140, %v3006
    %3144 = vrot.lane.b32.xlu0 %v3141, 32
    %v3145 = vpop.permute.xlu0 %3144
    %v3147 = vmul.f32 %v3140, %v3145
    %3149 = vrot.lane.b32.xlu0 %v3147, 32
    %v3150 = vpop.permute.xlu0 %3149
    %v3152 = vadd.f32 %v3142, %v3150
    %v3153 = vtanh.pop %v3152
    %3155 = vrot.lane.b32.xlu0 %v3153, 32
    %v3156 = vpop.permute.xlu0 %3155
    %v3158 = vmul.f32 %v3140, %v3156
    %v3159 = vmul.f32 %v2343, %v3158
    %v3160 = vmul.f32 %v2350, %v3003
    %v3161 = vadd.f32 %v3159, %v3160
    %v3162 = vmul.f32 %v2343, %v3152
    %v3163 = vmul.f32 %v2350, %v3006
    %v3164 = vadd.f32 %v3162, %v3163
    %v3165 = vxor.u32 %v3134, 2147483648
    %v3166 = vmul.f32 %v3165, 1.442695
    %v3167 = vpow.pop %v3166
    %v3168 = vadd.f32 %v3167, 1.0
    %v3169 = vrcp.pop %v3168
    %v3170 = vmul.f32 1.0, %v3169
    %v3171 = vtanh.pop %v3134
    %v3172 = vmul.f32 %v3170, %v3036
    %3174 = vrot.lane.b32.xlu0 %v3171, 32
    %v3175 = vpop.permute.xlu0 %3174
    %v3177 = vmul.f32 %v3170, %v3175
    %3179 = vrot.lane.b32.xlu0 %v3177, 32
    %v3180 = vpop.permute.xlu0 %3179
    %v3182 = vadd.f32 %v3172, %v3180
    %v3183 = vtanh.pop %v3182
    %3185 = vrot.lane.b32.xlu0 %v3183, 32
    %v3186 = vpop.permute.xlu0 %3185
    %v3188 = vmul.f32 %v3170, %v3186
    %v3189 = vmul.f32 %v2301, %v3188
    %v3190 = vmul.f32 %v2308, %v3033
    %v3191 = vadd.f32 %v3189, %v3190
    %v3192 = vmul.f32 %v2301, %v3182
    %v3193 = vmul.f32 %v2308, %v3036
    %v3194 = vadd.f32 %v3192, %v3193
    %v3195 = vld [vmem:[%s279] sm:$0xff]
    %v3196 = vpack.c.bf16 %v3161, %v3161
    %3198 = vrot.lane.b32.xlu0 %v3196, 64
    %v3199 = vpop.permute.xlu0 %3198
    %v3201 = vsel %vm107, %v3199, 0
    %3203 = vmatprep.subr.bf16.mxu0 0
    %3204 = vmatpush1.bf16.msra.mxu0 0
    %3205 = vmatprep.subr.bf16.mxu0 0
    %3206 = vmatpush1.bf16.msra.mxu0 0
    %3207 = vmatprep.subr.bf16.mxu0 0
    %3208 = vmatpush1.bf16.msra.mxu0 0
    %3209 = vmatprep.subr.bf16.mxu0 0
    %3210 = vmatpush1.bf16.msra.mxu0 0
    %3211 = vmatprep.subr.bf16.mxu0 0
    %3212 = vmatpush1.bf16.msra.mxu0 0
    %3213 = vmatprep.subr.bf16.mxu0 0
    %3214 = vmatpush1.bf16.msra.mxu0 0
    %3215 = vmatprep.subr.bf16.mxu0 0
    %3216 = vmatpush1.bf16.msra.mxu0 %v1995
    %3217 = vmatprep.subr.bf16.mxu0 0
    %3218 = vmatpush1.bf16.msra.mxu0 %v1994
    %3219 = vmatprep.subr.bf16.mxu0 0
    %3220 = vmatpush2.bf16.msra.mxu0 0
    %3221 = vmatprep.subr.bf16.mxu0 0
    %3222 = vmatpush2.bf16.msra.mxu0 0
    %3223 = vmatprep.subr.bf16.mxu0 0
    %3224 = vmatpush2.bf16.msra.mxu0 0
    %3225 = vmatprep.subr.bf16.mxu0 0
    %3226 = vmatpush2.bf16.msra.mxu0 0
    %3227 = vmatprep.subr.bf16.mxu0 0
    %3228 = vmatpush2.bf16.msra.mxu0 0
    %3229 = vmatprep.subr.bf16.mxu0 0
    %3230 = vmatpush2.bf16.msra.mxu0 0
    %3231 = vmatprep.subr.bf16.mxu0 0
    %3232 = vmatpush2.bf16.msra.mxu0 0
    %3233 = vmatprep.subr.bf16.mxu0 0
    %3234 = vmatpush2.bf16.msra.mxu0 0
    %3235 = vmatprep.mubr.bf16.mxu0 0
    %3236 = vmatmul.mubr.bf16.gmra.mxu0 %v3201
    %v3237 = vpop.f32.mrf.mxu0
    %v3238 = vadd.f32 0.0, %v3237
    %v3239 = vpop.f32.mrf.mxu0
    %v3240 = vpop.f32.mrf.mxu0
    %v3241 = vpop.f32.mrf.mxu0
    %3242 = vdwg.mxu0
    %v3243 = vadd.f32 %v3195, %v3238
    %v3244 = vld [vmem:[%s219 + $0x8] sm:$0xff]
    %v3245 = vpack.c.bf16 %v3191, %v3191
    %3247 = vrot.lane.b32.xlu0 %v3245, 64
    %v3248 = vpop.permute.xlu0 %3247
    %v3250 = vsel %vm107, %v3248, 0
    %3252 = vmatprep.subr.bf16.mxu0 0
    %3253 = vmatpush1.bf16.msra.mxu0 0
    %3254 = vmatprep.subr.bf16.mxu0 0
    %3255 = vmatpush1.bf16.msra.mxu0 0
    %3256 = vmatprep.subr.bf16.mxu0 0
    %3257 = vmatpush1.bf16.msra.mxu0 0
    %3258 = vmatprep.subr.bf16.mxu0 0
    %3259 = vmatpush1.bf16.msra.mxu0 0
    %3260 = vmatprep.subr.bf16.mxu0 0
    %3261 = vmatpush1.bf16.msra.mxu0 0
    %3262 = vmatprep.subr.bf16.mxu0 0
    %3263 = vmatpush1.bf16.msra.mxu0 0
    %3264 = vmatprep.subr.bf16.mxu0 0
    %3265 = vmatpush1.bf16.msra.mxu0 %v2049
    %3266 = vmatprep.subr.bf16.mxu0 0
    %3267 = vmatpush1.bf16.msra.mxu0 %v2048
    %3268 = vmatprep.subr.bf16.mxu0 0
    %3269 = vmatpush2.bf16.msra.mxu0 0
    %3270 = vmatprep.subr.bf16.mxu0 0
    %3271 = vmatpush2.bf16.msra.mxu0 0
    %3272 = vmatprep.subr.bf16.mxu0 0
    %3273 = vmatpush2.bf16.msra.mxu0 0
    %3274 = vmatprep.subr.bf16.mxu0 0
    %3275 = vmatpush2.bf16.msra.mxu0 0
    %3276 = vmatprep.subr.bf16.mxu0 0
    %3277 = vmatpush2.bf16.msra.mxu0 0
    %3278 = vmatprep.subr.bf16.mxu0 0
    %3279 = vmatpush2.bf16.msra.mxu0 0
    %3280 = vmatprep.subr.bf16.mxu0 0
    %3281 = vmatpush2.bf16.msra.mxu0 0
    %3282 = vmatprep.subr.bf16.mxu0 0
    %3283 = vmatpush2.bf16.msra.mxu0 0
    %3284 = vmatprep.mubr.bf16.mxu0 0
    %3285 = vmatmul.mubr.bf16.gmra.mxu0 %v3250
    %v3286 = vpop.f32.mrf.mxu0
    %v3287 = vadd.f32 0.0, %v3286
    %v3288 = vpop.f32.mrf.mxu0
    %v3289 = vpop.f32.mrf.mxu0
    %v3290 = vpop.f32.mrf.mxu0
    %3291 = vdwg.mxu0
    %v3292 = vadd.f32 %v3244, %v3287
    %v3293 = vxor.u32 %v3243, 2147483648
    %v3294 = vmul.f32 %v3293, 1.442695
    %v3295 = vpow.pop %v3294
    %v3296 = vadd.f32 %v3295, 1.0
    %v3297 = vrcp.pop %v3296
    %v3298 = vmul.f32 1.0, %v3297
    %v3299 = vtanh.pop %v3243
    %v3300 = vmul.f32 %v3298, %v3164
    %3302 = vrot.lane.b32.xlu0 %v3299, 32
    %v3303 = vpop.permute.xlu0 %3302
    %v3305 = vmul.f32 %v3298, %v3303
    %3307 = vrot.lane.b32.xlu0 %v3305, 32
    %v3308 = vpop.permute.xlu0 %3307
    %v3310 = vadd.f32 %v3300, %v3308
    %v3311 = vtanh.pop %v3310
    %3313 = vrot.lane.b32.xlu0 %v3311, 32
    %v3314 = vpop.permute.xlu0 %3313
    %v3316 = vmul.f32 %v3298, %v3314
    %v3317 = vmul.f32 %v2162, %v3316
    %v3318 = vmul.f32 %v2169, %v3161
    %v3319 = vadd.f32 %v3317, %v3318
    %v3320 = vmul.f32 %v2162, %v3310
    %v3321 = vmul.f32 %v2169, %v3164
    %v3322 = vadd.f32 %v3320, %v3321
    %v3323 = vxor.u32 %v3292, 2147483648
    %v3324 = vmul.f32 %v3323, 1.442695
    %v3325 = vpow.pop %v3324
    %v3326 = vadd.f32 %v3325, 1.0
    %v3327 = vrcp.pop %v3326
    %v3328 = vmul.f32 1.0, %v3327
    %v3329 = vtanh.pop %v3292
    %v3330 = vmul.f32 %v3328, %v3194
    %3332 = vrot.lane.b32.xlu0 %v3329, 32
    %v3333 = vpop.permute.xlu0 %3332
    %v3335 = vmul.f32 %v3328, %v3333
    %3337 = vrot.lane.b32.xlu0 %v3335, 32
    %v3338 = vpop.permute.xlu0 %3337
    %v3340 = vadd.f32 %v3330, %v3338
    %v3341 = vtanh.pop %v3340
    %3343 = vrot.lane.b32.xlu0 %v3341, 32
    %v3344 = vpop.permute.xlu0 %3343
    %v3346 = vmul.f32 %v3328, %v3344
    %v3347 = vmul.f32 %v2121, %v3346
    %v3348 = vmul.f32 %v2128, %v3191
    %v3349 = vadd.f32 %v3347, %v3348
    %v3350 = vmul.f32 %v2121, %v3340
    %v3351 = vmul.f32 %v2128, %v3194
    %v3352 = vadd.f32 %v3350, %v3351
    %3353 = vst.msk [vmem:[#allocation4] sm:$0xff] %vm107, %v1795
    %3354 = vst.msk [vmem:[#allocation4] sm:$0xff] %vm427, %v1750
    %vm3355 = vcmask 785920
    %3356 = vst.msk [vmem:[#allocation4] sm:$0xff] %vm3355, %v3319
    %3358 = vrot.lane.b32.xlu0 %v3322, 64
    %v3359 = vpop.permute.xlu0 %3358
    %vm3361 = vcmask 1048320
    %3362 = vst.msk [vmem:[#allocation4] sm:$0xff] %vm3361, %v3359
    %3363 = vrot.lane.b32.xlu0 %v1789, 64
    %v3364 = vpop.permute.xlu0 %3363
    %3366 = vst.msk [vmem:[#allocation4 + $0x8] sm:$0xff] %vm107, %v3364
    %3367 = vst.msk [vmem:[#allocation4 + $0x8] sm:$0xff] %vm427, %v1792
    %3368 = vst.msk [vmem:[#allocation4 + $0x8] sm:$0xff] %vm3355, %v3349
    %3370 = vrot.lane.b32.xlu0 %v3352, 64
    %v3371 = vpop.permute.xlu0 %3370
    %3373 = vst.msk [vmem:[#allocation4 + $0x8] sm:$0xff] %vm3361, %v3371
    %v3374 = vld [vmem:[#allocation4] sm:$0xff]
    %v3375 = vld [vmem:[#allocation4 + $0x8] sm:$0xff]
    %v3376 = vpack.c.bf16 %v3374, %v3374
    %v3377 = vpack.c.bf16 %v3375, %v3375
    %v3378 = vld [vmem:[%s10] sm:$0xf]
    %v3379 = vld [vmem:[%s10 + $0x4] sm:$0xf]
    %v3380 = vld [vmem:[%s10 + $0x8] sm:$0xf]
    %v3381 = vld [vmem:[%s10 + $0xc] sm:$0xf]
    %v3382 = vld [vmem:[%s10 + $0x10] sm:$0xf]
    %v3383 = vld [vmem:[%s10 + $0x14] sm:$0xf]
    %v3384 = vld [vmem:[%s10 + $0x18] sm:$0xf]
    %v3385 = vld [vmem:[%s10 + $0x1c] sm:$0xf]
    %v3386 = vld [vmem:[%s10 + $0x20] sm:$0xf]
    %v3387 = vld [vmem:[%s10 + $0x24] sm:$0xf]
    %v3388 = vld [vmem:[%s10 + $0x28] sm:$0xf]
    %v3389 = vld [vmem:[%s10 + $0x2c] sm:$0xf]
    %v3390 = vld [vmem:[%s10 + $0x30] sm:$0xf]
    %v3391 = vld [vmem:[%s10 + $0x34] sm:$0xf]
    %v3392 = vld [vmem:[%s10 + $0x38] sm:$0xf]
    %v3393 = vld [vmem:[%s10 + $0x3c] sm:$0xf]
    %v3394 = vld [vmem:[%s10 + $0x40] sm:$0xf]
    %v3395 = vld [vmem:[%s10 + $0x44] sm:$0xf]
    %v3396 = vld [vmem:[%s10 + $0x48] sm:$0xf]
    %v3397 = vld [vmem:[%s10 + $0x4c] sm:$0xf]
    %v3398 = vld [vmem:[%s10 + $0x50] sm:$0xf]
    %v3399 = vld [vmem:[%s10 + $0x54] sm:$0xf]
    %v3400 = vld [vmem:[%s10 + $0x58] sm:$0xf]
    %v3401 = vld [vmem:[%s10 + $0x5c] sm:$0xf]
    %v3402 = vld [vmem:[%s10 + $0x60] sm:$0xf]
    %v3403 = vld [vmem:[%s10 + $0x64] sm:$0xf]
    %v3404 = vld [vmem:[%s10 + $0x68] sm:$0xf]
    %v3405 = vld [vmem:[%s10 + $0x6c] sm:$0xf]
    %v3406 = vld [vmem:[%s10 + $0x70] sm:$0xf]
    %v3407 = vld [vmem:[%s10 + $0x74] sm:$0xf]
    %v3408 = vld [vmem:[%s10 + $0x78] sm:$0xf]
    %v3409 = vld [vmem:[%s10 + $0x7c] sm:$0xf]
    %v3410 = vld [vmem:[%s11] sm:$0x1]
    %v3412 = vlaneseq
    %v3413 = vshrl.u32 %v3412, 7
    %v3414 = vsub.s32 0, %v3413
    %v3415 = vrot.slane %v3410, %v3414
    %v3449 = vunpack.c.l.b16 %v3378
    %v3450 = vunpack.c.l.b16 %v3379
    %v3451 = vunpack.c.l.b16 %v3380
    %v3452 = vunpack.c.l.b16 %v3381
    %v3453 = vunpack.c.l.b16 %v3382
    %v3454 = vunpack.c.l.b16 %v3383
    %v3455 = vunpack.c.l.b16 %v3384
    %v3456 = vunpack.c.l.b16 %v3385
    %v3457 = vunpack.c.l.b16 %v3386
    %v3458 = vunpack.c.l.b16 %v3387
    %v3459 = vunpack.c.l.b16 %v3388
    %v3460 = vunpack.c.l.b16 %v3389
    %v3461 = vunpack.c.l.b16 %v3390
    %v3462 = vunpack.c.l.b16 %v3391
    %v3463 = vunpack.c.l.b16 %v3392
    %v3464 = vunpack.c.l.b16 %v3393
    %v3465 = vunpack.c.l.b16 %v3394
    %v3466 = vunpack.c.l.b16 %v3395
    %v3467 = vunpack.c.l.b16 %v3396
    %v3468 = vunpack.c.l.b16 %v3397
    %v3469 = vunpack.c.l.b16 %v3398
    %v3470 = vunpack.c.l.b16 %v3399
    %v3471 = vunpack.c.l.b16 %v3400
    %v3472 = vunpack.c.l.b16 %v3401
    %v3473 = vunpack.c.l.b16 %v3402
    %v3474 = vunpack.c.l.b16 %v3403
    %v3475 = vunpack.c.l.b16 %v3404
    %v3476 = vunpack.c.l.b16 %v3405
    %v3477 = vunpack.c.l.b16 %v3406
    %v3478 = vunpack.c.l.b16 %v3407
    %v3479 = vunpack.c.l.b16 %v3408
    %v3480 = vunpack.c.l.b16 %v3409
    %v3481 = vpack.c.b16 %v3450, %v3449
    %v3482 = vpack.c.b16 %v3452, %v3451
    %v3483 = vpack.c.b16 %v3454, %v3453
    %v3484 = vpack.c.b16 %v3456, %v3455
    %v3485 = vpack.c.b16 %v3458, %v3457
    %v3486 = vpack.c.b16 %v3460, %v3459
    %v3487 = vpack.c.b16 %v3462, %v3461
    %v3488 = vpack.c.b16 %v3464, %v3463
    %v3489 = vpack.c.b16 %v3466, %v3465
    %v3490 = vpack.c.b16 %v3468, %v3467
    %v3491 = vpack.c.b16 %v3470, %v3469
    %v3492 = vpack.c.b16 %v3472, %v3471
    %v3493 = vpack.c.b16 %v3474, %v3473
    %v3494 = vpack.c.b16 %v3476, %v3475
    %v3495 = vpack.c.b16 %v3478, %v3477
    %v3496 = vpack.c.b16 %v3480, %v3479
    %3513 = vmatprep.subr.bf16.mxu0 0
    %3514 = vmatpush1.bf16.msra.mxu0 %v3488
    %3515 = vmatprep.subr.bf16.mxu0 0
    %3516 = vmatpush1.bf16.msra.mxu0 %v3487
    %3517 = vmatprep.subr.bf16.mxu0 0
    %3518 = vmatpush1.bf16.msra.mxu0 %v3486
    %3519 = vmatprep.subr.bf16.mxu0 0
    %3520 = vmatpush1.bf16.msra.mxu0 %v3485
    %3521 = vmatprep.subr.bf16.mxu0 0
    %3522 = vmatpush1.bf16.msra.mxu0 %v3484
    %3523 = vmatprep.subr.bf16.mxu0 0
    %3524 = vmatpush1.bf16.msra.mxu0 %v3483
    %3525 = vmatprep.subr.bf16.mxu0 0
    %3526 = vmatpush1.bf16.msra.mxu0 %v3482
    %3527 = vmatprep.subr.bf16.mxu0 0
    %3528 = vmatpush1.bf16.msra.mxu0 %v3481
    %3529 = vmatprep.subr.bf16.mxu0 0
    %3530 = vmatpush2.bf16.msra.mxu0 %v3496
    %3531 = vmatprep.subr.bf16.mxu0 0
    %3532 = vmatpush2.bf16.msra.mxu0 %v3495
    %3533 = vmatprep.subr.bf16.mxu0 0
    %3534 = vmatpush2.bf16.msra.mxu0 %v3494
    %3535 = vmatprep.subr.bf16.mxu0 0
    %3536 = vmatpush2.bf16.msra.mxu0 %v3493
    %3537 = vmatprep.subr.bf16.mxu0 0
    %3538 = vmatpush2.bf16.msra.mxu0 %v3492
    %3539 = vmatprep.subr.bf16.mxu0 0
    %3540 = vmatpush2.bf16.msra.mxu0 %v3491
    %3541 = vmatprep.subr.bf16.mxu0 0
    %3542 = vmatpush2.bf16.msra.mxu0 %v3490
    %3543 = vmatprep.subr.bf16.mxu0 0
    %3544 = vmatpush2.bf16.msra.mxu0 %v3489
    %3545 = vmatprep.mubr.bf16.mxu0 %v3377
    %3546 = vmatmul.mubr.bf16.gmra.mxu0 %v3376
    %v3547 = vpop.f32.mrf.mxu0
    %v3548 = vadd.f32 %v3415, %v3547
    %v3549 = vpop.f32.mrf.mxu0
    %v3550 = vpop.f32.mrf.mxu0
    %v3551 = vpop.f32.mrf.mxu0
    %3552 = vdwg.mxu0
    %v3553 = vmax.f32 %v3548, 0.0
    %vm3554 = vcmask 130048
    %3555 = vst.msk [vmem:[#allocation5] sm:$0xff] %vm3554, %v3553
    // Predicated region
    $region50: #{tpu_custom_call.1} parent=1 // pred_check
      _
    $region51: #{tpu_custom_call.1} parent=1 // pred_check_branch
      %3557 = sbr.rel (0) target = $region53
    $region52: #{tpu_custom_call.1} parent=1 // pred_region
      %s3559 = ssub.s32 128, 128
      %3560 = vsyncadd [#allocation6], %s3559
      %s3562 = sshll.u32 [#allocation5], 4
      %s3563 = int_to_ptr.vmem [resolvable:$true] %s3562
      %3565 = dma.vmem_to_hbm [thread:$0]  %s3563, 128, %s12, [#allocation6]
    $region53: #{tpu_custom_call.1} parent=1 // pred_fallthru
      _
    // Predicated region
    $region54: #{tpu_custom_call.1} parent=1 // pred_check
      _
    $region55: #{tpu_custom_call.1} parent=1 // pred_check_branch
      %3567 = sbr.rel (0) target = $region57
    $region56: #{tpu_custom_call.1} parent=1 // pred_region
      %3568 = dma.done [#allocation6], 128
    $region57: #{tpu_custom_call.1} parent=1 // pred_fallthru
      _
    %3569 = vsyncpa [#allocation6], 1

</llo_original>
